<compile_context>
chip_gen: v5e
topology: v5e:2x2
jax: 0.10.0
libtpu: 0.0.40
codegen_flags: <defaults>
</compile_context>

<pallas_src>
import functools

import jax
import jax.numpy as jnp
from jax import lax
from jax.experimental import pallas as pl
from jax.experimental.pallas import tpu as pltpu

EPS = 1e-5


# ---------------------------------------------------------------------------
# relu(GroupNorm(1,C)(x / rate)) on a spatial-major (S, C) tile.
# Scaler folded into eps; single-pass stats with non-negative variance clamp.
# ---------------------------------------------------------------------------
def _norm_relu(x, g_ref, b_ref, eps_eff):
    inv_n = 1.0 / float(x.size)
    s1 = jnp.sum(x)
    s2 = jnp.sum(x * x)
    mean = s1 * inv_n
    var = jnp.maximum(s2 * inv_n - mean * mean, 0.0)   # clamp: no rsqrt(neg) NaNs
    inv = lax.rsqrt(var + eps_eff)
    g = g_ref[...]                                      # (1, C) broadcast over sublanes
    b = b_ref[...]
    return jnp.maximum((x - mean) * inv * g + b, 0.0)


# ---------------------------------------------------------------------------
# Fused Bottleneck kernel (one batch sample per grid step).
#   x_ref : (1, Cin, H*W)      NCHW, spatial flattened on the lane axis
#   o_ref : (1, 4*planes, Ho*Wo)
# ---------------------------------------------------------------------------
def _bottleneck_kernel(x_ref, g1_ref, b1_ref, g2_ref, b2_ref, g3_ref, b3_ref,
                       w1_ref, w2_ref, w3t_ref, wsct_ref,
                       o_ref, pad_ref, patch_ref, *,
                       H, W, stride, has_shortcut, eps_eff, use_bf16):
    cin = x_ref.shape[1]
    planes = w1_ref.shape[1]
    Ho = (H + 2 - 3) // stride + 1
    Wo = (W + 2 - 3) // stride + 1
    s_out = Ho * Wo

    def mx(v):   # MXU operand dtype (accumulation stays f32 via preferred_element_type)
        return v.astype(jnp.bfloat16) if use_bf16 else v

    # ---- input: channel-major -> spatial-major (one small on-chip transpose) ----
    x_cm = x_ref[0]                                      # (Cin, S)   S = H*W
    x_sm = jnp.transpose(x_cm)                           # (S, Cin)   XLU, stays on-chip

    # ---- norm1 + relu + conv1 (1x1) ----
    h1 = _norm_relu(x_sm, g1_ref, b1_ref, eps_eff)       # (S, Cin)
    out1 = jnp.dot(mx(h1), w1_ref[...],
                   preferred_element_type=jnp.float32)   # (S, planes)

    # ---- norm2 + relu + conv2 (3x3, pad 1, stride s) via halo scratch + im2col ----
    h2 = _norm_relu(out1, g2_ref, b2_ref, eps_eff)       # (S, planes)

    # zero ONLY the 1-px halo border; interior is fully overwritten every step
    pad_ref[0:1, :, :] = jnp.zeros((1, W + 2, planes), jnp.float32)
    pad_ref[H + 1:H + 2, :, :] = jnp.zeros((1, W + 2, planes), jnp.float32)
    pad_ref[:, 0:1, :] = jnp.zeros((H + 2, 1, planes), jnp.float32)
    pad_ref[:, W + 1:W + 2, :] = jnp.zeros((H + 2, 1, planes), jnp.float32)
    pad_ref[pl.ds(1, H), pl.ds(1, W), :] = h2.reshape(H, W, planes)

    xp = pad_ref[...]                                    # (H+2, W+2, planes)
    for dy in range(3):
        for dx in range(3):
            tap = 3 * dy + dx
            piece = lax.slice(
                xp, (dy, dx, 0),
                (dy + (Ho - 1) * stride + 1, dx + (Wo - 1) * stride + 1, planes),
                (stride, stride, 1))                      # (Ho, Wo, planes)
            patch_ref[:, tap * planes:(tap + 1) * planes] = piece.reshape(s_out, planes)

    out2 = jnp.dot(mx(patch_ref[...]), w2_ref[...],
                   preferred_element_type=jnp.float32)   # (S_out, planes), K = 9*planes

    # ---- norm3 + relu + conv3 (1x1) in output-channel-major form (A @ B^T) ----
    h3 = _norm_relu(out2, g3_ref, b3_ref, eps_eff)       # (S_out, planes)
    y_cm = lax.dot_general(w3t_ref[...], mx(h3),
                           dimension_numbers=(((1,), (1,)), ((), ())),
                           preferred_element_type=jnp.float32)   # (4*planes, S_out)

    # ---- residual ----
    if has_shortcut:
        if stride == 1:
            h1s = h1                                      # (S, Cin)
        else:
            h1s = lax.slice(h1.reshape(H, W, cin), (0, 0, 0),
                            ((Ho - 1) * stride + 1, (Wo - 1) * stride + 1, cin),
                            (stride, stride, 1)).reshape(s_out, cin)
        sc_cm = lax.dot_general(wsct_ref[...], mx(h1s),
                                dimension_numbers=(((1,), (1,)), ((), ())),
                                preferred_element_type=jnp.float32)  # (4*planes, S_out)
    else:
        sc_cm = x_cm                                      # identity: raw input, pre-norm

    o_ref[0] = (y_cm + sc_cm).astype(o_ref.dtype)


# ---------------------------------------------------------------------------
# Parameters (deterministic, PyTorch-default-style: He-normal convs, unit norm)
# ---------------------------------------------------------------------------
def init_params(key, in_planes, planes):
    out_planes = 4 * planes
    ks = jax.random.split(key, 4)

    def conv_w(k, cin, cout, kh, kw):
        fan_in = cin * kh * kw
        return jax.random.normal(k, (kh, kw, cin, cout), jnp.float32) * jnp.sqrt(2.0 / fan_in)

    return {
        "g1": jnp.ones((in_planes,), jnp.float32), "b1": jnp.zeros((in_planes,), jnp.float32),
        "g2": jnp.ones((planes,), jnp.float32),    "b2": jnp.zeros((planes,), jnp.float32),
        "g3": jnp.ones((planes,), jnp.float32),    "b3": jnp.zeros((planes,), jnp.float32),
        "w1": conv_w(ks[0], in_planes, planes, 1, 1).reshape(in_planes, planes),
        "w2": conv_w(ks[1], planes, planes, 3, 3),                       # HWIO
        "w3": conv_w(ks[2], planes, out_planes, 1, 1).reshape(planes, out_planes),
        "w_sc": conv_w(ks[3], in_planes, out_planes, 1, 1).reshape(in_planes, out_planes),
    }


# ---------------------------------------------------------------------------
# Bottleneck forward (matches the PyTorch forward; NCHW in / NCHW out,
# no wrapper transposes — only metadata reshapes).
# ---------------------------------------------------------------------------
def bottleneck_forward(x_nchw, p, *, stride, rate, in_planes, planes, use_bf16=True):
    out_planes = 4 * planes
    has_shortcut = (stride != 1) or (in_planes != out_planes)
    eps_eff = EPS * rate * rate                       # exact scaler -> eps fold

    n, cin, h, w = x_nchw.shape
    assert cin == in_planes
    ho = (h + 2 - 3) // stride + 1
    wo = (w + 2 - 3) // stride + 1
    s_in, s_out = h * w, ho * wo

    x_flat = x_nchw.reshape(n, cin, s_in)             # free reshape, lane-dense last dim

    wdt = jnp.bfloat16 if use_bf16 else jnp.float32
    g1 = p["g1"].reshape(1, in_planes); b1 = p["b1"].reshape(1, in_planes)
    g2 = p["g2"].reshape(1, planes);    b2 = p["b2"].reshape(1, planes)
    g3 = p["g3"].reshape(1, planes);    b3 = p["b3"].reshape(1, planes)
    w1   = p["w1"].astype(wdt)                                  # (Cin, planes)
    w2f  = p["w2"].reshape(9 * planes, planes).astype(wdt)      # (9*planes, planes)
    w3t  = jnp.transpose(p["w3"]).astype(wdt)                   # (4*planes, planes)
    wsct = jnp.transpose(p["w_sc"]).astype(wdt)                 # (4*planes, Cin)

    kern = functools.partial(_bottleneck_kernel, H=h, W=w, stride=stride,
                             has_shortcut=has_shortcut, eps_eff=eps_eff,
                             use_bf16=use_bf16)

    y_flat = pl.pallas_call(
        kern,
        out_shape=jax.ShapeDtypeStruct((n, out_planes, s_out), x_nchw.dtype),
        grid=(n,),
        in_specs=[
            pl.BlockSpec((1, cin, s_in), lambda i: (i, 0, 0)),
            pl.BlockSpec((1, in_planes), lambda i: (0, 0)),
            pl.BlockSpec((1, in_planes), lambda i: (0, 0)),
            pl.BlockSpec((1, planes), lambda i: (0, 0)),
            pl.BlockSpec((1, planes), lambda i: (0, 0)),
            pl.BlockSpec((1, planes), lambda i: (0, 0)),
            pl.BlockSpec((1, planes), lambda i: (0, 0)),
            pl.BlockSpec((in_planes, planes), lambda i: (0, 0)),
            pl.BlockSpec((9 * planes, planes), lambda i: (0, 0)),
            pl.BlockSpec((out_planes, planes), lambda i: (0, 0)),
            pl.BlockSpec((out_planes, in_planes), lambda i: (0, 0)),
        ],
        out_specs=pl.BlockSpec((1, out_planes, s_out), lambda i: (i, 0, 0)),
        scratch_shapes=[
            pltpu.VMEM((h + 2, w + 2, planes), jnp.float32),     # 3x3 halo scratch
            pltpu.VMEM((s_out, 9 * planes), jnp.float32),        # im2col patch matrix
        ],
        compiler_params=pltpu.CompilerParams(dimension_semantics=("parallel",)),
    )(x_flat, g1, b1, g2, b2, g3, b3, w1, w2f, w3t, wsct)

    return y_flat.reshape(n, out_planes, ho, wo)


# ---------------------------------------------------------------------------
# Pure-JAX reference (correctness check only)
# ---------------------------------------------------------------------------
def _ref_forward(x_nchw, p, *, stride, rate, in_planes, planes):
    out_planes = 4 * planes
    has_shortcut = (stride != 1) or (in_planes != out_planes)
    x = jnp.transpose(x_nchw, (0, 2, 3, 1))

    def act(v, g, b):
        v = v / rate
        m = jnp.mean(v, axis=(1, 2, 3), keepdims=True)
        var = jnp.mean((v - m) ** 2, axis=(1, 2, 3), keepdims=True)
        vn = (v - m) * jax.lax.rsqrt(var + EPS)
        return jnp.maximum(vn * g.reshape(1, 1, 1, -1) + b.reshape(1, 1, 1, -1), 0.0)

    def conv(v, w_hwio, s, pad):
        return jax.lax.conv_general_dilated(
            v, w_hwio, (s, s), [(pad, pad), (pad, pad)],
            dimension_numbers=("NHWC", "HWIO", "NHWC"))

    h1 = act(x, p["g1"], p["b1"])
    if has_shortcut:
        shortcut = conv(h1, p["w_sc"].reshape(1, 1, in_planes, out_planes), stride, 0)
    else:
        shortcut = x
    out = conv(h1, p["w1"].reshape(1, 1, in_planes, planes), 1, 0)
    out = conv(act(out, p["g2"], p["b2"]), p["w2"], stride, 1)
    out = conv(act(out, p["g3"], p["b3"]), p["w3"].reshape(1, 1, planes, out_planes), 1, 0)
    out = out + shortcut
    return jnp.transpose(out, (0, 3, 1, 2))


if __name__ == "__main__":
    key = jax.random.PRNGKey(0)

    configs = [
        # (N, in_planes, planes, H, W, stride, rate)
        (2, 16, 8, 16, 16, 1, 0.5),   # shortcut conv (in_planes != 4*planes)
        (2, 32, 8, 16, 16, 2, 0.5),   # strided shortcut conv + strided 3x3
        (2, 32, 8, 16, 16, 1, 0.5),   # identity residual (in_planes == 4*planes)
    ]

    for idx, (N, in_planes, planes, H, W, stride, rate) in enumerate(configs):
        kx, kp = jax.random.split(jax.random.fold_in(key, idx))
        x = jax.random.normal(kx, (N, in_planes, H, W), jnp.float32)
        params = init_params(kp, in_planes, planes)
        y_ref = _ref_forward(x, params, stride=stride, rate=rate,
                             in_planes=in_planes, planes=planes)
        ref_scale = float(jnp.abs(y_ref).max())
        ho = (H + 2 - 3) // stride + 1

        for use_bf16, tol in ((False, 2e-3), (True, 6e-2)):
            fwd = jax.jit(functools.partial(bottleneck_forward, stride=stride,
                                            rate=rate, in_planes=in_planes,
                                            planes=planes, use_bf16=use_bf16))
            y = fwd(x, params)
            jax.block_until_ready(y)
            assert y.shape == (N, 4 * planes, ho, ho), y.shape
            rel_err = float(jnp.abs(y - y_ref).max()) / max(ref_scale, 1e-6)
            assert rel_err < tol, (idx, use_bf16, rel_err)

    print("KERNEL_OK")
</pallas_src>

<mosaic_0001>
module attributes {stable_mosaic.version = 11 : i64} {
  func.func @_bottleneck_kernel(%arg0: i32, %arg1: memref<1x16x256xf32, #tpu.memory_space<vmem>>, %arg2: memref<1x16xf32, #tpu.memory_space<vmem>>, %arg3: memref<1x16xf32, #tpu.memory_space<vmem>>, %arg4: memref<1x8xf32, #tpu.memory_space<vmem>>, %arg5: memref<1x8xf32, #tpu.memory_space<vmem>>, %arg6: memref<1x8xf32, #tpu.memory_space<vmem>>, %arg7: memref<1x8xf32, #tpu.memory_space<vmem>>, %arg8: memref<16x8xf32, #tpu.memory_space<vmem>>, %arg9: memref<72x8xf32, #tpu.memory_space<vmem>>, %arg10: memref<32x8xf32, #tpu.memory_space<vmem>>, %arg11: memref<32x16xf32, #tpu.memory_space<vmem>>, %arg12: memref<1x32x256xf32, #tpu.memory_space<vmem>>, %arg13: memref<18x18x8xf32, #tpu.memory_space<vmem>>, %arg14: memref<256x72xf32, #tpu.memory_space<vmem>>) attributes {dimension_semantics = [#tpu.dimension_semantics<parallel>], iteration_bounds = array<i64: 2>, scalar_prefetch = 0 : i64, scratch_operands = 2 : i64, tpu.core_type = #tpu.core_type<tc>, window_params = [{transform_indices = @transform_0, window_bounds = array<i64: 1, 16, 256>}, {pipeline_mode = #tpu.pipeline_mode<synchronous>, transform_indices = @transform_1, window_bounds = array<i64: 1, 16>}, {pipeline_mode = #tpu.pipeline_mode<synchronous>, transform_indices = @transform_2, window_bounds = array<i64: 1, 16>}, {pipeline_mode = #tpu.pipeline_mode<synchronous>, transform_indices = @transform_3, window_bounds = array<i64: 1, 8>}, {pipeline_mode = #tpu.pipeline_mode<synchronous>, transform_indices = @transform_4, window_bounds = array<i64: 1, 8>}, {pipeline_mode = #tpu.pipeline_mode<synchronous>, transform_indices = @transform_5, window_bounds = array<i64: 1, 8>}, {pipeline_mode = #tpu.pipeline_mode<synchronous>, transform_indices = @transform_6, window_bounds = array<i64: 1, 8>}, {pipeline_mode = #tpu.pipeline_mode<synchronous>, transform_indices = @transform_7, window_bounds = array<i64: 16, 8>}, {pipeline_mode = #tpu.pipeline_mode<synchronous>, transform_indices = @transform_8, window_bounds = array<i64: 72, 8>}, {pipeline_mode = #tpu.pipeline_mode<synchronous>, transform_indices = @transform_9, window_bounds = array<i64: 32, 8>}, {pipeline_mode = #tpu.pipeline_mode<synchronous>, transform_indices = @transform_10, window_bounds = array<i64: 32, 16>}, {transform_indices = @transform_11, window_bounds = array<i64: 1, 32, 256>}]} {
    %c0 = arith.constant 0 : index
    %c0_0 = arith.constant 0 : index
    %c0_1 = arith.constant 0 : index
    %0 = vector.load %arg1[%c0, %c0_0, %c0_1] : memref<1x16x256xf32, #tpu.memory_space<vmem>>, vector<1x16x256xf32>
    %1 = vector.shape_cast %0 : vector<1x16x256xf32> to vector<16x256xf32>
    %2 = tpu.transpose %1, [1, 0] : vector<16x256xf32> -> vector<256x16xf32>
    %3 = vector.shape_cast %2 : vector<256x16xf32> to vector<1x256x16xf32>
    %cst = arith.constant dense<0.000000e+00> : vector<1xf32>
    %4 = vector.multi_reduction <add>, %3, %cst [1, 2] : vector<1x256x16xf32> to vector<1xf32>
    %5 = vector.shape_cast %4 : vector<1xf32> to vector<1x1x1xf32>
    %6 = vector.extract %5[0, 0, 0] : f32 from vector<1x1x1xf32>
    %7 = arith.mulf %2, %2 : vector<256x16xf32>
    %8 = vector.shape_cast %7 : vector<256x16xf32> to vector<1x256x16xf32>
    %cst_2 = arith.constant dense<0.000000e+00> : vector<1xf32>
    %9 = vector.multi_reduction <add>, %8, %cst_2 [1, 2] : vector<1x256x16xf32> to vector<1xf32>
    %10 = vector.shape_cast %9 : vector<1xf32> to vector<1x1x1xf32>
    %11 = vector.extract %10[0, 0, 0] : f32 from vector<1x1x1xf32>
    %cst_3 = arith.constant 2.44140625E-4 : f32
    %12 = arith.mulf %6, %cst_3 : f32
    %cst_4 = arith.constant 2.44140625E-4 : f32
    %13 = arith.mulf %11, %cst_4 : f32
    %14 = arith.mulf %12, %12 : f32
    %15 = arith.subf %13, %14 : f32
    %cst_5 = arith.constant 0.000000e+00 : f32
    %16 = arith.maximumf %15, %cst_5 : f32
    %cst_6 = arith.constant 2.500000e-06 : f32
    %17 = arith.addf %16, %cst_6 : f32
    %18 = math.rsqrt %17 : f32
    %c0_7 = arith.constant 0 : index
    %c0_8 = arith.constant 0 : index
    %19 = vector.load %arg2[%c0_7, %c0_8] : memref<1x16xf32, #tpu.memory_space<vmem>>, vector<1x16xf32>
    %c0_9 = arith.constant 0 : index
    %c0_10 = arith.constant 0 : index
    %20 = vector.load %arg3[%c0_9, %c0_10] : memref<1x16xf32, #tpu.memory_space<vmem>>, vector<1x16xf32>
    %21 = vector.broadcast %12 : f32 to vector<256x16xf32>
    %22 = arith.subf %2, %21 : vector<256x16xf32>
    %23 = vector.broadcast %18 : f32 to vector<256x16xf32>
    %24 = arith.mulf %22, %23 : vector<256x16xf32>
    %25 = vector.broadcast %19 : vector<1x16xf32> to vector<256x16xf32>
    %26 = arith.mulf %24, %25 : vector<256x16xf32>
    %27 = vector.broadcast %20 : vector<1x16xf32> to vector<256x16xf32>
    %28 = arith.addf %26, %27 : vector<256x16xf32>
    %cst_11 = arith.constant 0.000000e+00 : f32
    %29 = vector.broadcast %cst_11 : f32 to vector<256x16xf32>
    %30 = arith.maximumf %28, %29 : vector<256x16xf32>
    %c0_12 = arith.constant 0 : index
    %c0_13 = arith.constant 0 : index
    %31 = vector.load %arg8[%c0_12, %c0_13] : memref<16x8xf32, #tpu.memory_space<vmem>>, vector<16x8xf32>
    %cst_14 = arith.constant dense<0.000000e+00> : vector<256x8xf32>
    %32 = tpu.matmul %30, %31, %cst_14 {dimension_numbers = #tpu.dot_dimension_numbers<[1], [0], [0], [1], [0, 0, 1, 1], [], []>} : vector<256x16xf32>, vector<16x8xf32>, vector<256x8xf32> -> vector<256x8xf32>
    %33 = vector.shape_cast %32 : vector<256x8xf32> to vector<1x256x8xf32>
    %cst_15 = arith.constant dense<0.000000e+00> : vector<1xf32>
    %34 = vector.multi_reduction <add>, %33, %cst_15 [1, 2] : vector<1x256x8xf32> to vector<1xf32>
    %35 = vector.shape_cast %34 : vector<1xf32> to vector<1x1x1xf32>
    %36 = vector.extract %35[0, 0, 0] : f32 from vector<1x1x1xf32>
    %37 = arith.mulf %32, %32 : vector<256x8xf32>
    %38 = vector.shape_cast %37 : vector<256x8xf32> to vector<1x256x8xf32>
    %cst_16 = arith.constant dense<0.000000e+00> : vector<1xf32>
    %39 = vector.multi_reduction <add>, %38, %cst_16 [1, 2] : vector<1x256x8xf32> to vector<1xf32>
    %40 = vector.shape_cast %39 : vector<1xf32> to vector<1x1x1xf32>
    %41 = vector.extract %40[0, 0, 0] : f32 from vector<1x1x1xf32>
    %cst_17 = arith.constant 4.8828125E-4 : f32
    %42 = arith.mulf %36, %cst_17 : f32
    %cst_18 = arith.constant 4.8828125E-4 : f32
    %43 = arith.mulf %41, %cst_18 : f32
    %44 = arith.mulf %42, %42 : f32
    %45 = arith.subf %43, %44 : f32
    %cst_19 = arith.constant 0.000000e+00 : f32
    %46 = arith.maximumf %45, %cst_19 : f32
    %cst_20 = arith.constant 2.500000e-06 : f32
    %47 = arith.addf %46, %cst_20 : f32
    %48 = math.rsqrt %47 : f32
    %c0_21 = arith.constant 0 : index
    %c0_22 = arith.constant 0 : index
    %49 = vector.load %arg4[%c0_21, %c0_22] : memref<1x8xf32, #tpu.memory_space<vmem>>, vector<1x8xf32>
    %c0_23 = arith.constant 0 : index
    %c0_24 = arith.constant 0 : index
    %50 = vector.load %arg5[%c0_23, %c0_24] : memref<1x8xf32, #tpu.memory_space<vmem>>, vector<1x8xf32>
    %51 = vector.broadcast %42 : f32 to vector<256x8xf32>
    %52 = arith.subf %32, %51 : vector<256x8xf32>
    %53 = vector.broadcast %48 : f32 to vector<256x8xf32>
    %54 = arith.mulf %52, %53 : vector<256x8xf32>
    %55 = vector.broadcast %49 : vector<1x8xf32> to vector<256x8xf32>
    %56 = arith.mulf %54, %55 : vector<256x8xf32>
    %57 = vector.broadcast %50 : vector<1x8xf32> to vector<256x8xf32>
    %58 = arith.addf %56, %57 : vector<256x8xf32>
    %cst_25 = arith.constant 0.000000e+00 : f32
    %59 = vector.broadcast %cst_25 : f32 to vector<256x8xf32>
    %60 = arith.maximumf %58, %59 : vector<256x8xf32>
    %cst_26 = arith.constant 0.000000e+00 : f32
    %61 = vector.broadcast %cst_26 : f32 to vector<1x18x8xf32>
    %c0_27 = arith.constant 0 : index
    %c0_28 = arith.constant 0 : index
    %c0_29 = arith.constant 0 : index
    %62 = vector.load %arg13[%c0_27, %c0_28, %c0_29] : memref<18x18x8xf32, #tpu.memory_space<vmem>>, vector<1x18x8xf32>
    tpu.vector_store %arg13[%c0_27, %c0_28, %c0_29], %61 {strides = array<i32>} : memref<18x18x8xf32, #tpu.memory_space<vmem>>, vector<1x18x8xf32>,
    %cst_30 = arith.constant 0.000000e+00 : f32
    %63 = vector.broadcast %cst_30 : f32 to vector<1x18x8xf32>
    %c17 = arith.constant 17 : index
    %c0_31 = arith.constant 0 : index
    %c0_32 = arith.constant 0 : index
    %64 = vector.load %arg13[%c17, %c0_31, %c0_32] : memref<18x18x8xf32, #tpu.memory_space<vmem>>, vector<1x18x8xf32>
    tpu.vector_store %arg13[%c17, %c0_31, %c0_32], %63 {strides = array<i32>} : memref<18x18x8xf32, #tpu.memory_space<vmem>>, vector<1x18x8xf32>,
    %cst_33 = arith.constant 0.000000e+00 : f32
    %65 = vector.broadcast %cst_33 : f32 to vector<18x1x8xf32>
    %c0_34 = arith.constant 0 : index
    %c0_35 = arith.constant 0 : index
    %c0_36 = arith.constant 0 : index
    %66 = vector.load %arg13[%c0_34, %c0_35, %c0_36] : memref<18x18x8xf32, #tpu.memory_space<vmem>>, vector<18x1x8xf32>
    tpu.vector_store %arg13[%c0_34, %c0_35, %c0_36], %65 {strides = array<i32>} : memref<18x18x8xf32, #tpu.memory_space<vmem>>, vector<18x1x8xf32>,
    %cst_37 = arith.constant 0.000000e+00 : f32
    %67 = vector.broadcast %cst_37 : f32 to vector<18x1x8xf32>
    %c0_38 = arith.constant 0 : index
    %c17_39 = arith.constant 17 : index
    %c0_40 = arith.constant 0 : index
    %68 = vector.load %arg13[%c0_38, %c17_39, %c0_40] : memref<18x18x8xf32, #tpu.memory_space<vmem>>, vector<18x1x8xf32>
    tpu.vector_store %arg13[%c0_38, %c17_39, %c0_40], %67 {strides = array<i32>} : memref<18x18x8xf32, #tpu.memory_space<vmem>>, vector<18x1x8xf32>,
    %69 = vector.shape_cast %60 : vector<256x8xf32> to vector<16x16x8xf32>
    %c1 = arith.constant 1 : index
    %c1_41 = arith.constant 1 : index
    %c0_42 = arith.constant 0 : index
    %70 = vector.load %arg13[%c1, %c1_41, %c0_42] : memref<18x18x8xf32, #tpu.memory_space<vmem>>, vector<16x16x8xf32>
    tpu.vector_store %arg13[%c1, %c1_41, %c0_42], %69 {strides = array<i32>} : memref<18x18x8xf32, #tpu.memory_space<vmem>>, vector<16x16x8xf32>,
    %c0_43 = arith.constant 0 : index
    %c0_44 = arith.constant 0 : index
    %c0_45 = arith.constant 0 : index
    %71 = vector.load %arg13[%c0_43, %c0_44, %c0_45] : memref<18x18x8xf32, #tpu.memory_space<vmem>>, vector<18x18x8xf32>
    %72 = vector.extract_strided_slice %71 {offsets = [0, 0, 0], sizes = [16, 16, 8], strides = [1, 1, 1]} : vector<18x18x8xf32> to vector<16x16x8xf32>
    %73 = vector.shape_cast %72 : vector<16x16x8xf32> to vector<256x8xf32>
    %c0_46 = arith.constant 0 : index
    %c0_47 = arith.constant 0 : index
    %74 = vector.load %arg14[%c0_46, %c0_47] : memref<256x72xf32, #tpu.memory_space<vmem>>, vector<256x8xf32>
    tpu.vector_store %arg14[%c0_46, %c0_47], %73 {strides = array<i32>} : memref<256x72xf32, #tpu.memory_space<vmem>>, vector<256x8xf32>,
    %75 = vector.extract_strided_slice %71 {offsets = [0, 1, 0], sizes = [16, 16, 8], strides = [1, 1, 1]} : vector<18x18x8xf32> to vector<16x16x8xf32>
    %76 = vector.shape_cast %75 : vector<16x16x8xf32> to vector<256x8xf32>
    %c0_48 = arith.constant 0 : index
    %c8 = arith.constant 8 : index
    %77 = vector.load %arg14[%c0_48, %c8] : memref<256x72xf32, #tpu.memory_space<vmem>>, vector<256x8xf32>
    tpu.vector_store %arg14[%c0_48, %c8], %76 {strides = array<i32>} : memref<256x72xf32, #tpu.memory_space<vmem>>, vector<256x8xf32>,
    %78 = vector.extract_strided_slice %71 {offsets = [0, 2, 0], sizes = [16, 16, 8], strides = [1, 1, 1]} : vector<18x18x8xf32> to vector<16x16x8xf32>
    %79 = vector.shape_cast %78 : vector<16x16x8xf32> to vector<256x8xf32>
    %c0_49 = arith.constant 0 : index
    %c16 = arith.constant 16 : index
    %80 = vector.load %arg14[%c0_49, %c16] : memref<256x72xf32, #tpu.memory_space<vmem>>, vector<256x8xf32>
    tpu.vector_store %arg14[%c0_49, %c16], %79 {strides = array<i32>} : memref<256x72xf32, #tpu.memory_space<vmem>>, vector<256x8xf32>,
    %81 = vector.extract_strided_slice %71 {offsets = [1, 0, 0], sizes = [16, 16, 8], strides = [1, 1, 1]} : vector<18x18x8xf32> to vector<16x16x8xf32>
    %82 = vector.shape_cast %81 : vector<16x16x8xf32> to vector<256x8xf32>
    %c0_50 = arith.constant 0 : index
    %c24 = arith.constant 24 : index
    %83 = vector.load %arg14[%c0_50, %c24] : memref<256x72xf32, #tpu.memory_space<vmem>>, vector<256x8xf32>
    tpu.vector_store %arg14[%c0_50, %c24], %82 {strides = array<i32>} : memref<256x72xf32, #tpu.memory_space<vmem>>, vector<256x8xf32>,
    %84 = vector.extract_strided_slice %71 {offsets = [1, 1, 0], sizes = [16, 16, 8], strides = [1, 1, 1]} : vector<18x18x8xf32> to vector<16x16x8xf32>
    %85 = vector.shape_cast %84 : vector<16x16x8xf32> to vector<256x8xf32>
    %c0_51 = arith.constant 0 : index
    %c32 = arith.constant 32 : index
    %86 = vector.load %arg14[%c0_51, %c32] : memref<256x72xf32, #tpu.memory_space<vmem>>, vector<256x8xf32>
    tpu.vector_store %arg14[%c0_51, %c32], %85 {strides = array<i32>} : memref<256x72xf32, #tpu.memory_space<vmem>>, vector<256x8xf32>,
    %87 = vector.extract_strided_slice %71 {offsets = [1, 2, 0], sizes = [16, 16, 8], strides = [1, 1, 1]} : vector<18x18x8xf32> to vector<16x16x8xf32>
    %88 = vector.shape_cast %87 : vector<16x16x8xf32> to vector<256x8xf32>
    %c0_52 = arith.constant 0 : index
    %c40 = arith.constant 40 : index
    %89 = vector.load %arg14[%c0_52, %c40] : memref<256x72xf32, #tpu.memory_space<vmem>>, vector<256x8xf32>
    tpu.vector_store %arg14[%c0_52, %c40], %88 {strides = array<i32>} : memref<256x72xf32, #tpu.memory_space<vmem>>, vector<256x8xf32>,
    %90 = vector.extract_strided_slice %71 {offsets = [2, 0, 0], sizes = [16, 16, 8], strides = [1, 1, 1]} : vector<18x18x8xf32> to vector<16x16x8xf32>
    %91 = vector.shape_cast %90 : vector<16x16x8xf32> to vector<256x8xf32>
    %c0_53 = arith.constant 0 : index
    %c48 = arith.constant 48 : index
    %92 = vector.load %arg14[%c0_53, %c48] : memref<256x72xf32, #tpu.memory_space<vmem>>, vector<256x8xf32>
    tpu.vector_store %arg14[%c0_53, %c48], %91 {strides = array<i32>} : memref<256x72xf32, #tpu.memory_space<vmem>>, vector<256x8xf32>,
    %93 = vector.extract_strided_slice %71 {offsets = [2, 1, 0], sizes = [16, 16, 8], strides = [1, 1, 1]} : vector<18x18x8xf32> to vector<16x16x8xf32>
    %94 = vector.shape_cast %93 : vector<16x16x8xf32> to vector<256x8xf32>
    %c0_54 = arith.constant 0 : index
    %c56 = arith.constant 56 : index
    %95 = vector.load %arg14[%c0_54, %c56] : memref<256x72xf32, #tpu.memory_space<vmem>>, vector<256x8xf32>
    tpu.vector_store %arg14[%c0_54, %c56], %94 {strides = array<i32>} : memref<256x72xf32, #tpu.memory_space<vmem>>, vector<256x8xf32>,
    %96 = vector.extract_strided_slice %71 {offsets = [2, 2, 0], sizes = [16, 16, 8], strides = [1, 1, 1]} : vector<18x18x8xf32> to vector<16x16x8xf32>
    %97 = vector.shape_cast %96 : vector<16x16x8xf32> to vector<256x8xf32>
    %c0_55 = arith.constant 0 : index
    %c64 = arith.constant 64 : index
    %98 = vector.load %arg14[%c0_55, %c64] : memref<256x72xf32, #tpu.memory_space<vmem>>, vector<256x8xf32>
    tpu.vector_store %arg14[%c0_55, %c64], %97 {strides = array<i32>} : memref<256x72xf32, #tpu.memory_space<vmem>>, vector<256x8xf32>,
    %c0_56 = arith.constant 0 : index
    %c0_57 = arith.constant 0 : index
    %99 = vector.load %arg14[%c0_56, %c0_57] : memref<256x72xf32, #tpu.memory_space<vmem>>, vector<256x72xf32>
    %c0_58 = arith.constant 0 : index
    %c0_59 = arith.constant 0 : index
    %100 = vector.load %arg9[%c0_58, %c0_59] : memref<72x8xf32, #tpu.memory_space<vmem>>, vector<72x8xf32>
    %cst_60 = arith.constant dense<0.000000e+00> : vector<256x8xf32>
    %101 = tpu.matmul %99, %100, %cst_60 {dimension_numbers = #tpu.dot_dimension_numbers<[1], [0], [0], [1], [0, 0, 1, 1], [], []>} : vector<256x72xf32>, vector<72x8xf32>, vector<256x8xf32> -> vector<256x8xf32>
    %102 = vector.shape_cast %101 : vector<256x8xf32> to vector<1x256x8xf32>
    %cst_61 = arith.constant dense<0.000000e+00> : vector<1xf32>
    %103 = vector.multi_reduction <add>, %102, %cst_61 [1, 2] : vector<1x256x8xf32> to vector<1xf32>
    %104 = vector.shape_cast %103 : vector<1xf32> to vector<1x1x1xf32>
    %105 = vector.extract %104[0, 0, 0] : f32 from vector<1x1x1xf32>
    %106 = arith.mulf %101, %101 : vector<256x8xf32>
    %107 = vector.shape_cast %106 : vector<256x8xf32> to vector<1x256x8xf32>
    %cst_62 = arith.constant dense<0.000000e+00> : vector<1xf32>
    %108 = vector.multi_reduction <add>, %107, %cst_62 [1, 2] : vector<1x256x8xf32> to vector<1xf32>
    %109 = vector.shape_cast %108 : vector<1xf32> to vector<1x1x1xf32>
    %110 = vector.extract %109[0, 0, 0] : f32 from vector<1x1x1xf32>
    %cst_63 = arith.constant 4.8828125E-4 : f32
    %111 = arith.mulf %105, %cst_63 : f32
    %cst_64 = arith.constant 4.8828125E-4 : f32
    %112 = arith.mulf %110, %cst_64 : f32
    %113 = arith.mulf %111, %111 : f32
    %114 = arith.subf %112, %113 : f32
    %cst_65 = arith.constant 0.000000e+00 : f32
    %115 = arith.maximumf %114, %cst_65 : f32
    %cst_66 = arith.constant 2.500000e-06 : f32
    %116 = arith.addf %115, %cst_66 : f32
    %117 = math.rsqrt %116 : f32
    %c0_67 = arith.constant 0 : index
    %c0_68 = arith.constant 0 : index
    %118 = vector.load %arg6[%c0_67, %c0_68] : memref<1x8xf32, #tpu.memory_space<vmem>>, vector<1x8xf32>
    %c0_69 = arith.constant 0 : index
    %c0_70 = arith.constant 0 : index
    %119 = vector.load %arg7[%c0_69, %c0_70] : memref<1x8xf32, #tpu.memory_space<vmem>>, vector<1x8xf32>
    %120 = vector.broadcast %111 : f32 to vector<256x8xf32>
    %121 = arith.subf %101, %120 : vector<256x8xf32>
    %122 = vector.broadcast %117 : f32 to vector<256x8xf32>
    %123 = arith.mulf %121, %122 : vector<256x8xf32>
    %124 = vector.broadcast %118 : vector<1x8xf32> to vector<256x8xf32>
    %125 = arith.mulf %123, %124 : vector<256x8xf32>
    %126 = vector.broadcast %119 : vector<1x8xf32> to vector<256x8xf32>
    %127 = arith.addf %125, %126 : vector<256x8xf32>
    %cst_71 = arith.constant 0.000000e+00 : f32
    %128 = vector.broadcast %cst_71 : f32 to vector<256x8xf32>
    %129 = arith.maximumf %127, %128 : vector<256x8xf32>
    %c0_72 = arith.constant 0 : index
    %c0_73 = arith.constant 0 : index
    %130 = vector.load %arg10[%c0_72, %c0_73] : memref<32x8xf32, #tpu.memory_space<vmem>>, vector<32x8xf32>
    %cst_74 = arith.constant dense<0.000000e+00> : vector<32x256xf32>
    %131 = tpu.matmul %130, %129, %cst_74 {dimension_numbers = #tpu.dot_dimension_numbers<[1], [1], [0], [0], [0, 0, 1, 0], [], []>} : vector<32x8xf32>, vector<256x8xf32>, vector<32x256xf32> -> vector<32x256xf32>
    %c0_75 = arith.constant 0 : index
    %c0_76 = arith.constant 0 : index
    %132 = vector.load %arg11[%c0_75, %c0_76] : memref<32x16xf32, #tpu.memory_space<vmem>>, vector<32x16xf32>
    %cst_77 = arith.constant dense<0.000000e+00> : vector<32x256xf32>
    %133 = tpu.matmul %132, %30, %cst_77 {dimension_numbers = #tpu.dot_dimension_numbers<[1], [1], [0], [0], [0, 0, 1, 0], [], []>} : vector<32x16xf32>, vector<256x16xf32>, vector<32x256xf32> -> vector<32x256xf32>
    %134 = arith.addf %131, %133 : vector<32x256xf32>
    %c0_78 = arith.constant 0 : index
    %c0_79 = arith.constant 0 : index
    %c0_80 = arith.constant 0 : index
    %135 = vector.load %arg12[%c0_78, %c0_79, %c0_80] : memref<1x32x256xf32, #tpu.memory_space<vmem>>, vector<1x32x256xf32>
    %136 = vector.shape_cast %135 : vector<1x32x256xf32> to vector<32x256xf32>
    %137 = vector.shape_cast %134 : vector<32x256xf32> to vector<1x32x256xf32>
    tpu.vector_store %arg12[%c0_78, %c0_79, %c0_80], %137 {strides = array<i32>} : memref<1x32x256xf32, #tpu.memory_space<vmem>>, vector<1x32x256xf32>,
    return
  }
  func.func @transform_0(%arg0: i32) -> (i32, i32, i32) {
    %c0_i32 = arith.constant 0 : i32
    %c0_i32_0 = arith.constant 0 : i32
    %c0_i32_1 = arith.constant 0 : i32
    return %arg0, %c0_i32, %c0_i32_0 : i32, i32, i32
  }
  func.func @transform_1(%arg0: i32) -> (i32, i32) {
    %c0_i32 = arith.constant 0 : i32
    %c0_i32_0 = arith.constant 0 : i32
    %c0_i32_1 = arith.constant 0 : i32
    return %c0_i32, %c0_i32_0 : i32, i32
  }
  func.func @transform_2(%arg0: i32) -> (i32, i32) {
    %c0_i32 = arith.constant 0 : i32
    %c0_i32_0 = arith.constant 0 : i32
    %c0_i32_1 = arith.constant 0 : i32
    return %c0_i32, %c0_i32_0 : i32, i32
  }
  func.func @transform_3(%arg0: i32) -> (i32, i32) {
    %c0_i32 = arith.constant 0 : i32
    %c0_i32_0 = arith.constant 0 : i32
    %c0_i32_1 = arith.constant 0 : i32
    return %c0_i32, %c0_i32_0 : i32, i32
  }
  func.func @transform_4(%arg0: i32) -> (i32, i32) {
    %c0_i32 = arith.constant 0 : i32
    %c0_i32_0 = arith.constant 0 : i32
    %c0_i32_1 = arith.constant 0 : i32
    return %c0_i32, %c0_i32_0 : i32, i32
  }
  func.func @transform_5(%arg0: i32) -> (i32, i32) {
    %c0_i32 = arith.constant 0 : i32
    %c0_i32_0 = arith.constant 0 : i32
    %c0_i32_1 = arith.constant 0 : i32
    return %c0_i32, %c0_i32_0 : i32, i32
  }
  func.func @transform_6(%arg0: i32) -> (i32, i32) {
    %c0_i32 = arith.constant 0 : i32
    %c0_i32_0 = arith.constant 0 : i32
    %c0_i32_1 = arith.constant 0 : i32
    return %c0_i32, %c0_i32_0 : i32, i32
  }
  func.func @transform_7(%arg0: i32) -> (i32, i32) {
    %c0_i32 = arith.constant 0 : i32
    %c0_i32_0 = arith.constant 0 : i32
    %c0_i32_1 = arith.constant 0 : i32
    return %c0_i32, %c0_i32_0 : i32, i32
  }
  func.func @transform_8(%arg0: i32) -> (i32, i32) {
    %c0_i32 = arith.constant 0 : i32
    %c0_i32_0 = arith.constant 0 : i32
    %c0_i32_1 = arith.constant 0 : i32
    return %c0_i32, %c0_i32_0 : i32, i32
  }
  func.func @transform_9(%arg0: i32) -> (i32, i32) {
    %c0_i32 = arith.constant 0 : i32
    %c0_i32_0 = arith.constant 0 : i32
    %c0_i32_1 = arith.constant 0 : i32
    return %c0_i32, %c0_i32_0 : i32, i32
  }
  func.func @transform_10(%arg0: i32) -> (i32, i32) {
    %c0_i32 = arith.constant 0 : i32
    %c0_i32_0 = arith.constant 0 : i32
    %c0_i32_1 = arith.constant 0 : i32
    return %c0_i32, %c0_i32_0 : i32, i32
  }
  func.func @transform_11(%arg0: i32) -> (i32, i32, i32) {
    %c0_i32 = arith.constant 0 : i32
    %c0_i32_0 = arith.constant 0 : i32
    %c0_i32_1 = arith.constant 0 : i32
    return %arg0, %c0_i32, %c0_i32_0 : i32, i32, i32
  }
}

</mosaic_0001>

<llo_original>
// kernel: bottleneck_forward.1
$region0: #{bottleneck_forward.1}
  #allocation0 [shape = 'u32[]', space=smem, size = 0x4, offset = 0x4, fixed_abs, tag = 'smem constant byte address 0x4 - core index']
  #allocation1 [shape = 'u32[72,128]{1,0:T(1,128)}', space=vmem, size = 0x9000, scoped, tag = 'internal scratch']
  #allocation2 [shape = 'f32[18,18,8]{2,1,0:T(8,128)}', space=vmem, size = 0x36000, scoped, tag = 'scratch operand']
  #allocation3 [shape = 'f32[256,72]{1,0:T(8,128)}', space=vmem, size = 0x20000, scoped, tag = 'scratch operand']
  %s0 = inlined_call_operand.vmem [shape: f32[2,16,256], index: 0, kind: input, shape index: {}]
  %s1 = inlined_call_operand.vmem [shape: f32[1,16], index: 1, kind: input, shape index: {}]
  %s2 = inlined_call_operand.vmem [shape: f32[1,16], index: 2, kind: input, shape index: {}]
  %s3 = inlined_call_operand.vmem [shape: f32[1,8], index: 3, kind: input, shape index: {}]
  %s4 = inlined_call_operand.vmem [shape: f32[1,8], index: 4, kind: input, shape index: {}]
  %s5 = inlined_call_operand.vmem [shape: f32[1,8], index: 5, kind: input, shape index: {}]
  %s6 = inlined_call_operand.vmem [shape: f32[1,8], index: 6, kind: input, shape index: {}]
  %s7 = inlined_call_operand.vmem [shape: f32[16,8], index: 7, kind: input, shape index: {}]
  %s8 = inlined_call_operand.vmem [shape: f32[72,8], index: 8, kind: input, shape index: {}]
  %s9 = inlined_call_operand.vmem [shape: f32[32,8], index: 9, kind: input, shape index: {}]
  %s10 = inlined_call_operand.vmem [shape: f32[32,16], index: 10, kind: input, shape index: {}]
  %s11 = inlined_call_operand.vmem [shape: f32[2,32,256], index: 11, kind: output, shape index: {}]
  %s12 = sld [smem:[#allocation0]]
  $region77: #{bottleneck_forward.1} parent=0
    _
  %s14 = ssub.s32 1, %s12
  %s15 = scalar_select 0, %s14, %s12
  loop: start=0, step=1, limit=4
  $region2: #{bottleneck_forward.1} parent=0 // loop_pre_header
    _
  $region3: #{bottleneck_forward.1} parent=0 // loop_header
    %s17 = sphi 0, %s21
    %p18 = scmp.ge.s32.totalorder %s17, 4
    %s27 = sphi 0, %s29
    %s30 = sphi 0, %s27
    %s31 = sphi 0, %s30
    %s47 = sphi 0, %s31
    %s51 = sphi 0, %s51
    %s53 = sphi 0, %s51
    %s54 = sphi 0, %s53
    %s68 = sphi 0, %s54
    %s72 = sphi 0, %s72
    %s74 = sphi 0, %s72
    %s75 = sphi 0, %s74
    %s89 = sphi 0, %s75
    %s93 = sphi 0, %s93
    %s95 = sphi 0, %s93
    %s96 = sphi 0, %s95
    %s110 = sphi 0, %s96
    %s114 = sphi 0, %s114
    %s116 = sphi 0, %s114
    %s117 = sphi 0, %s116
    %s131 = sphi 0, %s117
    %s135 = sphi 0, %s135
    %s137 = sphi 0, %s135
    %s138 = sphi 0, %s137
    %s152 = sphi 0, %s138
    %s156 = sphi 0, %s156
    %s158 = sphi 0, %s156
    %s159 = sphi 0, %s158
    %s173 = sphi 0, %s159
    %s177 = sphi 0, %s177
    %s179 = sphi 0, %s177
    %s180 = sphi 0, %s179
    %s194 = sphi 0, %s180
    %s198 = sphi 0, %s198
    %s200 = sphi 0, %s198
    %s201 = sphi 0, %s200
    %s215 = sphi 0, %s201
    %s219 = sphi 0, %s219
    %s221 = sphi 0, %s219
    %s222 = sphi 0, %s221
    %s236 = sphi 0, %s222
    %s240 = sphi 0, %s240
    %s242 = sphi 0, %s240
    %s243 = sphi 0, %s242
    %s257 = sphi 0, %s243
    %s263 = sphi 0, %s265
    %s266 = sphi 0, %s263
    %s267 = sphi 0, %s266
    %s283 = sphi 0, %s267
  $region4: #{bottleneck_forward.1} parent=0 // loop_header_branch
    %20 = sbr.rel (%p18) target = $region8
  $region5: #{bottleneck_forward.1} parent=0 // loop_body
    %s22 = ssub.s32 %s17, 1
    %s23 = ssub.s32 %s17, 2
    %s24 = sadd.s32 %s17, 1
    %s25 = ssub.s32 %s17, %s24
    %p26 = scmp.eq.s32.totalorder %s25, 0
    %s28 = sadd.s32 %s27, 1
    %s29 = scalar_select %p26, %s27, %s28
    %p32 = pneg %p26
    %p33 = scmp.eq.s32.totalorder %s17, 1
    %p34 = por %p32, %p33
    %p35 = scmp.ne.s32.totalorder %s27, %s30
    %p36 = scmp.eq.s32.totalorder %s17, 0
    %p37 = por %p35, %p36
    %p38 = scmp.ne.s32.totalorder %s27, %s30
    %p39 = scmp.eq.s32.totalorder %s22, 1
    %p40 = por %p38, %p39
    %p41 = scmp.ne.s32.totalorder %s30, %s31
    %p42 = scmp.eq.s32.totalorder %s22, 0
    %p43 = por %p41, %p42
    %p44 = scmp.ne.s32.totalorder %s30, %s31
    %p45 = scmp.eq.s32.totalorder %s23, 1
    %p46 = por %p44, %p45
    %p48 = scmp.ne.s32.totalorder %s31, %s47
    %p49 = scmp.eq.s32.totalorder %s23, 0
    %p50 = por %p48, %p49
    %s52 = sadd.s32 %s51, 1
    %p55 = scmp.eq.s32.totalorder %s17, 1
    %p56 = scmp.ne.s32.totalorder %s51, %s53
    %p57 = scmp.eq.s32.totalorder %s17, 0
    %p58 = por %p56, %p57
    %p59 = scmp.ne.s32.totalorder %s51, %s53
    %p60 = scmp.eq.s32.totalorder %s22, 1
    %p61 = por %p59, %p60
    %p62 = scmp.ne.s32.totalorder %s53, %s54
    %p63 = scmp.eq.s32.totalorder %s22, 0
    %p64 = por %p62, %p63
    %p65 = scmp.ne.s32.totalorder %s53, %s54
    %p66 = scmp.eq.s32.totalorder %s23, 1
    %p67 = por %p65, %p66
    %p69 = scmp.ne.s32.totalorder %s54, %s68
    %p70 = scmp.eq.s32.totalorder %s23, 0
    %p71 = por %p69, %p70
    %s73 = sadd.s32 %s72, 1
    %p76 = scmp.eq.s32.totalorder %s17, 1
    %p77 = scmp.ne.s32.totalorder %s72, %s74
    %p78 = scmp.eq.s32.totalorder %s17, 0
    %p79 = por %p77, %p78
    %p80 = scmp.ne.s32.totalorder %s72, %s74
    %p81 = scmp.eq.s32.totalorder %s22, 1
    %p82 = por %p80, %p81
    %p83 = scmp.ne.s32.totalorder %s74, %s75
    %p84 = scmp.eq.s32.totalorder %s22, 0
    %p85 = por %p83, %p84
    %p86 = scmp.ne.s32.totalorder %s74, %s75
    %p87 = scmp.eq.s32.totalorder %s23, 1
    %p88 = por %p86, %p87
    %p90 = scmp.ne.s32.totalorder %s75, %s89
    %p91 = scmp.eq.s32.totalorder %s23, 0
    %p92 = por %p90, %p91
    %s94 = sadd.s32 %s93, 1
    %p97 = scmp.eq.s32.totalorder %s17, 1
    %p98 = scmp.ne.s32.totalorder %s93, %s95
    %p99 = scmp.eq.s32.totalorder %s17, 0
    %p100 = por %p98, %p99
    %p101 = scmp.ne.s32.totalorder %s93, %s95
    %p102 = scmp.eq.s32.totalorder %s22, 1
    %p103 = por %p101, %p102
    %p104 = scmp.ne.s32.totalorder %s95, %s96
    %p105 = scmp.eq.s32.totalorder %s22, 0
    %p106 = por %p104, %p105
    %p107 = scmp.ne.s32.totalorder %s95, %s96
    %p108 = scmp.eq.s32.totalorder %s23, 1
    %p109 = por %p107, %p108
    %p111 = scmp.ne.s32.totalorder %s96, %s110
    %p112 = scmp.eq.s32.totalorder %s23, 0
    %p113 = por %p111, %p112
    %s115 = sadd.s32 %s114, 1
    %p118 = scmp.eq.s32.totalorder %s17, 1
    %p119 = scmp.ne.s32.totalorder %s114, %s116
    %p120 = scmp.eq.s32.totalorder %s17, 0
    %p121 = por %p119, %p120
    %p122 = scmp.ne.s32.totalorder %s114, %s116
    %p123 = scmp.eq.s32.totalorder %s22, 1
    %p124 = por %p122, %p123
    %p125 = scmp.ne.s32.totalorder %s116, %s117
    %p126 = scmp.eq.s32.totalorder %s22, 0
    %p127 = por %p125, %p126
    %p128 = scmp.ne.s32.totalorder %s116, %s117
    %p129 = scmp.eq.s32.totalorder %s23, 1
    %p130 = por %p128, %p129
    %p132 = scmp.ne.s32.totalorder %s117, %s131
    %p133 = scmp.eq.s32.totalorder %s23, 0
    %p134 = por %p132, %p133
    %s136 = sadd.s32 %s135, 1
    %p139 = scmp.eq.s32.totalorder %s17, 1
    %p140 = scmp.ne.s32.totalorder %s135, %s137
    %p141 = scmp.eq.s32.totalorder %s17, 0
    %p142 = por %p140, %p141
    %p143 = scmp.ne.s32.totalorder %s135, %s137
    %p144 = scmp.eq.s32.totalorder %s22, 1
    %p145 = por %p143, %p144
    %p146 = scmp.ne.s32.totalorder %s137, %s138
    %p147 = scmp.eq.s32.totalorder %s22, 0
    %p148 = por %p146, %p147
    %p149 = scmp.ne.s32.totalorder %s137, %s138
    %p150 = scmp.eq.s32.totalorder %s23, 1
    %p151 = por %p149, %p150
    %p153 = scmp.ne.s32.totalorder %s138, %s152
    %p154 = scmp.eq.s32.totalorder %s23, 0
    %p155 = por %p153, %p154
    %s157 = sadd.s32 %s156, 1
    %p160 = scmp.eq.s32.totalorder %s17, 1
    %p161 = scmp.ne.s32.totalorder %s156, %s158
    %p162 = scmp.eq.s32.totalorder %s17, 0
    %p163 = por %p161, %p162
    %p164 = scmp.ne.s32.totalorder %s156, %s158
    %p165 = scmp.eq.s32.totalorder %s22, 1
    %p166 = por %p164, %p165
    %p167 = scmp.ne.s32.totalorder %s158, %s159
    %p168 = scmp.eq.s32.totalorder %s22, 0
    %p169 = por %p167, %p168
    %p170 = scmp.ne.s32.totalorder %s158, %s159
    %p171 = scmp.eq.s32.totalorder %s23, 1
    %p172 = por %p170, %p171
    %p174 = scmp.ne.s32.totalorder %s159, %s173
    %p175 = scmp.eq.s32.totalorder %s23, 0
    %p176 = por %p174, %p175
    %s178 = sadd.s32 %s177, 1
    %p181 = scmp.eq.s32.totalorder %s17, 1
    %p182 = scmp.ne.s32.totalorder %s177, %s179
    %p183 = scmp.eq.s32.totalorder %s17, 0
    %p184 = por %p182, %p183
    %p185 = scmp.ne.s32.totalorder %s177, %s179
    %p186 = scmp.eq.s32.totalorder %s22, 1
    %p187 = por %p185, %p186
    %p188 = scmp.ne.s32.totalorder %s179, %s180
    %p189 = scmp.eq.s32.totalorder %s22, 0
    %p190 = por %p188, %p189
    %p191 = scmp.ne.s32.totalorder %s179, %s180
    %p192 = scmp.eq.s32.totalorder %s23, 1
    %p193 = por %p191, %p192
    %p195 = scmp.ne.s32.totalorder %s180, %s194
    %p196 = scmp.eq.s32.totalorder %s23, 0
    %p197 = por %p195, %p196
    %s199 = sadd.s32 %s198, 1
    %p202 = scmp.eq.s32.totalorder %s17, 1
    %p203 = scmp.ne.s32.totalorder %s198, %s200
    %p204 = scmp.eq.s32.totalorder %s17, 0
    %p205 = por %p203, %p204
    %p206 = scmp.ne.s32.totalorder %s198, %s200
    %p207 = scmp.eq.s32.totalorder %s22, 1
    %p208 = por %p206, %p207
    %p209 = scmp.ne.s32.totalorder %s200, %s201
    %p210 = scmp.eq.s32.totalorder %s22, 0
    %p211 = por %p209, %p210
    %p212 = scmp.ne.s32.totalorder %s200, %s201
    %p213 = scmp.eq.s32.totalorder %s23, 1
    %p214 = por %p212, %p213
    %p216 = scmp.ne.s32.totalorder %s201, %s215
    %p217 = scmp.eq.s32.totalorder %s23, 0
    %p218 = por %p216, %p217
    %s220 = sadd.s32 %s219, 1
    %p223 = scmp.eq.s32.totalorder %s17, 1
    %p224 = scmp.ne.s32.totalorder %s219, %s221
    %p225 = scmp.eq.s32.totalorder %s17, 0
    %p226 = por %p224, %p225
    %p227 = scmp.ne.s32.totalorder %s219, %s221
    %p228 = scmp.eq.s32.totalorder %s22, 1
    %p229 = por %p227, %p228
    %p230 = scmp.ne.s32.totalorder %s221, %s222
    %p231 = scmp.eq.s32.totalorder %s22, 0
    %p232 = por %p230, %p231
    %p233 = scmp.ne.s32.totalorder %s221, %s222
    %p234 = scmp.eq.s32.totalorder %s23, 1
    %p235 = por %p233, %p234
    %p237 = scmp.ne.s32.totalorder %s222, %s236
    %p238 = scmp.eq.s32.totalorder %s23, 0
    %p239 = por %p237, %p238
    %s241 = sadd.s32 %s240, 1
    %p244 = scmp.eq.s32.totalorder %s17, 1
    %p245 = scmp.ne.s32.totalorder %s240, %s242
    %p246 = scmp.eq.s32.totalorder %s17, 0
    %p247 = por %p245, %p246
    %p248 = scmp.ne.s32.totalorder %s240, %s242
    %p249 = scmp.eq.s32.totalorder %s22, 1
    %p250 = por %p248, %p249
    %p251 = scmp.ne.s32.totalorder %s242, %s243
    %p252 = scmp.eq.s32.totalorder %s22, 0
    %p253 = por %p251, %p252
    %p254 = scmp.ne.s32.totalorder %s242, %s243
    %p255 = scmp.eq.s32.totalorder %s23, 1
    %p256 = por %p254, %p255
    %p258 = scmp.ne.s32.totalorder %s243, %s257
    %p259 = scmp.eq.s32.totalorder %s23, 0
    %p260 = por %p258, %p259
    %s261 = ssub.s32 %s17, %s24
    %p262 = scmp.eq.s32.totalorder %s261, 0
    %s264 = sadd.s32 %s263, 1
    %s265 = scalar_select %p262, %s263, %s264
    %p268 = pneg %p262
    %p269 = scmp.eq.s32.totalorder %s17, 1
    %p270 = por %p268, %p269
    %p271 = scmp.ne.s32.totalorder %s263, %s266
    %p272 = scmp.eq.s32.totalorder %s17, 0
    %p273 = por %p271, %p272
    %p274 = scmp.ne.s32.totalorder %s263, %s266
    %p275 = scmp.eq.s32.totalorder %s22, 1
    %p276 = por %p274, %p275
    %p277 = scmp.ne.s32.totalorder %s266, %s267
    %p278 = scmp.eq.s32.totalorder %s22, 0
    %p279 = por %p277, %p278
    %p280 = scmp.ne.s32.totalorder %s266, %s267
    %p281 = scmp.eq.s32.totalorder %s23, 1
    %p282 = por %p280, %p281
    %p284 = scmp.ne.s32.totalorder %s267, %s283
    %p285 = scmp.eq.s32.totalorder %s23, 0
    %p286 = por %p284, %p285
    %p287 = scmp.le.s32.totalorder 1, %s17
    %p288 = scmp.lt.s32.totalorder %s17, 3
    %p289 = pnand %p287, %p288
    %p290 = pneg %p289
    // Predicated region
    $region9: #{bottleneck_forward.1} parent=5 // pred_check
      _
    $region10: #{bottleneck_forward.1} parent=5 // pred_check_branch
      %292 = sbr.rel (%p289) target = $region12
    $region11: #{bottleneck_forward.1} parent=5 // pred_region
      %s293 = ssub.s32 %s17, 1
      // Predicated region
      $region13: #{bottleneck_forward.1} parent=11 // pred_check
        %p294 = pneg %p64
      $region14: #{bottleneck_forward.1} parent=11 // pred_check_branch
        %296 = sbr.rel (%p294) target = $region16
      $region15: #{bottleneck_forward.1} parent=11 // pred_region
        _
      $region16: #{bottleneck_forward.1} parent=11 // pred_fallthru
        _
      // Predicated region
      $region17: #{bottleneck_forward.1} parent=11 // pred_check
        %p297 = pneg %p85
      $region18: #{bottleneck_forward.1} parent=11 // pred_check_branch
        %299 = sbr.rel (%p297) target = $region20
      $region19: #{bottleneck_forward.1} parent=11 // pred_region
        _
      $region20: #{bottleneck_forward.1} parent=11 // pred_fallthru
        _
      // Predicated region
      $region21: #{bottleneck_forward.1} parent=11 // pred_check
        %p300 = pneg %p106
      $region22: #{bottleneck_forward.1} parent=11 // pred_check_branch
        %302 = sbr.rel (%p300) target = $region24
      $region23: #{bottleneck_forward.1} parent=11 // pred_region
        _
      $region24: #{bottleneck_forward.1} parent=11 // pred_fallthru
        _
      // Predicated region
      $region25: #{bottleneck_forward.1} parent=11 // pred_check
        %p303 = pneg %p127
      $region26: #{bottleneck_forward.1} parent=11 // pred_check_branch
        %305 = sbr.rel (%p303) target = $region28
      $region27: #{bottleneck_forward.1} parent=11 // pred_region
        _
      $region28: #{bottleneck_forward.1} parent=11 // pred_fallthru
        _
      // Predicated region
      $region29: #{bottleneck_forward.1} parent=11 // pred_check
        %p306 = pneg %p148
      $region30: #{bottleneck_forward.1} parent=11 // pred_check_branch
        %308 = sbr.rel (%p306) target = $region32
      $region31: #{bottleneck_forward.1} parent=11 // pred_region
        _
      $region32: #{bottleneck_forward.1} parent=11 // pred_fallthru
        _
      // Predicated region
      $region33: #{bottleneck_forward.1} parent=11 // pred_check
        %p309 = pneg %p169
      $region34: #{bottleneck_forward.1} parent=11 // pred_check_branch
        %311 = sbr.rel (%p309) target = $region36
      $region35: #{bottleneck_forward.1} parent=11 // pred_region
        _
      $region36: #{bottleneck_forward.1} parent=11 // pred_fallthru
        _
      // Predicated region
      $region37: #{bottleneck_forward.1} parent=11 // pred_check
        %p312 = pneg %p190
      $region38: #{bottleneck_forward.1} parent=11 // pred_check_branch
        %314 = sbr.rel (%p312) target = $region40
      $region39: #{bottleneck_forward.1} parent=11 // pred_region
        _
      $region40: #{bottleneck_forward.1} parent=11 // pred_fallthru
        _
      // Predicated region
      $region41: #{bottleneck_forward.1} parent=11 // pred_check
        %p315 = pneg %p211
      $region42: #{bottleneck_forward.1} parent=11 // pred_check_branch
        %317 = sbr.rel (%p315) target = $region44
      $region43: #{bottleneck_forward.1} parent=11 // pred_region
        _
      $region44: #{bottleneck_forward.1} parent=11 // pred_fallthru
        _
      // Predicated region
      $region45: #{bottleneck_forward.1} parent=11 // pred_check
        %p318 = pneg %p232
      $region46: #{bottleneck_forward.1} parent=11 // pred_check_branch
        %320 = sbr.rel (%p318) target = $region48
      $region47: #{bottleneck_forward.1} parent=11 // pred_region
        _
      $region48: #{bottleneck_forward.1} parent=11 // pred_fallthru
        _
      // Predicated region
      $region49: #{bottleneck_forward.1} parent=11 // pred_check
        %p321 = pneg %p253
      $region50: #{bottleneck_forward.1} parent=11 // pred_check_branch
        %323 = sbr.rel (%p321) target = $region52
      $region51: #{bottleneck_forward.1} parent=11 // pred_region
        _
      $region52: #{bottleneck_forward.1} parent=11 // pred_fallthru
        _
    $region12: #{bottleneck_forward.1} parent=5 // pred_fallthru
      _
    %p324 = scmp.lt.s32.totalorder %s17, 2
    // Predicated region
    $region53: #{bottleneck_forward.1} parent=5 // pred_check
      %p325 = pneg %p324
    $region54: #{bottleneck_forward.1} parent=5 // pred_check_branch
      %327 = sbr.rel (%p325) target = $region56
    $region55: #{bottleneck_forward.1} parent=5 // pred_region
      // Predicated region
      $region57: #{bottleneck_forward.1} parent=55 // pred_check
        %p328 = pneg %p37
      $region58: #{bottleneck_forward.1} parent=55 // pred_check_branch
        %330 = sbr.rel (%p328) target = $region60
      $region59: #{bottleneck_forward.1} parent=55 // pred_region
        %p331 = scmp.lt.s32.totalorder %s17, 1
        %s332 = scalar_select %p331, %s17, 1
        %s333 = smul.addr %s332, 4
        %s334 = smul.addr %s333, 8
        %s335 = scalar_lea.vmem %s0, %s334
      $region60: #{bottleneck_forward.1} parent=55 // pred_fallthru
        _
    $region56: #{bottleneck_forward.1} parent=5 // pred_fallthru
      _
    %p336 = scmp.le.s32.totalorder 1, %s17
    %p337 = scmp.lt.s32.totalorder %s17, 3
    %p338 = pnand %p336, %p337
    %p339 = pneg %p338
    // Predicated region
    $region61: #{bottleneck_forward.1} parent=5 // pred_check
      _
    $region62: #{bottleneck_forward.1} parent=5 // pred_check_branch
      %341 = sbr.rel (%p338) target = $region64
    $region63: #{bottleneck_forward.1} parent=5 // pred_region
      %s342 = ssub.s32 %s17, 1
      %p343 = scmp.lt.s32.totalorder %s22, 1
      %s344 = scalar_select %p343, %s22, 1
      %s345 = smul.addr %s344, 4
      %s346 = smul.addr %s345, 8
      %s347 = scalar_lea.vmem %s0, %s346
      %p348 = pneg %p43
      %p349 = pneg %p40
      %p350 = pneg %p64
      %p351 = pneg %p61
      %p352 = pneg %p85
      %p353 = pneg %p82
      %p354 = pneg %p106
      %p355 = pneg %p103
      %p356 = pneg %p127
      %p357 = pneg %p124
      %p358 = pneg %p148
      %p359 = pneg %p145
      %p360 = pneg %p169
      %p361 = pneg %p166
      %p362 = pneg %p190
      %p363 = pneg %p187
      %p364 = pneg %p211
      %p365 = pneg %p208
      %p366 = pneg %p232
      %p367 = pneg %p229
      %p368 = pneg %p253
      %p369 = pneg %p250
      %p370 = pneg %p279
      %p371 = pneg %p276
      %p372 = scmp.lt.s32.totalorder %s22, 1
      %s373 = scalar_select %p372, %s22, 1
      %s374 = smul.addr %s373, 8
      %s375 = smul.addr %s374, 8
      %s376 = scalar_lea.vmem %s11, %s375
      %p377 = scmp.lt.s32.totalorder %s22, 1
      %s378 = scalar_select %p377, %s22, 1
      %s379 = smul.addr %s378, 4
      %s380 = smul.addr %s379, 8
      %s381 = scalar_lea.vmem %s0, %s380
      %p382 = scmp.lt.s32.totalorder %s22, 1
      %s383 = scalar_select %p382, %s22, 1
      %s384 = smul.addr %s383, 8
      %s385 = smul.addr %s384, 8
      %s386 = scalar_lea.vmem %s11, %s385
      %v387 = vld [vmem:[%s381] sm:$0xff]
      %v388 = vld [vmem:[%s381 + $0x8] sm:$0xff]
      %v389 = vld [vmem:[%s381 + $0x10] sm:$0xff]
      %v390 = vld [vmem:[%s381 + $0x18] sm:$0xff]
      %391 = vxpose.xlu0.b32.start [1/16] %v387, 128
      %392 = vxpose.xlu0.b32.cont [2/16] %v389, 128
      %393 = vxpose.xlu0.b32.cont [3/16] 0.0, 128
      %394 = vxpose.xlu0.b32.cont [4/16] 0.0, 128
      %395 = vxpose.xlu0.b32.cont [5/16] 0.0, 128
      %396 = vxpose.xlu0.b32.cont [6/16] 0.0, 128
      %397 = vxpose.xlu0.b32.cont [7/16] 0.0, 128
      %398 = vxpose.xlu0.b32.cont [8/16] 0.0, 128
      %399 = vxpose.xlu0.b32.cont [9/16] 0.0, 128
      %400 = vxpose.xlu0.b32.cont [10/16] 0.0, 128
      %401 = vxpose.xlu0.b32.cont [11/16] 0.0, 128
      %402 = vxpose.xlu0.b32.cont [12/16] 0.0, 128
      %403 = vxpose.xlu0.b32.cont [13/16] 0.0, 128
      %404 = vxpose.xlu0.b32.cont [14/16] 0.0, 128
      %405 = vxpose.xlu0.b32.cont [15/16] 0.0, 128
      %406 = vxpose.xlu0.b32.end [16/16] 0.0, 128
      %v407 = vpop.trf.xlu0
      %v408 = vpop.trf.xlu0
      %v409 = vpop.trf.xlu0
      %v410 = vpop.trf.xlu0
      %v411 = vpop.trf.xlu0
      %v412 = vpop.trf.xlu0
      %v413 = vpop.trf.xlu0
      %v414 = vpop.trf.xlu0
      %v415 = vpop.trf.xlu0
      %v416 = vpop.trf.xlu0
      %v417 = vpop.trf.xlu0
      %v418 = vpop.trf.xlu0
      %v419 = vpop.trf.xlu0
      %v420 = vpop.trf.xlu0
      %v421 = vpop.trf.xlu0
      %v422 = vpop.trf.xlu0
      %423 = vxpose.xlu0.b32.start [1/16] %v388, 128
      %424 = vxpose.xlu0.b32.cont [2/16] %v390, 128
      %425 = vxpose.xlu0.b32.cont [3/16] 0.0, 128
      %426 = vxpose.xlu0.b32.cont [4/16] 0.0, 128
      %427 = vxpose.xlu0.b32.cont [5/16] 0.0, 128
      %428 = vxpose.xlu0.b32.cont [6/16] 0.0, 128
      %429 = vxpose.xlu0.b32.cont [7/16] 0.0, 128
      %430 = vxpose.xlu0.b32.cont [8/16] 0.0, 128
      %431 = vxpose.xlu0.b32.cont [9/16] 0.0, 128
      %432 = vxpose.xlu0.b32.cont [10/16] 0.0, 128
      %433 = vxpose.xlu0.b32.cont [11/16] 0.0, 128
      %434 = vxpose.xlu0.b32.cont [12/16] 0.0, 128
      %435 = vxpose.xlu0.b32.cont [13/16] 0.0, 128
      %436 = vxpose.xlu0.b32.cont [14/16] 0.0, 128
      %437 = vxpose.xlu0.b32.cont [15/16] 0.0, 128
      %438 = vxpose.xlu0.b32.end [16/16] 0.0, 128
      %v439 = vpop.trf.xlu0
      %v440 = vpop.trf.xlu0
      %v441 = vpop.trf.xlu0
      %v442 = vpop.trf.xlu0
      %v443 = vpop.trf.xlu0
      %v444 = vpop.trf.xlu0
      %v445 = vpop.trf.xlu0
      %v446 = vpop.trf.xlu0
      %v447 = vpop.trf.xlu0
      %v448 = vpop.trf.xlu0
      %v449 = vpop.trf.xlu0
      %v450 = vpop.trf.xlu0
      %v451 = vpop.trf.xlu0
      %v452 = vpop.trf.xlu0
      %v453 = vpop.trf.xlu0
      %v454 = vpop.trf.xlu0
      %vm455 = vcmask 130048
      %v456 = vsel %vm455, %v407, 0.0
      %v457 = vsel %vm455, %v408, 0.0
      %v458 = vadd.f32 %v456, %v457
      %v459 = vsel %vm455, %v409, 0.0
      %v460 = vadd.f32 %v458, %v459
      %v461 = vsel %vm455, %v410, 0.0
      %v462 = vadd.f32 %v460, %v461
      %v463 = vsel %vm455, %v411, 0.0
      %v464 = vadd.f32 %v462, %v463
      %v465 = vsel %vm455, %v412, 0.0
      %v466 = vadd.f32 %v464, %v465
      %v467 = vsel %vm455, %v413, 0.0
      %v468 = vadd.f32 %v466, %v467
      %v469 = vsel %vm455, %v414, 0.0
      %v470 = vadd.f32 %v468, %v469
      %v471 = vsel %vm455, %v415, 0.0
      %v472 = vadd.f32 %v470, %v471
      %v473 = vsel %vm455, %v416, 0.0
      %v474 = vadd.f32 %v472, %v473
      %v475 = vsel %vm455, %v417, 0.0
      %v476 = vadd.f32 %v474, %v475
      %v477 = vsel %vm455, %v418, 0.0
      %v478 = vadd.f32 %v476, %v477
      %v479 = vsel %vm455, %v419, 0.0
      %v480 = vadd.f32 %v478, %v479
      %v481 = vsel %vm455, %v420, 0.0
      %v482 = vadd.f32 %v480, %v481
      %v483 = vsel %vm455, %v421, 0.0
      %v484 = vadd.f32 %v482, %v483
      %v485 = vsel %vm455, %v422, 0.0
      %v486 = vadd.f32 %v484, %v485
      %v487 = vsel %vm455, %v439, 0.0
      %v488 = vadd.f32 %v486, %v487
      %v489 = vsel %vm455, %v440, 0.0
      %v490 = vadd.f32 %v488, %v489
      %v491 = vsel %vm455, %v441, 0.0
      %v492 = vadd.f32 %v490, %v491
      %v493 = vsel %vm455, %v442, 0.0
      %v494 = vadd.f32 %v492, %v493
      %v495 = vsel %vm455, %v443, 0.0
      %v496 = vadd.f32 %v494, %v495
      %v497 = vsel %vm455, %v444, 0.0
      %v498 = vadd.f32 %v496, %v497
      %v499 = vsel %vm455, %v445, 0.0
      %v500 = vadd.f32 %v498, %v499
      %v501 = vsel %vm455, %v446, 0.0
      %v502 = vadd.f32 %v500, %v501
      %v503 = vsel %vm455, %v447, 0.0
      %v504 = vadd.f32 %v502, %v503
      %v505 = vsel %vm455, %v448, 0.0
      %v506 = vadd.f32 %v504, %v505
      %v507 = vsel %vm455, %v449, 0.0
      %v508 = vadd.f32 %v506, %v507
      %v509 = vsel %vm455, %v450, 0.0
      %v510 = vadd.f32 %v508, %v509
      %v511 = vsel %vm455, %v451, 0.0
      %v512 = vadd.f32 %v510, %v511
      %v513 = vsel %vm455, %v452, 0.0
      %v514 = vadd.f32 %v512, %v513
      %v515 = vsel %vm455, %v453, 0.0
      %v516 = vadd.f32 %v514, %v515
      %v517 = vsel %vm455, %v454, 0.0
      %v518 = vadd.f32 %v516, %v517
      %519 = vadd.xlane.f32.xlu0 %v518
      %v520 = vpop.xlane.xlu0 %519
      %v521 = vrot.slane %v520, 4
      %v522 = vadd.f32 %v520, %v521
      %v523 = vrot.slane %v522, 2
      %v524 = vadd.f32 %v522, %v523
      %v525 = vrot.slane %v524, 1
      %v526 = vadd.f32 %v524, %v525
      %s527 = vtos %v526
      %v528 = vmul.f32 %v407, %v407
      %v529 = vmul.f32 %v408, %v408
      %v530 = vmul.f32 %v409, %v409
      %v531 = vmul.f32 %v410, %v410
      %v532 = vmul.f32 %v411, %v411
      %v533 = vmul.f32 %v412, %v412
      %v534 = vmul.f32 %v413, %v413
      %v535 = vmul.f32 %v414, %v414
      %v536 = vmul.f32 %v415, %v415
      %v537 = vmul.f32 %v416, %v416
      %v538 = vmul.f32 %v417, %v417
      %v539 = vmul.f32 %v418, %v418
      %v540 = vmul.f32 %v419, %v419
      %v541 = vmul.f32 %v420, %v420
      %v542 = vmul.f32 %v421, %v421
      %v543 = vmul.f32 %v422, %v422
      %v544 = vmul.f32 %v439, %v439
      %v545 = vmul.f32 %v440, %v440
      %v546 = vmul.f32 %v441, %v441
      %v547 = vmul.f32 %v442, %v442
      %v548 = vmul.f32 %v443, %v443
      %v549 = vmul.f32 %v444, %v444
      %v550 = vmul.f32 %v445, %v445
      %v551 = vmul.f32 %v446, %v446
      %v552 = vmul.f32 %v447, %v447
      %v553 = vmul.f32 %v448, %v448
      %v554 = vmul.f32 %v449, %v449
      %v555 = vmul.f32 %v450, %v450
      %v556 = vmul.f32 %v451, %v451
      %v557 = vmul.f32 %v452, %v452
      %v558 = vmul.f32 %v453, %v453
      %v559 = vmul.f32 %v454, %v454
      %v560 = vsel %vm455, %v528, 0.0
      %v561 = vsel %vm455, %v529, 0.0
      %v562 = vadd.f32 %v560, %v561
      %v563 = vsel %vm455, %v530, 0.0
      %v564 = vadd.f32 %v562, %v563
      %v565 = vsel %vm455, %v531, 0.0
      %v566 = vadd.f32 %v564, %v565
      %v567 = vsel %vm455, %v532, 0.0
      %v568 = vadd.f32 %v566, %v567
      %v569 = vsel %vm455, %v533, 0.0
      %v570 = vadd.f32 %v568, %v569
      %v571 = vsel %vm455, %v534, 0.0
      %v572 = vadd.f32 %v570, %v571
      %v573 = vsel %vm455, %v535, 0.0
      %v574 = vadd.f32 %v572, %v573
      %v575 = vsel %vm455, %v536, 0.0
      %v576 = vadd.f32 %v574, %v575
      %v577 = vsel %vm455, %v537, 0.0
      %v578 = vadd.f32 %v576, %v577
      %v579 = vsel %vm455, %v538, 0.0
      %v580 = vadd.f32 %v578, %v579
      %v581 = vsel %vm455, %v539, 0.0
      %v582 = vadd.f32 %v580, %v581
      %v583 = vsel %vm455, %v540, 0.0
      %v584 = vadd.f32 %v582, %v583
      %v585 = vsel %vm455, %v541, 0.0
      %v586 = vadd.f32 %v584, %v585
      %v587 = vsel %vm455, %v542, 0.0
      %v588 = vadd.f32 %v586, %v587
      %v589 = vsel %vm455, %v543, 0.0
      %v590 = vadd.f32 %v588, %v589
      %v591 = vsel %vm455, %v544, 0.0
      %v592 = vadd.f32 %v590, %v591
      %v593 = vsel %vm455, %v545, 0.0
      %v594 = vadd.f32 %v592, %v593
      %v595 = vsel %vm455, %v546, 0.0
      %v596 = vadd.f32 %v594, %v595
      %v597 = vsel %vm455, %v547, 0.0
      %v598 = vadd.f32 %v596, %v597
      %v599 = vsel %vm455, %v548, 0.0
      %v600 = vadd.f32 %v598, %v599
      %v601 = vsel %vm455, %v549, 0.0
      %v602 = vadd.f32 %v600, %v601
      %v603 = vsel %vm455, %v550, 0.0
      %v604 = vadd.f32 %v602, %v603
      %v605 = vsel %vm455, %v551, 0.0
      %v606 = vadd.f32 %v604, %v605
      %v607 = vsel %vm455, %v552, 0.0
      %v608 = vadd.f32 %v606, %v607
      %v609 = vsel %vm455, %v553, 0.0
      %v610 = vadd.f32 %v608, %v609
      %v611 = vsel %vm455, %v554, 0.0
      %v612 = vadd.f32 %v610, %v611
      %v613 = vsel %vm455, %v555, 0.0
      %v614 = vadd.f32 %v612, %v613
      %v615 = vsel %vm455, %v556, 0.0
      %v616 = vadd.f32 %v614, %v615
      %v617 = vsel %vm455, %v557, 0.0
      %v618 = vadd.f32 %v616, %v617
      %v619 = vsel %vm455, %v558, 0.0
      %v620 = vadd.f32 %v618, %v619
      %v621 = vsel %vm455, %v559, 0.0
      %v622 = vadd.f32 %v620, %v621
      %623 = vadd.xlane.f32.xlu0 %v622
      %v624 = vpop.xlane.xlu0 %623
      %v625 = vrot.slane %v624, 4
      %v626 = vadd.f32 %v624, %v625
      %v627 = vrot.slane %v626, 2
      %v628 = vadd.f32 %v626, %v627
      %v629 = vrot.slane %v628, 1
      %v630 = vadd.f32 %v628, %v629
      %s631 = vtos %v630
      %s632 = smul.f32 %s527, 0.00024414063
      %s633 = smul.f32 %s631, 0.00024414063
      %s634 = smul.f32 %s632, %s632
      %s635 = ssub.f32 %s633, %s634
      %s636 = smax.f32 %s635, 0.0
      %s637 = sadd.f32 %s636, 2.5e-06
      %v638 = vstv %s637
      %v639 = vrsqrt.pop %v638
      %v640 = vmul.f32 %v639, %v638
      %v641 = vmul.f32 %v640, %v639
      %v642 = vmul.f32 0.5, %v641
      %v643 = vsub.f32 1.5, %v642
      %v644 = vmul.f32 %v639, %v643
      %vm645 = vweird.f32 %v638
      %vm646 = vweird.f32 %v639
      %vm647 = vmor %vm645, %vm646
      %v648 = vsel %vm647, %v639, %v644
      %s649 = vtos %v648
      %v650 = vld [vmem:[%s1] sm:$0x1]
      %v651 = vld [vmem:[%s2] sm:$0x1]
      %v652 = vstv %s632
      %v653 = vsub.f32 %v407, %v652
      %v654 = vsub.f32 %v408, %v652
      %v655 = vsub.f32 %v409, %v652
      %v656 = vsub.f32 %v410, %v652
      %v657 = vsub.f32 %v411, %v652
      %v658 = vsub.f32 %v412, %v652
      %v659 = vsub.f32 %v413, %v652
      %v660 = vsub.f32 %v414, %v652
      %v661 = vsub.f32 %v415, %v652
      %v662 = vsub.f32 %v416, %v652
      %v663 = vsub.f32 %v417, %v652
      %v664 = vsub.f32 %v418, %v652
      %v665 = vsub.f32 %v419, %v652
      %v666 = vsub.f32 %v420, %v652
      %v667 = vsub.f32 %v421, %v652
      %v668 = vsub.f32 %v422, %v652
      %v669 = vsub.f32 %v439, %v652
      %v670 = vsub.f32 %v440, %v652
      %v671 = vsub.f32 %v441, %v652
      %v672 = vsub.f32 %v442, %v652
      %v673 = vsub.f32 %v443, %v652
      %v674 = vsub.f32 %v444, %v652
      %v675 = vsub.f32 %v445, %v652
      %v676 = vsub.f32 %v446, %v652
      %v677 = vsub.f32 %v447, %v652
      %v678 = vsub.f32 %v448, %v652
      %v679 = vsub.f32 %v449, %v652
      %v680 = vsub.f32 %v450, %v652
      %v681 = vsub.f32 %v451, %v652
      %v682 = vsub.f32 %v452, %v652
      %v683 = vsub.f32 %v453, %v652
      %v684 = vsub.f32 %v454, %v652
      %v685 = vstv %s649
      %v686 = vmul.f32 %v653, %v685
      %v687 = vmul.f32 %v654, %v685
      %v688 = vmul.f32 %v655, %v685
      %v689 = vmul.f32 %v656, %v685
      %v690 = vmul.f32 %v657, %v685
      %v691 = vmul.f32 %v658, %v685
      %v692 = vmul.f32 %v659, %v685
      %v693 = vmul.f32 %v660, %v685
      %v694 = vmul.f32 %v661, %v685
      %v695 = vmul.f32 %v662, %v685
      %v696 = vmul.f32 %v663, %v685
      %v697 = vmul.f32 %v664, %v685
      %v698 = vmul.f32 %v665, %v685
      %v699 = vmul.f32 %v666, %v685
      %v700 = vmul.f32 %v667, %v685
      %v701 = vmul.f32 %v668, %v685
      %v702 = vmul.f32 %v669, %v685
      %v703 = vmul.f32 %v670, %v685
      %v704 = vmul.f32 %v671, %v685
      %v705 = vmul.f32 %v672, %v685
      %v706 = vmul.f32 %v673, %v685
      %v707 = vmul.f32 %v674, %v685
      %v708 = vmul.f32 %v675, %v685
      %v709 = vmul.f32 %v676, %v685
      %v710 = vmul.f32 %v677, %v685
      %v711 = vmul.f32 %v678, %v685
      %v712 = vmul.f32 %v679, %v685
      %v713 = vmul.f32 %v680, %v685
      %v714 = vmul.f32 %v681, %v685
      %v715 = vmul.f32 %v682, %v685
      %v716 = vmul.f32 %v683, %v685
      %v717 = vmul.f32 %v684, %v685
      %v719 = vperm.slane %v650, 0
      %v721 = vmul.f32 %v686, %v719
      %v722 = vmul.f32 %v687, %v719
      %v723 = vmul.f32 %v688, %v719
      %v724 = vmul.f32 %v689, %v719
      %v725 = vmul.f32 %v690, %v719
      %v726 = vmul.f32 %v691, %v719
      %v727 = vmul.f32 %v692, %v719
      %v728 = vmul.f32 %v693, %v719
      %v729 = vmul.f32 %v694, %v719
      %v730 = vmul.f32 %v695, %v719
      %v731 = vmul.f32 %v696, %v719
      %v732 = vmul.f32 %v697, %v719
      %v733 = vmul.f32 %v698, %v719
      %v734 = vmul.f32 %v699, %v719
      %v735 = vmul.f32 %v700, %v719
      %v736 = vmul.f32 %v701, %v719
      %v737 = vmul.f32 %v702, %v719
      %v738 = vmul.f32 %v703, %v719
      %v739 = vmul.f32 %v704, %v719
      %v740 = vmul.f32 %v705, %v719
      %v741 = vmul.f32 %v706, %v719
      %v742 = vmul.f32 %v707, %v719
      %v743 = vmul.f32 %v708, %v719
      %v744 = vmul.f32 %v709, %v719
      %v745 = vmul.f32 %v710, %v719
      %v746 = vmul.f32 %v711, %v719
      %v747 = vmul.f32 %v712, %v719
      %v748 = vmul.f32 %v713, %v719
      %v749 = vmul.f32 %v714, %v719
      %v750 = vmul.f32 %v715, %v719
      %v751 = vmul.f32 %v716, %v719
      %v752 = vmul.f32 %v717, %v719
      %v754 = vperm.slane %v651, 0
      %v756 = vadd.f32 %v721, %v754
      %v757 = vadd.f32 %v722, %v754
      %v758 = vadd.f32 %v723, %v754
      %v759 = vadd.f32 %v724, %v754
      %v760 = vadd.f32 %v725, %v754
      %v761 = vadd.f32 %v726, %v754
      %v762 = vadd.f32 %v727, %v754
      %v763 = vadd.f32 %v728, %v754
      %v764 = vadd.f32 %v729, %v754
      %v765 = vadd.f32 %v730, %v754
      %v766 = vadd.f32 %v731, %v754
      %v767 = vadd.f32 %v732, %v754
      %v768 = vadd.f32 %v733, %v754
      %v769 = vadd.f32 %v734, %v754
      %v770 = vadd.f32 %v735, %v754
      %v771 = vadd.f32 %v736, %v754
      %v772 = vadd.f32 %v737, %v754
      %v773 = vadd.f32 %v738, %v754
      %v774 = vadd.f32 %v739, %v754
      %v775 = vadd.f32 %v740, %v754
      %v776 = vadd.f32 %v741, %v754
      %v777 = vadd.f32 %v742, %v754
      %v778 = vadd.f32 %v743, %v754
      %v779 = vadd.f32 %v744, %v754
      %v780 = vadd.f32 %v745, %v754
      %v781 = vadd.f32 %v746, %v754
      %v782 = vadd.f32 %v747, %v754
      %v783 = vadd.f32 %v748, %v754
      %v784 = vadd.f32 %v749, %v754
      %v785 = vadd.f32 %v750, %v754
      %v786 = vadd.f32 %v751, %v754
      %v787 = vadd.f32 %v752, %v754
      %v788 = vmax.f32 %v756, 0.0
      %v789 = vmax.f32 %v757, 0.0
      %v790 = vmax.f32 %v758, 0.0
      %v791 = vmax.f32 %v759, 0.0
      %v792 = vmax.f32 %v760, 0.0
      %v793 = vmax.f32 %v761, 0.0
      %v794 = vmax.f32 %v762, 0.0
      %v795 = vmax.f32 %v763, 0.0
      %v796 = vmax.f32 %v764, 0.0
      %v797 = vmax.f32 %v765, 0.0
      %v798 = vmax.f32 %v766, 0.0
      %v799 = vmax.f32 %v767, 0.0
      %v800 = vmax.f32 %v768, 0.0
      %v801 = vmax.f32 %v769, 0.0
      %v802 = vmax.f32 %v770, 0.0
      %v803 = vmax.f32 %v771, 0.0
      %v804 = vmax.f32 %v772, 0.0
      %v805 = vmax.f32 %v773, 0.0
      %v806 = vmax.f32 %v774, 0.0
      %v807 = vmax.f32 %v775, 0.0
      %v808 = vmax.f32 %v776, 0.0
      %v809 = vmax.f32 %v777, 0.0
      %v810 = vmax.f32 %v778, 0.0
      %v811 = vmax.f32 %v779, 0.0
      %v812 = vmax.f32 %v780, 0.0
      %v813 = vmax.f32 %v781, 0.0
      %v814 = vmax.f32 %v782, 0.0
      %v815 = vmax.f32 %v783, 0.0
      %v816 = vmax.f32 %v784, 0.0
      %v817 = vmax.f32 %v785, 0.0
      %v818 = vmax.f32 %v786, 0.0
      %v819 = vmax.f32 %v787, 0.0
      %v820 = vld [vmem:[%s7] sm:$0xff]
      %v821 = vld [vmem:[%s7 + $0x8] sm:$0xff]
      %v823 = vsel %vm455, %v788, 0
      %v826 = vsel %vm455, %v789, 0
      %v829 = vsel %vm455, %v790, 0
      %v832 = vsel %vm455, %v791, 0
      %v835 = vsel %vm455, %v792, 0
      %v838 = vsel %vm455, %v793, 0
      %v841 = vsel %vm455, %v794, 0
      %v844 = vsel %vm455, %v795, 0
      %v847 = vsel %vm455, %v796, 0
      %v850 = vsel %vm455, %v797, 0
      %v853 = vsel %vm455, %v798, 0
      %v856 = vsel %vm455, %v799, 0
      %v859 = vsel %vm455, %v800, 0
      %v862 = vsel %vm455, %v801, 0
      %v865 = vsel %vm455, %v802, 0
      %v868 = vsel %vm455, %v803, 0
      %v871 = vsel %vm455, %v804, 0
      %v874 = vsel %vm455, %v805, 0
      %v877 = vsel %vm455, %v806, 0
      %v880 = vsel %vm455, %v807, 0
      %v883 = vsel %vm455, %v808, 0
      %v886 = vsel %vm455, %v809, 0
      %v889 = vsel %vm455, %v810, 0
      %v892 = vsel %vm455, %v811, 0
      %v895 = vsel %vm455, %v812, 0
      %v898 = vsel %vm455, %v813, 0
      %v901 = vsel %vm455, %v814, 0
      %v904 = vsel %vm455, %v815, 0
      %v907 = vsel %vm455, %v816, 0
      %v910 = vsel %vm455, %v817, 0
      %v913 = vsel %vm455, %v818, 0
      %v916 = vsel %vm455, %v819, 0
      %918 = vmatpush.msra.mxu0 0.0
      %919 = vmatpush.msra.mxu0 0.0
      %920 = vmatpush.msra.mxu0 0.0
      %921 = vmatpush.msra.mxu0 0.0
      %922 = vmatpush.msra.mxu0 0.0
      %923 = vmatpush.msra.mxu0 0.0
      %924 = vmatpush.msra.mxu0 0.0
      %925 = vmatpush.msra.mxu0 0.0
      %926 = vmatpush.msra.mxu0 0.0
      %927 = vmatpush.msra.mxu0 0.0
      %928 = vmatpush.msra.mxu0 0.0
      %929 = vmatpush.msra.mxu0 0.0
      %930 = vmatpush.msra.mxu0 0.0
      %931 = vmatpush.msra.mxu0 0.0
      %932 = vmatpush.msra.mxu0 %v821
      %933 = vmatpush.msra.mxu0 %v820
      %934 = vmatmul.f32.gmra.mxu0 %v823
      %v935 = vpop.f32.mrf.mxu0
      %v936 = vadd.f32 0.0, %v935
      %937 = vmatmul.f32.gmra.mxu0 %v826
      %v938 = vpop.f32.mrf.mxu0
      %v939 = vadd.f32 0.0, %v938
      %940 = vmatmul.f32.gmra.mxu0 %v829
      %v941 = vpop.f32.mrf.mxu0
      %v942 = vadd.f32 0.0, %v941
      %943 = vmatmul.f32.gmra.mxu0 %v832
      %v944 = vpop.f32.mrf.mxu0
      %v945 = vadd.f32 0.0, %v944
      %946 = vmatmul.f32.gmra.mxu0 %v835
      %v947 = vpop.f32.mrf.mxu0
      %v948 = vadd.f32 0.0, %v947
      %949 = vmatmul.f32.gmra.mxu0 %v838
      %v950 = vpop.f32.mrf.mxu0
      %v951 = vadd.f32 0.0, %v950
      %952 = vmatmul.f32.gmra.mxu0 %v841
      %v953 = vpop.f32.mrf.mxu0
      %v954 = vadd.f32 0.0, %v953
      %955 = vmatmul.f32.gmra.mxu0 %v844
      %v956 = vpop.f32.mrf.mxu0
      %v957 = vadd.f32 0.0, %v956
      %958 = vmatmul.f32.gmra.mxu0 %v847
      %v959 = vpop.f32.mrf.mxu0
      %v960 = vadd.f32 0.0, %v959
      %961 = vmatmul.f32.gmra.mxu0 %v850
      %v962 = vpop.f32.mrf.mxu0
      %v963 = vadd.f32 0.0, %v962
      %964 = vmatmul.f32.gmra.mxu0 %v853
      %v965 = vpop.f32.mrf.mxu0
      %v966 = vadd.f32 0.0, %v965
      %967 = vmatmul.f32.gmra.mxu0 %v856
      %v968 = vpop.f32.mrf.mxu0
      %v969 = vadd.f32 0.0, %v968
      %970 = vmatmul.f32.gmra.mxu0 %v859
      %v971 = vpop.f32.mrf.mxu0
      %v972 = vadd.f32 0.0, %v971
      %973 = vmatmul.f32.gmra.mxu0 %v862
      %v974 = vpop.f32.mrf.mxu0
      %v975 = vadd.f32 0.0, %v974
      %976 = vmatmul.f32.gmra.mxu0 %v865
      %v977 = vpop.f32.mrf.mxu0
      %v978 = vadd.f32 0.0, %v977
      %979 = vmatmul.f32.gmra.mxu0 %v868
      %v980 = vpop.f32.mrf.mxu0
      %v981 = vadd.f32 0.0, %v980
      %982 = vmatmul.f32.gmra.mxu0 %v871
      %v983 = vpop.f32.mrf.mxu0
      %v984 = vadd.f32 0.0, %v983
      %985 = vmatmul.f32.gmra.mxu0 %v874
      %v986 = vpop.f32.mrf.mxu0
      %v987 = vadd.f32 0.0, %v986
      %988 = vmatmul.f32.gmra.mxu0 %v877
      %v989 = vpop.f32.mrf.mxu0
      %v990 = vadd.f32 0.0, %v989
      %991 = vmatmul.f32.gmra.mxu0 %v880
      %v992 = vpop.f32.mrf.mxu0
      %v993 = vadd.f32 0.0, %v992
      %994 = vmatmul.f32.gmra.mxu0 %v883
      %v995 = vpop.f32.mrf.mxu0
      %v996 = vadd.f32 0.0, %v995
      %997 = vmatmul.f32.gmra.mxu0 %v886
      %v998 = vpop.f32.mrf.mxu0
      %v999 = vadd.f32 0.0, %v998
      %1000 = vmatmul.f32.gmra.mxu0 %v889
      %v1001 = vpop.f32.mrf.mxu0
      %v1002 = vadd.f32 0.0, %v1001
      %1003 = vmatmul.f32.gmra.mxu0 %v892
      %v1004 = vpop.f32.mrf.mxu0
      %v1005 = vadd.f32 0.0, %v1004
      %1006 = vmatmul.f32.gmra.mxu0 %v895
      %v1007 = vpop.f32.mrf.mxu0
      %v1008 = vadd.f32 0.0, %v1007
      %1009 = vmatmul.f32.gmra.mxu0 %v898
      %v1010 = vpop.f32.mrf.mxu0
      %v1011 = vadd.f32 0.0, %v1010
      %1012 = vmatmul.f32.gmra.mxu0 %v901
      %v1013 = vpop.f32.mrf.mxu0
      %v1014 = vadd.f32 0.0, %v1013
      %1015 = vmatmul.f32.gmra.mxu0 %v904
      %v1016 = vpop.f32.mrf.mxu0
      %v1017 = vadd.f32 0.0, %v1016
      %1018 = vmatmul.f32.gmra.mxu0 %v907
      %v1019 = vpop.f32.mrf.mxu0
      %v1020 = vadd.f32 0.0, %v1019
      %1021 = vmatmul.f32.gmra.mxu0 %v910
      %v1022 = vpop.f32.mrf.mxu0
      %v1023 = vadd.f32 0.0, %v1022
      %1024 = vmatmul.f32.gmra.mxu0 %v913
      %v1025 = vpop.f32.mrf.mxu0
      %v1026 = vadd.f32 0.0, %v1025
      %1027 = vmatmul.f32.gmra.mxu0 %v916
      %v1028 = vpop.f32.mrf.mxu0
      %v1029 = vadd.f32 0.0, %v1028
      %1030 = vdwg.mxu0
      %vm1031 = vcmask 64512
      %v1032 = vsel %vm1031, %v936, 0.0
      %v1033 = vsel %vm1031, %v939, 0.0
      %v1034 = vadd.f32 %v1032, %v1033
      %v1035 = vsel %vm1031, %v942, 0.0
      %v1036 = vadd.f32 %v1034, %v1035
      %v1037 = vsel %vm1031, %v945, 0.0
      %v1038 = vadd.f32 %v1036, %v1037
      %v1039 = vsel %vm1031, %v948, 0.0
      %v1040 = vadd.f32 %v1038, %v1039
      %v1041 = vsel %vm1031, %v951, 0.0
      %v1042 = vadd.f32 %v1040, %v1041
      %v1043 = vsel %vm1031, %v954, 0.0
      %v1044 = vadd.f32 %v1042, %v1043
      %v1045 = vsel %vm1031, %v957, 0.0
      %v1046 = vadd.f32 %v1044, %v1045
      %v1047 = vsel %vm1031, %v960, 0.0
      %v1048 = vadd.f32 %v1046, %v1047
      %v1049 = vsel %vm1031, %v963, 0.0
      %v1050 = vadd.f32 %v1048, %v1049
      %v1051 = vsel %vm1031, %v966, 0.0
      %v1052 = vadd.f32 %v1050, %v1051
      %v1053 = vsel %vm1031, %v969, 0.0
      %v1054 = vadd.f32 %v1052, %v1053
      %v1055 = vsel %vm1031, %v972, 0.0
      %v1056 = vadd.f32 %v1054, %v1055
      %v1057 = vsel %vm1031, %v975, 0.0
      %v1058 = vadd.f32 %v1056, %v1057
      %v1059 = vsel %vm1031, %v978, 0.0
      %v1060 = vadd.f32 %v1058, %v1059
      %v1061 = vsel %vm1031, %v981, 0.0
      %v1062 = vadd.f32 %v1060, %v1061
      %v1063 = vsel %vm1031, %v984, 0.0
      %v1064 = vadd.f32 %v1062, %v1063
      %v1065 = vsel %vm1031, %v987, 0.0
      %v1066 = vadd.f32 %v1064, %v1065
      %v1067 = vsel %vm1031, %v990, 0.0
      %v1068 = vadd.f32 %v1066, %v1067
      %v1069 = vsel %vm1031, %v993, 0.0
      %v1070 = vadd.f32 %v1068, %v1069
      %v1071 = vsel %vm1031, %v996, 0.0
      %v1072 = vadd.f32 %v1070, %v1071
      %v1073 = vsel %vm1031, %v999, 0.0
      %v1074 = vadd.f32 %v1072, %v1073
      %v1075 = vsel %vm1031, %v1002, 0.0
      %v1076 = vadd.f32 %v1074, %v1075
      %v1077 = vsel %vm1031, %v1005, 0.0
      %v1078 = vadd.f32 %v1076, %v1077
      %v1079 = vsel %vm1031, %v1008, 0.0
      %v1080 = vadd.f32 %v1078, %v1079
      %v1081 = vsel %vm1031, %v1011, 0.0
      %v1082 = vadd.f32 %v1080, %v1081
      %v1083 = vsel %vm1031, %v1014, 0.0
      %v1084 = vadd.f32 %v1082, %v1083
      %v1085 = vsel %vm1031, %v1017, 0.0
      %v1086 = vadd.f32 %v1084, %v1085
      %v1087 = vsel %vm1031, %v1020, 0.0
      %v1088 = vadd.f32 %v1086, %v1087
      %v1089 = vsel %vm1031, %v1023, 0.0
      %v1090 = vadd.f32 %v1088, %v1089
      %v1091 = vsel %vm1031, %v1026, 0.0
      %v1092 = vadd.f32 %v1090, %v1091
      %v1093 = vsel %vm1031, %v1029, 0.0
      %v1094 = vadd.f32 %v1092, %v1093
      %1095 = vadd.xlane.f32.xlu0 %v1094
      %v1096 = vpop.xlane.xlu0 %1095
      %v1097 = vrot.slane %v1096, 4
      %v1098 = vadd.f32 %v1096, %v1097
      %v1099 = vrot.slane %v1098, 2
      %v1100 = vadd.f32 %v1098, %v1099
      %v1101 = vrot.slane %v1100, 1
      %v1102 = vadd.f32 %v1100, %v1101
      %s1103 = vtos %v1102
      %v1104 = vmul.f32 %v936, %v936
      %v1105 = vmul.f32 %v939, %v939
      %v1106 = vmul.f32 %v942, %v942
      %v1107 = vmul.f32 %v945, %v945
      %v1108 = vmul.f32 %v948, %v948
      %v1109 = vmul.f32 %v951, %v951
      %v1110 = vmul.f32 %v954, %v954
      %v1111 = vmul.f32 %v957, %v957
      %v1112 = vmul.f32 %v960, %v960
      %v1113 = vmul.f32 %v963, %v963
      %v1114 = vmul.f32 %v966, %v966
      %v1115 = vmul.f32 %v969, %v969
      %v1116 = vmul.f32 %v972, %v972
      %v1117 = vmul.f32 %v975, %v975
      %v1118 = vmul.f32 %v978, %v978
      %v1119 = vmul.f32 %v981, %v981
      %v1120 = vmul.f32 %v984, %v984
      %v1121 = vmul.f32 %v987, %v987
      %v1122 = vmul.f32 %v990, %v990
      %v1123 = vmul.f32 %v993, %v993
      %v1124 = vmul.f32 %v996, %v996
      %v1125 = vmul.f32 %v999, %v999
      %v1126 = vmul.f32 %v1002, %v1002
      %v1127 = vmul.f32 %v1005, %v1005
      %v1128 = vmul.f32 %v1008, %v1008
      %v1129 = vmul.f32 %v1011, %v1011
      %v1130 = vmul.f32 %v1014, %v1014
      %v1131 = vmul.f32 %v1017, %v1017
      %v1132 = vmul.f32 %v1020, %v1020
      %v1133 = vmul.f32 %v1023, %v1023
      %v1134 = vmul.f32 %v1026, %v1026
      %v1135 = vmul.f32 %v1029, %v1029
      %v1136 = vsel %vm1031, %v1104, 0.0
      %v1137 = vsel %vm1031, %v1105, 0.0
      %v1138 = vadd.f32 %v1136, %v1137
      %v1139 = vsel %vm1031, %v1106, 0.0
      %v1140 = vadd.f32 %v1138, %v1139
      %v1141 = vsel %vm1031, %v1107, 0.0
      %v1142 = vadd.f32 %v1140, %v1141
      %v1143 = vsel %vm1031, %v1108, 0.0
      %v1144 = vadd.f32 %v1142, %v1143
      %v1145 = vsel %vm1031, %v1109, 0.0
      %v1146 = vadd.f32 %v1144, %v1145
      %v1147 = vsel %vm1031, %v1110, 0.0
      %v1148 = vadd.f32 %v1146, %v1147
      %v1149 = vsel %vm1031, %v1111, 0.0
      %v1150 = vadd.f32 %v1148, %v1149
      %v1151 = vsel %vm1031, %v1112, 0.0
      %v1152 = vadd.f32 %v1150, %v1151
      %v1153 = vsel %vm1031, %v1113, 0.0
      %v1154 = vadd.f32 %v1152, %v1153
      %v1155 = vsel %vm1031, %v1114, 0.0
      %v1156 = vadd.f32 %v1154, %v1155
      %v1157 = vsel %vm1031, %v1115, 0.0
      %v1158 = vadd.f32 %v1156, %v1157
      %v1159 = vsel %vm1031, %v1116, 0.0
      %v1160 = vadd.f32 %v1158, %v1159
      %v1161 = vsel %vm1031, %v1117, 0.0
      %v1162 = vadd.f32 %v1160, %v1161
      %v1163 = vsel %vm1031, %v1118, 0.0
      %v1164 = vadd.f32 %v1162, %v1163
      %v1165 = vsel %vm1031, %v1119, 0.0
      %v1166 = vadd.f32 %v1164, %v1165
      %v1167 = vsel %vm1031, %v1120, 0.0
      %v1168 = vadd.f32 %v1166, %v1167
      %v1169 = vsel %vm1031, %v1121, 0.0
      %v1170 = vadd.f32 %v1168, %v1169
      %v1171 = vsel %vm1031, %v1122, 0.0
      %v1172 = vadd.f32 %v1170, %v1171
      %v1173 = vsel %vm1031, %v1123, 0.0
      %v1174 = vadd.f32 %v1172, %v1173
      %v1175 = vsel %vm1031, %v1124, 0.0
      %v1176 = vadd.f32 %v1174, %v1175
      %v1177 = vsel %vm1031, %v1125, 0.0
      %v1178 = vadd.f32 %v1176, %v1177
      %v1179 = vsel %vm1031, %v1126, 0.0
      %v1180 = vadd.f32 %v1178, %v1179
      %v1181 = vsel %vm1031, %v1127, 0.0
      %v1182 = vadd.f32 %v1180, %v1181
      %v1183 = vsel %vm1031, %v1128, 0.0
      %v1184 = vadd.f32 %v1182, %v1183
      %v1185 = vsel %vm1031, %v1129, 0.0
      %v1186 = vadd.f32 %v1184, %v1185
      %v1187 = vsel %vm1031, %v1130, 0.0
      %v1188 = vadd.f32 %v1186, %v1187
      %v1189 = vsel %vm1031, %v1131, 0.0
      %v1190 = vadd.f32 %v1188, %v1189
      %v1191 = vsel %vm1031, %v1132, 0.0
      %v1192 = vadd.f32 %v1190, %v1191
      %v1193 = vsel %vm1031, %v1133, 0.0
      %v1194 = vadd.f32 %v1192, %v1193
      %v1195 = vsel %vm1031, %v1134, 0.0
      %v1196 = vadd.f32 %v1194, %v1195
      %v1197 = vsel %vm1031, %v1135, 0.0
      %v1198 = vadd.f32 %v1196, %v1197
      %1199 = vadd.xlane.f32.xlu0 %v1198
      %v1200 = vpop.xlane.xlu0 %1199
      %v1201 = vrot.slane %v1200, 4
      %v1202 = vadd.f32 %v1200, %v1201
      %v1203 = vrot.slane %v1202, 2
      %v1204 = vadd.f32 %v1202, %v1203
      %v1205 = vrot.slane %v1204, 1
      %v1206 = vadd.f32 %v1204, %v1205
      %s1207 = vtos %v1206
      %s1208 = smul.f32 %s1103, 0.00048828125
      %s1209 = smul.f32 %s1207, 0.00048828125
      %s1210 = smul.f32 %s1208, %s1208
      %s1211 = ssub.f32 %s1209, %s1210
      %s1212 = smax.f32 %s1211, 0.0
      %s1213 = sadd.f32 %s1212, 2.5e-06
      %v1214 = vstv %s1213
      %v1215 = vrsqrt.pop %v1214
      %v1216 = vmul.f32 %v1215, %v1214
      %v1217 = vmul.f32 %v1216, %v1215
      %v1218 = vmul.f32 0.5, %v1217
      %v1219 = vsub.f32 1.5, %v1218
      %v1220 = vmul.f32 %v1215, %v1219
      %vm1221 = vweird.f32 %v1214
      %vm1222 = vweird.f32 %v1215
      %vm1223 = vmor %vm1221, %vm1222
      %v1224 = vsel %vm1223, %v1215, %v1220
      %s1225 = vtos %v1224
      %v1226 = vld [vmem:[%s3] sm:$0x1]
      %v1227 = vld [vmem:[%s4] sm:$0x1]
      %v1228 = vstv %s1208
      %v1229 = vsub.f32 %v936, %v1228
      %v1230 = vsub.f32 %v939, %v1228
      %v1231 = vsub.f32 %v942, %v1228
      %v1232 = vsub.f32 %v945, %v1228
      %v1233 = vsub.f32 %v948, %v1228
      %v1234 = vsub.f32 %v951, %v1228
      %v1235 = vsub.f32 %v954, %v1228
      %v1236 = vsub.f32 %v957, %v1228
      %v1237 = vsub.f32 %v960, %v1228
      %v1238 = vsub.f32 %v963, %v1228
      %v1239 = vsub.f32 %v966, %v1228
      %v1240 = vsub.f32 %v969, %v1228
      %v1241 = vsub.f32 %v972, %v1228
      %v1242 = vsub.f32 %v975, %v1228
      %v1243 = vsub.f32 %v978, %v1228
      %v1244 = vsub.f32 %v981, %v1228
      %v1245 = vsub.f32 %v984, %v1228
      %v1246 = vsub.f32 %v987, %v1228
      %v1247 = vsub.f32 %v990, %v1228
      %v1248 = vsub.f32 %v993, %v1228
      %v1249 = vsub.f32 %v996, %v1228
      %v1250 = vsub.f32 %v999, %v1228
      %v1251 = vsub.f32 %v1002, %v1228
      %v1252 = vsub.f32 %v1005, %v1228
      %v1253 = vsub.f32 %v1008, %v1228
      %v1254 = vsub.f32 %v1011, %v1228
      %v1255 = vsub.f32 %v1014, %v1228
      %v1256 = vsub.f32 %v1017, %v1228
      %v1257 = vsub.f32 %v1020, %v1228
      %v1258 = vsub.f32 %v1023, %v1228
      %v1259 = vsub.f32 %v1026, %v1228
      %v1260 = vsub.f32 %v1029, %v1228
      %v1261 = vstv %s1225
      %v1262 = vmul.f32 %v1229, %v1261
      %v1263 = vmul.f32 %v1230, %v1261
      %v1264 = vmul.f32 %v1231, %v1261
      %v1265 = vmul.f32 %v1232, %v1261
      %v1266 = vmul.f32 %v1233, %v1261
      %v1267 = vmul.f32 %v1234, %v1261
      %v1268 = vmul.f32 %v1235, %v1261
      %v1269 = vmul.f32 %v1236, %v1261
      %v1270 = vmul.f32 %v1237, %v1261
      %v1271 = vmul.f32 %v1238, %v1261
      %v1272 = vmul.f32 %v1239, %v1261
      %v1273 = vmul.f32 %v1240, %v1261
      %v1274 = vmul.f32 %v1241, %v1261
      %v1275 = vmul.f32 %v1242, %v1261
      %v1276 = vmul.f32 %v1243, %v1261
      %v1277 = vmul.f32 %v1244, %v1261
      %v1278 = vmul.f32 %v1245, %v1261
      %v1279 = vmul.f32 %v1246, %v1261
      %v1280 = vmul.f32 %v1247, %v1261
      %v1281 = vmul.f32 %v1248, %v1261
      %v1282 = vmul.f32 %v1249, %v1261
      %v1283 = vmul.f32 %v1250, %v1261
      %v1284 = vmul.f32 %v1251, %v1261
      %v1285 = vmul.f32 %v1252, %v1261
      %v1286 = vmul.f32 %v1253, %v1261
      %v1287 = vmul.f32 %v1254, %v1261
      %v1288 = vmul.f32 %v1255, %v1261
      %v1289 = vmul.f32 %v1256, %v1261
      %v1290 = vmul.f32 %v1257, %v1261
      %v1291 = vmul.f32 %v1258, %v1261
      %v1292 = vmul.f32 %v1259, %v1261
      %v1293 = vmul.f32 %v1260, %v1261
      %v1295 = vperm.slane %v1226, 0
      %v1297 = vmul.f32 %v1262, %v1295
      %v1298 = vmul.f32 %v1263, %v1295
      %v1299 = vmul.f32 %v1264, %v1295
      %v1300 = vmul.f32 %v1265, %v1295
      %v1301 = vmul.f32 %v1266, %v1295
      %v1302 = vmul.f32 %v1267, %v1295
      %v1303 = vmul.f32 %v1268, %v1295
      %v1304 = vmul.f32 %v1269, %v1295
      %v1305 = vmul.f32 %v1270, %v1295
      %v1306 = vmul.f32 %v1271, %v1295
      %v1307 = vmul.f32 %v1272, %v1295
      %v1308 = vmul.f32 %v1273, %v1295
      %v1309 = vmul.f32 %v1274, %v1295
      %v1310 = vmul.f32 %v1275, %v1295
      %v1311 = vmul.f32 %v1276, %v1295
      %v1312 = vmul.f32 %v1277, %v1295
      %v1313 = vmul.f32 %v1278, %v1295
      %v1314 = vmul.f32 %v1279, %v1295
      %v1315 = vmul.f32 %v1280, %v1295
      %v1316 = vmul.f32 %v1281, %v1295
      %v1317 = vmul.f32 %v1282, %v1295
      %v1318 = vmul.f32 %v1283, %v1295
      %v1319 = vmul.f32 %v1284, %v1295
      %v1320 = vmul.f32 %v1285, %v1295
      %v1321 = vmul.f32 %v1286, %v1295
      %v1322 = vmul.f32 %v1287, %v1295
      %v1323 = vmul.f32 %v1288, %v1295
      %v1324 = vmul.f32 %v1289, %v1295
      %v1325 = vmul.f32 %v1290, %v1295
      %v1326 = vmul.f32 %v1291, %v1295
      %v1327 = vmul.f32 %v1292, %v1295
      %v1328 = vmul.f32 %v1293, %v1295
      %v1330 = vperm.slane %v1227, 0
      %v1332 = vadd.f32 %v1297, %v1330
      %v1333 = vadd.f32 %v1298, %v1330
      %v1334 = vadd.f32 %v1299, %v1330
      %v1335 = vadd.f32 %v1300, %v1330
      %v1336 = vadd.f32 %v1301, %v1330
      %v1337 = vadd.f32 %v1302, %v1330
      %v1338 = vadd.f32 %v1303, %v1330
      %v1339 = vadd.f32 %v1304, %v1330
      %v1340 = vadd.f32 %v1305, %v1330
      %v1341 = vadd.f32 %v1306, %v1330
      %v1342 = vadd.f32 %v1307, %v1330
      %v1343 = vadd.f32 %v1308, %v1330
      %v1344 = vadd.f32 %v1309, %v1330
      %v1345 = vadd.f32 %v1310, %v1330
      %v1346 = vadd.f32 %v1311, %v1330
      %v1347 = vadd.f32 %v1312, %v1330
      %v1348 = vadd.f32 %v1313, %v1330
      %v1349 = vadd.f32 %v1314, %v1330
      %v1350 = vadd.f32 %v1315, %v1330
      %v1351 = vadd.f32 %v1316, %v1330
      %v1352 = vadd.f32 %v1317, %v1330
      %v1353 = vadd.f32 %v1318, %v1330
      %v1354 = vadd.f32 %v1319, %v1330
      %v1355 = vadd.f32 %v1320, %v1330
      %v1356 = vadd.f32 %v1321, %v1330
      %v1357 = vadd.f32 %v1322, %v1330
      %v1358 = vadd.f32 %v1323, %v1330
      %v1359 = vadd.f32 %v1324, %v1330
      %v1360 = vadd.f32 %v1325, %v1330
      %v1361 = vadd.f32 %v1326, %v1330
      %v1362 = vadd.f32 %v1327, %v1330
      %v1363 = vadd.f32 %v1328, %v1330
      %v1364 = vmax.f32 %v1332, 0.0
      %v1365 = vmax.f32 %v1333, 0.0
      %v1366 = vmax.f32 %v1334, 0.0
      %v1367 = vmax.f32 %v1335, 0.0
      %v1368 = vmax.f32 %v1336, 0.0
      %v1369 = vmax.f32 %v1337, 0.0
      %v1370 = vmax.f32 %v1338, 0.0
      %v1371 = vmax.f32 %v1339, 0.0
      %v1372 = vmax.f32 %v1340, 0.0
      %v1373 = vmax.f32 %v1341, 0.0
      %v1374 = vmax.f32 %v1342, 0.0
      %v1375 = vmax.f32 %v1343, 0.0
      %v1376 = vmax.f32 %v1344, 0.0
      %v1377 = vmax.f32 %v1345, 0.0
      %v1378 = vmax.f32 %v1346, 0.0
      %v1379 = vmax.f32 %v1347, 0.0
      %v1380 = vmax.f32 %v1348, 0.0
      %v1381 = vmax.f32 %v1349, 0.0
      %v1382 = vmax.f32 %v1350, 0.0
      %v1383 = vmax.f32 %v1351, 0.0
      %v1384 = vmax.f32 %v1352, 0.0
      %v1385 = vmax.f32 %v1353, 0.0
      %v1386 = vmax.f32 %v1354, 0.0
      %v1387 = vmax.f32 %v1355, 0.0
      %v1388 = vmax.f32 %v1356, 0.0
      %v1389 = vmax.f32 %v1357, 0.0
      %v1390 = vmax.f32 %v1358, 0.0
      %v1391 = vmax.f32 %v1359, 0.0
      %v1392 = vmax.f32 %v1360, 0.0
      %v1393 = vmax.f32 %v1361, 0.0
      %v1394 = vmax.f32 %v1362, 0.0
      %v1395 = vmax.f32 %v1363, 0.0
      %1396 = vst.msk [vmem:[#allocation2] sm:$0xff] %vm1031, 0.0
      %1397 = vst.msk [vmem:[#allocation2 + $0x8] sm:$0xff] %vm1031, 0.0
      %vm1398 = vcmask 58368
      %1399 = vst.msk [vmem:[#allocation2 + $0x10] sm:$0x3] %vm1398, 0.0
      %s1400 = scalar_lea.vmem [#allocation2], 408
      %1401 = vst.msk [vmem:[%s1400] sm:$0xff] %vm1031, 0.0
      %1402 = vst.msk [vmem:[%s1400 + $0x8] sm:$0xff] %vm1031, 0.0
      %1403 = vst.msk [vmem:[%s1400 + $0x10] sm:$0x3] %vm1398, 0.0
      %vm1404 = vcmask 57344
      %1405 = vst.msk [vmem:[#allocation2] sm:$0x1] %vm1404, 0.0
      %1406 = vst.msk [vmem:[#allocation2 + $0x18] sm:$0x1] %vm1404, 0.0
      %1407 = vst.msk [vmem:[#allocation2 + $0x30] sm:$0x1] %vm1404, 0.0
      %1408 = vst.msk [vmem:[#allocation2 + $0x48] sm:$0x1] %vm1404, 0.0
      %1409 = vst.msk [vmem:[#allocation2 + $0x60] sm:$0x1] %vm1404, 0.0
      %1410 = vst.msk [vmem:[#allocation2 + $0x78] sm:$0x1] %vm1404, 0.0
      %1411 = vst.msk [vmem:[#allocation2 + $0x90] sm:$0x1] %vm1404, 0.0
      %1412 = vst.msk [vmem:[#allocation2 + $0xa8] sm:$0x1] %vm1404, 0.0
      %1413 = vst.msk [vmem:[#allocation2 + $0xc0] sm:$0x1] %vm1404, 0.0
      %1414 = vst.msk [vmem:[#allocation2 + $0xd8] sm:$0x1] %vm1404, 0.0
      %1415 = vst.msk [vmem:[#allocation2 + $0xf0] sm:$0x1] %vm1404, 0.0
      %1416 = vst.msk [vmem:[#allocation2 + $0x108] sm:$0x1] %vm1404, 0.0
      %1417 = vst.msk [vmem:[#allocation2 + $0x120] sm:$0x1] %vm1404, 0.0
      %1418 = vst.msk [vmem:[#allocation2 + $0x138] sm:$0x1] %vm1404, 0.0
      %1419 = vst.msk [vmem:[#allocation2 + $0x150] sm:$0x1] %vm1404, 0.0
      %1420 = vst.msk [vmem:[#allocation2 + $0x168] sm:$0x1] %vm1404, 0.0
      %1421 = vst.msk [vmem:[#allocation2 + $0x180] sm:$0x1] %vm1404, 0.0
      %1422 = vst.msk [vmem:[#allocation2 + $0x198] sm:$0x1] %vm1404, 0.0
      %1423 = vst.msk [vmem:[#allocation2 + $0x11] sm:$0x1] %vm1404, 0.0
      %1424 = vst.msk [vmem:[#allocation2 + $0x29] sm:$0x1] %vm1404, 0.0
      %1425 = vst.msk [vmem:[#allocation2 + $0x41] sm:$0x1] %vm1404, 0.0
      %1426 = vst.msk [vmem:[#allocation2 + $0x59] sm:$0x1] %vm1404, 0.0
      %1427 = vst.msk [vmem:[#allocation2 + $0x71] sm:$0x1] %vm1404, 0.0
      %1428 = vst.msk [vmem:[#allocation2 + $0x89] sm:$0x1] %vm1404, 0.0
      %1429 = vst.msk [vmem:[#allocation2 + $0xa1] sm:$0x1] %vm1404, 0.0
      %1430 = vst.msk [vmem:[#allocation2 + $0xb9] sm:$0x1] %vm1404, 0.0
      %1431 = vst.msk [vmem:[#allocation2 + $0xd1] sm:$0x1] %vm1404, 0.0
      %1432 = vst.msk [vmem:[#allocation2 + $0xe9] sm:$0x1] %vm1404, 0.0
      %1433 = vst.msk [vmem:[#allocation2 + $0x101] sm:$0x1] %vm1404, 0.0
      %1434 = vst.msk [vmem:[#allocation2 + $0x119] sm:$0x1] %vm1404, 0.0
      %1435 = vst.msk [vmem:[#allocation2 + $0x131] sm:$0x1] %vm1404, 0.0
      %1436 = vst.msk [vmem:[#allocation2 + $0x149] sm:$0x1] %vm1404, 0.0
      %1437 = vst.msk [vmem:[#allocation2 + $0x161] sm:$0x1] %vm1404, 0.0
      %1438 = vst.msk [vmem:[#allocation2 + $0x179] sm:$0x1] %vm1404, 0.0
      %1439 = vst.msk [vmem:[#allocation2 + $0x191] sm:$0x1] %vm1404, 0.0
      %1440 = vst.msk [vmem:[#allocation2 + $0x1a9] sm:$0x1] %vm1404, 0.0
      %s1441 = scalar_lea.vmem [#allocation2], 24
      %1442 = vst.msk [vmem:[%s1441 + $0x1] sm:$0xff] %vm1031, %v1364
      %1443 = vst.msk [vmem:[%s1441 + $0x9] sm:$0xff] %vm1031, %v1365
      %1444 = vst.msk [vmem:[%s1441 + $0x19] sm:$0xff] %vm1031, %v1366
      %1445 = vst.msk [vmem:[%s1441 + $0x21] sm:$0xff] %vm1031, %v1367
      %1446 = vst.msk [vmem:[%s1441 + $0x31] sm:$0xff] %vm1031, %v1368
      %1447 = vst.msk [vmem:[%s1441 + $0x39] sm:$0xff] %vm1031, %v1369
      %1448 = vst.msk [vmem:[%s1441 + $0x49] sm:$0xff] %vm1031, %v1370
      %1449 = vst.msk [vmem:[%s1441 + $0x51] sm:$0xff] %vm1031, %v1371
      %1450 = vst.msk [vmem:[%s1441 + $0x61] sm:$0xff] %vm1031, %v1372
      %1451 = vst.msk [vmem:[%s1441 + $0x69] sm:$0xff] %vm1031, %v1373
      %1452 = vst.msk [vmem:[%s1441 + $0x79] sm:$0xff] %vm1031, %v1374
      %1453 = vst.msk [vmem:[%s1441 + $0x81] sm:$0xff] %vm1031, %v1375
      %1454 = vst.msk [vmem:[%s1441 + $0x91] sm:$0xff] %vm1031, %v1376
      %1455 = vst.msk [vmem:[%s1441 + $0x99] sm:$0xff] %vm1031, %v1377
      %1456 = vst.msk [vmem:[%s1441 + $0xa9] sm:$0xff] %vm1031, %v1378
      %1457 = vst.msk [vmem:[%s1441 + $0xb1] sm:$0xff] %vm1031, %v1379
      %1458 = vst.msk [vmem:[%s1441 + $0xc1] sm:$0xff] %vm1031, %v1380
      %1459 = vst.msk [vmem:[%s1441 + $0xc9] sm:$0xff] %vm1031, %v1381
      %1460 = vst.msk [vmem:[%s1441 + $0xd9] sm:$0xff] %vm1031, %v1382
      %1461 = vst.msk [vmem:[%s1441 + $0xe1] sm:$0xff] %vm1031, %v1383
      %1462 = vst.msk [vmem:[%s1441 + $0xf1] sm:$0xff] %vm1031, %v1384
      %1463 = vst.msk [vmem:[%s1441 + $0xf9] sm:$0xff] %vm1031, %v1385
      %1464 = vst.msk [vmem:[%s1441 + $0x109] sm:$0xff] %vm1031, %v1386
      %1465 = vst.msk [vmem:[%s1441 + $0x111] sm:$0xff] %vm1031, %v1387
      %1466 = vst.msk [vmem:[%s1441 + $0x121] sm:$0xff] %vm1031, %v1388
      %1467 = vst.msk [vmem:[%s1441 + $0x129] sm:$0xff] %vm1031, %v1389
      %1468 = vst.msk [vmem:[%s1441 + $0x139] sm:$0xff] %vm1031, %v1390
      %1469 = vst.msk [vmem:[%s1441 + $0x141] sm:$0xff] %vm1031, %v1391
      %1470 = vst.msk [vmem:[%s1441 + $0x151] sm:$0xff] %vm1031, %v1392
      %1471 = vst.msk [vmem:[%s1441 + $0x159] sm:$0xff] %vm1031, %v1393
      %1472 = vst.msk [vmem:[%s1441 + $0x169] sm:$0xff] %vm1031, %v1394
      %1473 = vst.msk [vmem:[%s1441 + $0x171] sm:$0xff] %vm1031, %v1395
      %v1474 = vld [vmem:[#allocation2] sm:$0xff]
      %v1475 = vld [vmem:[#allocation2 + $0x8] sm:$0xff]
      %v1476 = vld [vmem:[#allocation2 + $0x10] sm:$0x3]
      %v1477 = vld [vmem:[#allocation2 + $0x18] sm:$0xff]
      %v1478 = vld [vmem:[#allocation2 + $0x20] sm:$0xff]
      %v1479 = vld [vmem:[#allocation2 + $0x28] sm:$0x3]
      %v1480 = vld [vmem:[#allocation2 + $0x30] sm:$0xff]
      %v1481 = vld [vmem:[#allocation2 + $0x38] sm:$0xff]
      %v1482 = vld [vmem:[#allocation2 + $0x40] sm:$0x3]
      %v1483 = vld [vmem:[#allocation2 + $0x48] sm:$0xff]
      %v1484 = vld [vmem:[#allocation2 + $0x50] sm:$0xff]
      %v1485 = vld [vmem:[#allocation2 + $0x58] sm:$0x3]
      %v1486 = vld [vmem:[#allocation2 + $0x60] sm:$0xff]
      %v1487 = vld [vmem:[#allocation2 + $0x68] sm:$0xff]
      %v1488 = vld [vmem:[#allocation2 + $0x70] sm:$0x3]
      %v1489 = vld [vmem:[#allocation2 + $0x78] sm:$0xff]
      %v1490 = vld [vmem:[#allocation2 + $0x80] sm:$0xff]
      %v1491 = vld [vmem:[#allocation2 + $0x88] sm:$0x3]
      %v1492 = vld [vmem:[#allocation2 + $0x90] sm:$0xff]
      %v1493 = vld [vmem:[#allocation2 + $0x98] sm:$0xff]
      %v1494 = vld [vmem:[#allocation2 + $0xa0] sm:$0x3]
      %v1495 = vld [vmem:[#allocation2 + $0xa8] sm:$0xff]
      %v1496 = vld [vmem:[#allocation2 + $0xb0] sm:$0xff]
      %v1497 = vld [vmem:[#allocation2 + $0xb8] sm:$0x3]
      %v1498 = vld [vmem:[#allocation2 + $0xc0] sm:$0xff]
      %v1499 = vld [vmem:[#allocation2 + $0xc8] sm:$0xff]
      %v1500 = vld [vmem:[#allocation2 + $0xd0] sm:$0x3]
      %v1501 = vld [vmem:[#allocation2 + $0xd8] sm:$0xff]
      %v1502 = vld [vmem:[#allocation2 + $0xe0] sm:$0xff]
      %v1503 = vld [vmem:[#allocation2 + $0xe8] sm:$0x3]
      %v1504 = vld [vmem:[#allocation2 + $0xf0] sm:$0xff]
      %v1505 = vld [vmem:[#allocation2 + $0xf8] sm:$0xff]
      %v1506 = vld [vmem:[#allocation2 + $0x100] sm:$0x3]
      %v1507 = vld [vmem:[#allocation2 + $0x108] sm:$0xff]
      %v1508 = vld [vmem:[#allocation2 + $0x110] sm:$0xff]
      %v1509 = vld [vmem:[#allocation2 + $0x118] sm:$0x3]
      %v1510 = vld [vmem:[#allocation2 + $0x120] sm:$0xff]
      %v1511 = vld [vmem:[#allocation2 + $0x128] sm:$0xff]
      %v1512 = vld [vmem:[#allocation2 + $0x130] sm:$0x3]
      %v1513 = vld [vmem:[#allocation2 + $0x138] sm:$0xff]
      %v1514 = vld [vmem:[#allocation2 + $0x140] sm:$0xff]
      %v1515 = vld [vmem:[#allocation2 + $0x148] sm:$0x3]
      %v1516 = vld [vmem:[#allocation2 + $0x150] sm:$0xff]
      %v1517 = vld [vmem:[#allocation2 + $0x158] sm:$0xff]
      %v1518 = vld [vmem:[#allocation2 + $0x160] sm:$0x3]
      %v1519 = vld [vmem:[#allocation2 + $0x168] sm:$0xff]
      %v1520 = vld [vmem:[#allocation2 + $0x170] sm:$0xff]
      %v1521 = vld [vmem:[#allocation2 + $0x178] sm:$0x3]
      %v1522 = vld [vmem:[#allocation2 + $0x180] sm:$0xff]
      %v1523 = vld [vmem:[#allocation2 + $0x188] sm:$0xff]
      %v1524 = vld [vmem:[#allocation2 + $0x190] sm:$0x3]
      %v1525 = vld [vmem:[#allocation2 + $0x198] sm:$0xff]
      %v1526 = vld [vmem:[#allocation2 + $0x1a0] sm:$0xff]
      %v1527 = vld [vmem:[#allocation2 + $0x1a8] sm:$0x3]
      %1528 = vst.msk [vmem:[#allocation3] sm:$0xff] %vm1031, %v1474
      %1529 = vst.msk [vmem:[#allocation3 + $0x8] sm:$0xff] %vm1031, %v1475
      %1530 = vst.msk [vmem:[#allocation3 + $0x10] sm:$0xff] %vm1031, %v1477
      %1531 = vst.msk [vmem:[#allocation3 + $0x18] sm:$0xff] %vm1031, %v1478
      %1532 = vst.msk [vmem:[#allocation3 + $0x20] sm:$0xff] %vm1031, %v1480
      %1533 = vst.msk [vmem:[#allocation3 + $0x28] sm:$0xff] %vm1031, %v1481
      %1534 = vst.msk [vmem:[#allocation3 + $0x30] sm:$0xff] %vm1031, %v1483
      %1535 = vst.msk [vmem:[#allocation3 + $0x38] sm:$0xff] %vm1031, %v1484
      %1536 = vst.msk [vmem:[#allocation3 + $0x40] sm:$0xff] %vm1031, %v1486
      %1537 = vst.msk [vmem:[#allocation3 + $0x48] sm:$0xff] %vm1031, %v1487
      %1538 = vst.msk [vmem:[#allocation3 + $0x50] sm:$0xff] %vm1031, %v1489
      %1539 = vst.msk [vmem:[#allocation3 + $0x58] sm:$0xff] %vm1031, %v1490
      %1540 = vst.msk [vmem:[#allocation3 + $0x60] sm:$0xff] %vm1031, %v1492
      %1541 = vst.msk [vmem:[#allocation3 + $0x68] sm:$0xff] %vm1031, %v1493
      %1542 = vst.msk [vmem:[#allocation3 + $0x70] sm:$0xff] %vm1031, %v1495
      %1543 = vst.msk [vmem:[#allocation3 + $0x78] sm:$0xff] %vm1031, %v1496
      %1544 = vst.msk [vmem:[#allocation3 + $0x80] sm:$0xff] %vm1031, %v1498
      %1545 = vst.msk [vmem:[#allocation3 + $0x88] sm:$0xff] %vm1031, %v1499
      %1546 = vst.msk [vmem:[#allocation3 + $0x90] sm:$0xff] %vm1031, %v1501
      %1547 = vst.msk [vmem:[#allocation3 + $0x98] sm:$0xff] %vm1031, %v1502
      %1548 = vst.msk [vmem:[#allocation3 + $0xa0] sm:$0xff] %vm1031, %v1504
      %1549 = vst.msk [vmem:[#allocation3 + $0xa8] sm:$0xff] %vm1031, %v1505
      %1550 = vst.msk [vmem:[#allocation3 + $0xb0] sm:$0xff] %vm1031, %v1507
      %1551 = vst.msk [vmem:[#allocation3 + $0xb8] sm:$0xff] %vm1031, %v1508
      %1552 = vst.msk [vmem:[#allocation3 + $0xc0] sm:$0xff] %vm1031, %v1510
      %1553 = vst.msk [vmem:[#allocation3 + $0xc8] sm:$0xff] %vm1031, %v1511
      %1554 = vst.msk [vmem:[#allocation3 + $0xd0] sm:$0xff] %vm1031, %v1513
      %1555 = vst.msk [vmem:[#allocation3 + $0xd8] sm:$0xff] %vm1031, %v1514
      %1556 = vst.msk [vmem:[#allocation3 + $0xe0] sm:$0xff] %vm1031, %v1516
      %1557 = vst.msk [vmem:[#allocation3 + $0xe8] sm:$0xff] %vm1031, %v1517
      %1558 = vst.msk [vmem:[#allocation3 + $0xf0] sm:$0xff] %vm1031, %v1519
      %1559 = vst.msk [vmem:[#allocation3 + $0xf8] sm:$0xff] %vm1031, %v1520
      %vm1608 = vcmask 1046528
      %v1609 = vrot.slane %v1474, 1
      %v1610 = vrot.slane %v1475, 1
      %v1611 = vsel %vm1608, %v1609, %v1610
      %v1612 = vrot.slane %v1476, 1
      %v1613 = vsel %vm1608, %v1610, %v1612
      %v1614 = vrot.slane %v1477, 1
      %v1615 = vrot.slane %v1478, 1
      %v1616 = vsel %vm1608, %v1614, %v1615
      %v1617 = vrot.slane %v1479, 1
      %v1618 = vsel %vm1608, %v1615, %v1617
      %v1619 = vrot.slane %v1480, 1
      %v1620 = vrot.slane %v1481, 1
      %v1621 = vsel %vm1608, %v1619, %v1620
      %v1622 = vrot.slane %v1482, 1
      %v1623 = vsel %vm1608, %v1620, %v1622
      %v1624 = vrot.slane %v1483, 1
      %v1625 = vrot.slane %v1484, 1
      %v1626 = vsel %vm1608, %v1624, %v1625
      %v1627 = vrot.slane %v1485, 1
      %v1628 = vsel %vm1608, %v1625, %v1627
      %v1629 = vrot.slane %v1486, 1
      %v1630 = vrot.slane %v1487, 1
      %v1631 = vsel %vm1608, %v1629, %v1630
      %v1632 = vrot.slane %v1488, 1
      %v1633 = vsel %vm1608, %v1630, %v1632
      %v1634 = vrot.slane %v1489, 1
      %v1635 = vrot.slane %v1490, 1
      %v1636 = vsel %vm1608, %v1634, %v1635
      %v1637 = vrot.slane %v1491, 1
      %v1638 = vsel %vm1608, %v1635, %v1637
      %v1639 = vrot.slane %v1492, 1
      %v1640 = vrot.slane %v1493, 1
      %v1641 = vsel %vm1608, %v1639, %v1640
      %v1642 = vrot.slane %v1494, 1
      %v1643 = vsel %vm1608, %v1640, %v1642
      %v1644 = vrot.slane %v1495, 1
      %v1645 = vrot.slane %v1496, 1
      %v1646 = vsel %vm1608, %v1644, %v1645
      %v1647 = vrot.slane %v1497, 1
      %v1648 = vsel %vm1608, %v1645, %v1647
      %v1649 = vrot.slane %v1498, 1
      %v1650 = vrot.slane %v1499, 1
      %v1651 = vsel %vm1608, %v1649, %v1650
      %v1652 = vrot.slane %v1500, 1
      %v1653 = vsel %vm1608, %v1650, %v1652
      %v1654 = vrot.slane %v1501, 1
      %v1655 = vrot.slane %v1502, 1
      %v1656 = vsel %vm1608, %v1654, %v1655
      %v1657 = vrot.slane %v1503, 1
      %v1658 = vsel %vm1608, %v1655, %v1657
      %v1659 = vrot.slane %v1504, 1
      %v1660 = vrot.slane %v1505, 1
      %v1661 = vsel %vm1608, %v1659, %v1660
      %v1662 = vrot.slane %v1506, 1
      %v1663 = vsel %vm1608, %v1660, %v1662
      %v1664 = vrot.slane %v1507, 1
      %v1665 = vrot.slane %v1508, 1
      %v1666 = vsel %vm1608, %v1664, %v1665
      %v1667 = vrot.slane %v1509, 1
      %v1668 = vsel %vm1608, %v1665, %v1667
      %v1669 = vrot.slane %v1510, 1
      %v1670 = vrot.slane %v1511, 1
      %v1671 = vsel %vm1608, %v1669, %v1670
      %v1672 = vrot.slane %v1512, 1
      %v1673 = vsel %vm1608, %v1670, %v1672
      %v1674 = vrot.slane %v1513, 1
      %v1675 = vrot.slane %v1514, 1
      %v1676 = vsel %vm1608, %v1674, %v1675
      %v1677 = vrot.slane %v1515, 1
      %v1678 = vsel %vm1608, %v1675, %v1677
      %v1679 = vrot.slane %v1516, 1
      %v1680 = vrot.slane %v1517, 1
      %v1681 = vsel %vm1608, %v1679, %v1680
      %v1682 = vrot.slane %v1518, 1
      %v1683 = vsel %vm1608, %v1680, %v1682
      %v1684 = vrot.slane %v1519, 1
      %v1685 = vrot.slane %v1520, 1
      %v1686 = vsel %vm1608, %v1684, %v1685
      %v1687 = vrot.slane %v1521, 1
      %v1688 = vsel %vm1608, %v1685, %v1687
      %1689 = vrot.lane.b32.xlu0 %v1611, 8
      %v1690 = vpop.permute.xlu0 %1689
      %1691 = vrot.lane.b32.xlu0 %v1613, 8
      %v1692 = vpop.permute.xlu0 %1691
      %1693 = vrot.lane.b32.xlu0 %v1616, 8
      %v1694 = vpop.permute.xlu0 %1693
      %1695 = vrot.lane.b32.xlu0 %v1618, 8
      %v1696 = vpop.permute.xlu0 %1695
      %1697 = vrot.lane.b32.xlu0 %v1621, 8
      %v1698 = vpop.permute.xlu0 %1697
      %1699 = vrot.lane.b32.xlu0 %v1623, 8
      %v1700 = vpop.permute.xlu0 %1699
      %1701 = vrot.lane.b32.xlu0 %v1626, 8
      %v1702 = vpop.permute.xlu0 %1701
      %1703 = vrot.lane.b32.xlu0 %v1628, 8
      %v1704 = vpop.permute.xlu0 %1703
      %1705 = vrot.lane.b32.xlu0 %v1631, 8
      %v1706 = vpop.permute.xlu0 %1705
      %1707 = vrot.lane.b32.xlu0 %v1633, 8
      %v1708 = vpop.permute.xlu0 %1707
      %1709 = vrot.lane.b32.xlu0 %v1636, 8
      %v1710 = vpop.permute.xlu0 %1709
      %1711 = vrot.lane.b32.xlu0 %v1638, 8
      %v1712 = vpop.permute.xlu0 %1711
      %1713 = vrot.lane.b32.xlu0 %v1641, 8
      %v1714 = vpop.permute.xlu0 %1713
      %1715 = vrot.lane.b32.xlu0 %v1643, 8
      %v1716 = vpop.permute.xlu0 %1715
      %1717 = vrot.lane.b32.xlu0 %v1646, 8
      %v1718 = vpop.permute.xlu0 %1717
      %1719 = vrot.lane.b32.xlu0 %v1648, 8
      %v1720 = vpop.permute.xlu0 %1719
      %1721 = vrot.lane.b32.xlu0 %v1651, 8
      %v1722 = vpop.permute.xlu0 %1721
      %1723 = vrot.lane.b32.xlu0 %v1653, 8
      %v1724 = vpop.permute.xlu0 %1723
      %1725 = vrot.lane.b32.xlu0 %v1656, 8
      %v1726 = vpop.permute.xlu0 %1725
      %1727 = vrot.lane.b32.xlu0 %v1658, 8
      %v1728 = vpop.permute.xlu0 %1727
      %1729 = vrot.lane.b32.xlu0 %v1661, 8
      %v1730 = vpop.permute.xlu0 %1729
      %1731 = vrot.lane.b32.xlu0 %v1663, 8
      %v1732 = vpop.permute.xlu0 %1731
      %1733 = vrot.lane.b32.xlu0 %v1666, 8
      %v1734 = vpop.permute.xlu0 %1733
      %1735 = vrot.lane.b32.xlu0 %v1668, 8
      %v1736 = vpop.permute.xlu0 %1735
      %1737 = vrot.lane.b32.xlu0 %v1671, 8
      %v1738 = vpop.permute.xlu0 %1737
      %1739 = vrot.lane.b32.xlu0 %v1673, 8
      %v1740 = vpop.permute.xlu0 %1739
      %1741 = vrot.lane.b32.xlu0 %v1676, 8
      %v1742 = vpop.permute.xlu0 %1741
      %1743 = vrot.lane.b32.xlu0 %v1678, 8
      %v1744 = vpop.permute.xlu0 %1743
      %1745 = vrot.lane.b32.xlu0 %v1681, 8
      %v1746 = vpop.permute.xlu0 %1745
      %1747 = vrot.lane.b32.xlu0 %v1683, 8
      %v1748 = vpop.permute.xlu0 %1747
      %1749 = vrot.lane.b32.xlu0 %v1686, 8
      %v1750 = vpop.permute.xlu0 %1749
      %1751 = vrot.lane.b32.xlu0 %v1688, 8
      %v1752 = vpop.permute.xlu0 %1751
      %vm1785 = vcmask 130112
      %1786 = vst.msk [vmem:[#allocation3] sm:$0xff] %vm1785, %v1690
      %1787 = vst.msk [vmem:[#allocation3 + $0x8] sm:$0xff] %vm1785, %v1692
      %1788 = vst.msk [vmem:[#allocation3 + $0x10] sm:$0xff] %vm1785, %v1694
      %1789 = vst.msk [vmem:[#allocation3 + $0x18] sm:$0xff] %vm1785, %v1696
      %1790 = vst.msk [vmem:[#allocation3 + $0x20] sm:$0xff] %vm1785, %v1698
      %1791 = vst.msk [vmem:[#allocation3 + $0x28] sm:$0xff] %vm1785, %v1700
      %1792 = vst.msk [vmem:[#allocation3 + $0x30] sm:$0xff] %vm1785, %v1702
      %1793 = vst.msk [vmem:[#allocation3 + $0x38] sm:$0xff] %vm1785, %v1704
      %1794 = vst.msk [vmem:[#allocation3 + $0x40] sm:$0xff] %vm1785, %v1706
      %1795 = vst.msk [vmem:[#allocation3 + $0x48] sm:$0xff] %vm1785, %v1708
      %1796 = vst.msk [vmem:[#allocation3 + $0x50] sm:$0xff] %vm1785, %v1710
      %1797 = vst.msk [vmem:[#allocation3 + $0x58] sm:$0xff] %vm1785, %v1712
      %1798 = vst.msk [vmem:[#allocation3 + $0x60] sm:$0xff] %vm1785, %v1714
      %1799 = vst.msk [vmem:[#allocation3 + $0x68] sm:$0xff] %vm1785, %v1716
      %1800 = vst.msk [vmem:[#allocation3 + $0x70] sm:$0xff] %vm1785, %v1718
      %1801 = vst.msk [vmem:[#allocation3 + $0x78] sm:$0xff] %vm1785, %v1720
      %1802 = vst.msk [vmem:[#allocation3 + $0x80] sm:$0xff] %vm1785, %v1722
      %1803 = vst.msk [vmem:[#allocation3 + $0x88] sm:$0xff] %vm1785, %v1724
      %1804 = vst.msk [vmem:[#allocation3 + $0x90] sm:$0xff] %vm1785, %v1726
      %1805 = vst.msk [vmem:[#allocation3 + $0x98] sm:$0xff] %vm1785, %v1728
      %1806 = vst.msk [vmem:[#allocation3 + $0xa0] sm:$0xff] %vm1785, %v1730
      %1807 = vst.msk [vmem:[#allocation3 + $0xa8] sm:$0xff] %vm1785, %v1732
      %1808 = vst.msk [vmem:[#allocation3 + $0xb0] sm:$0xff] %vm1785, %v1734
      %1809 = vst.msk [vmem:[#allocation3 + $0xb8] sm:$0xff] %vm1785, %v1736
      %1810 = vst.msk [vmem:[#allocation3 + $0xc0] sm:$0xff] %vm1785, %v1738
      %1811 = vst.msk [vmem:[#allocation3 + $0xc8] sm:$0xff] %vm1785, %v1740
      %1812 = vst.msk [vmem:[#allocation3 + $0xd0] sm:$0xff] %vm1785, %v1742
      %1813 = vst.msk [vmem:[#allocation3 + $0xd8] sm:$0xff] %vm1785, %v1744
      %1814 = vst.msk [vmem:[#allocation3 + $0xe0] sm:$0xff] %vm1785, %v1746
      %1815 = vst.msk [vmem:[#allocation3 + $0xe8] sm:$0xff] %vm1785, %v1748
      %1816 = vst.msk [vmem:[#allocation3 + $0xf0] sm:$0xff] %vm1785, %v1750
      %1817 = vst.msk [vmem:[#allocation3 + $0xf8] sm:$0xff] %vm1785, %v1752
      %vm1818 = vcmask 1045504
      %v1819 = vrot.slane %v1474, 2
      %v1820 = vrot.slane %v1475, 2
      %v1821 = vsel %vm1818, %v1819, %v1820
      %v1822 = vrot.slane %v1476, 2
      %v1823 = vsel %vm1818, %v1820, %v1822
      %v1824 = vrot.slane %v1477, 2
      %v1825 = vrot.slane %v1478, 2
      %v1826 = vsel %vm1818, %v1824, %v1825
      %v1827 = vrot.slane %v1479, 2
      %v1828 = vsel %vm1818, %v1825, %v1827
      %v1829 = vrot.slane %v1480, 2
      %v1830 = vrot.slane %v1481, 2
      %v1831 = vsel %vm1818, %v1829, %v1830
      %v1832 = vrot.slane %v1482, 2
      %v1833 = vsel %vm1818, %v1830, %v1832
      %v1834 = vrot.slane %v1483, 2
      %v1835 = vrot.slane %v1484, 2
      %v1836 = vsel %vm1818, %v1834, %v1835
      %v1837 = vrot.slane %v1485, 2
      %v1838 = vsel %vm1818, %v1835, %v1837
      %v1839 = vrot.slane %v1486, 2
      %v1840 = vrot.slane %v1487, 2
      %v1841 = vsel %vm1818, %v1839, %v1840
      %v1842 = vrot.slane %v1488, 2
      %v1843 = vsel %vm1818, %v1840, %v1842
      %v1844 = vrot.slane %v1489, 2
      %v1845 = vrot.slane %v1490, 2
      %v1846 = vsel %vm1818, %v1844, %v1845
      %v1847 = vrot.slane %v1491, 2
      %v1848 = vsel %vm1818, %v1845, %v1847
      %v1849 = vrot.slane %v1492, 2
      %v1850 = vrot.slane %v1493, 2
      %v1851 = vsel %vm1818, %v1849, %v1850
      %v1852 = vrot.slane %v1494, 2
      %v1853 = vsel %vm1818, %v1850, %v1852
      %v1854 = vrot.slane %v1495, 2
      %v1855 = vrot.slane %v1496, 2
      %v1856 = vsel %vm1818, %v1854, %v1855
      %v1857 = vrot.slane %v1497, 2
      %v1858 = vsel %vm1818, %v1855, %v1857
      %v1859 = vrot.slane %v1498, 2
      %v1860 = vrot.slane %v1499, 2
      %v1861 = vsel %vm1818, %v1859, %v1860
      %v1862 = vrot.slane %v1500, 2
      %v1863 = vsel %vm1818, %v1860, %v1862
      %v1864 = vrot.slane %v1501, 2
      %v1865 = vrot.slane %v1502, 2
      %v1866 = vsel %vm1818, %v1864, %v1865
      %v1867 = vrot.slane %v1503, 2
      %v1868 = vsel %vm1818, %v1865, %v1867
      %v1869 = vrot.slane %v1504, 2
      %v1870 = vrot.slane %v1505, 2
      %v1871 = vsel %vm1818, %v1869, %v1870
      %v1872 = vrot.slane %v1506, 2
      %v1873 = vsel %vm1818, %v1870, %v1872
      %v1874 = vrot.slane %v1507, 2
      %v1875 = vrot.slane %v1508, 2
      %v1876 = vsel %vm1818, %v1874, %v1875
      %v1877 = vrot.slane %v1509, 2
      %v1878 = vsel %vm1818, %v1875, %v1877
      %v1879 = vrot.slane %v1510, 2
      %v1880 = vrot.slane %v1511, 2
      %v1881 = vsel %vm1818, %v1879, %v1880
      %v1882 = vrot.slane %v1512, 2
      %v1883 = vsel %vm1818, %v1880, %v1882
      %v1884 = vrot.slane %v1513, 2
      %v1885 = vrot.slane %v1514, 2
      %v1886 = vsel %vm1818, %v1884, %v1885
      %v1887 = vrot.slane %v1515, 2
      %v1888 = vsel %vm1818, %v1885, %v1887
      %v1889 = vrot.slane %v1516, 2
      %v1890 = vrot.slane %v1517, 2
      %v1891 = vsel %vm1818, %v1889, %v1890
      %v1892 = vrot.slane %v1518, 2
      %v1893 = vsel %vm1818, %v1890, %v1892
      %v1894 = vrot.slane %v1519, 2
      %v1895 = vrot.slane %v1520, 2
      %v1896 = vsel %vm1818, %v1894, %v1895
      %v1897 = vrot.slane %v1521, 2
      %v1898 = vsel %vm1818, %v1895, %v1897
      %1899 = vrot.lane.b32.xlu0 %v1821, 16
      %v1900 = vpop.permute.xlu0 %1899
      %1901 = vrot.lane.b32.xlu0 %v1823, 16
      %v1902 = vpop.permute.xlu0 %1901
      %1903 = vrot.lane.b32.xlu0 %v1826, 16
      %v1904 = vpop.permute.xlu0 %1903
      %1905 = vrot.lane.b32.xlu0 %v1828, 16
      %v1906 = vpop.permute.xlu0 %1905
      %1907 = vrot.lane.b32.xlu0 %v1831, 16
      %v1908 = vpop.permute.xlu0 %1907
      %1909 = vrot.lane.b32.xlu0 %v1833, 16
      %v1910 = vpop.permute.xlu0 %1909
      %1911 = vrot.lane.b32.xlu0 %v1836, 16
      %v1912 = vpop.permute.xlu0 %1911
      %1913 = vrot.lane.b32.xlu0 %v1838, 16
      %v1914 = vpop.permute.xlu0 %1913
      %1915 = vrot.lane.b32.xlu0 %v1841, 16
      %v1916 = vpop.permute.xlu0 %1915
      %1917 = vrot.lane.b32.xlu0 %v1843, 16
      %v1918 = vpop.permute.xlu0 %1917
      %1919 = vrot.lane.b32.xlu0 %v1846, 16
      %v1920 = vpop.permute.xlu0 %1919
      %1921 = vrot.lane.b32.xlu0 %v1848, 16
      %v1922 = vpop.permute.xlu0 %1921
      %1923 = vrot.lane.b32.xlu0 %v1851, 16
      %v1924 = vpop.permute.xlu0 %1923
      %1925 = vrot.lane.b32.xlu0 %v1853, 16
      %v1926 = vpop.permute.xlu0 %1925
      %1927 = vrot.lane.b32.xlu0 %v1856, 16
      %v1928 = vpop.permute.xlu0 %1927
      %1929 = vrot.lane.b32.xlu0 %v1858, 16
      %v1930 = vpop.permute.xlu0 %1929
      %1931 = vrot.lane.b32.xlu0 %v1861, 16
      %v1932 = vpop.permute.xlu0 %1931
      %1933 = vrot.lane.b32.xlu0 %v1863, 16
      %v1934 = vpop.permute.xlu0 %1933
      %1935 = vrot.lane.b32.xlu0 %v1866, 16
      %v1936 = vpop.permute.xlu0 %1935
      %1937 = vrot.lane.b32.xlu0 %v1868, 16
      %v1938 = vpop.permute.xlu0 %1937
      %1939 = vrot.lane.b32.xlu0 %v1871, 16
      %v1940 = vpop.permute.xlu0 %1939
      %1941 = vrot.lane.b32.xlu0 %v1873, 16
      %v1942 = vpop.permute.xlu0 %1941
      %1943 = vrot.lane.b32.xlu0 %v1876, 16
      %v1944 = vpop.permute.xlu0 %1943
      %1945 = vrot.lane.b32.xlu0 %v1878, 16
      %v1946 = vpop.permute.xlu0 %1945
      %1947 = vrot.lane.b32.xlu0 %v1881, 16
      %v1948 = vpop.permute.xlu0 %1947
      %1949 = vrot.lane.b32.xlu0 %v1883, 16
      %v1950 = vpop.permute.xlu0 %1949
      %1951 = vrot.lane.b32.xlu0 %v1886, 16
      %v1952 = vpop.permute.xlu0 %1951
      %1953 = vrot.lane.b32.xlu0 %v1888, 16
      %v1954 = vpop.permute.xlu0 %1953
      %1955 = vrot.lane.b32.xlu0 %v1891, 16
      %v1956 = vpop.permute.xlu0 %1955
      %1957 = vrot.lane.b32.xlu0 %v1893, 16
      %v1958 = vpop.permute.xlu0 %1957
      %1959 = vrot.lane.b32.xlu0 %v1896, 16
      %v1960 = vpop.permute.xlu0 %1959
      %1961 = vrot.lane.b32.xlu0 %v1898, 16
      %v1962 = vpop.permute.xlu0 %1961
      %vm1995 = vcmask 195712
      %1996 = vst.msk [vmem:[#allocation3] sm:$0xff] %vm1995, %v1900
      %1997 = vst.msk [vmem:[#allocation3 + $0x8] sm:$0xff] %vm1995, %v1902
      %1998 = vst.msk [vmem:[#allocation3 + $0x10] sm:$0xff] %vm1995, %v1904
      %1999 = vst.msk [vmem:[#allocation3 + $0x18] sm:$0xff] %vm1995, %v1906
      %2000 = vst.msk [vmem:[#allocation3 + $0x20] sm:$0xff] %vm1995, %v1908
      %2001 = vst.msk [vmem:[#allocation3 + $0x28] sm:$0xff] %vm1995, %v1910
      %2002 = vst.msk [vmem:[#allocation3 + $0x30] sm:$0xff] %vm1995, %v1912
      %2003 = vst.msk [vmem:[#allocation3 + $0x38] sm:$0xff] %vm1995, %v1914
      %2004 = vst.msk [vmem:[#allocation3 + $0x40] sm:$0xff] %vm1995, %v1916
      %2005 = vst.msk [vmem:[#allocation3 + $0x48] sm:$0xff] %vm1995, %v1918
      %2006 = vst.msk [vmem:[#allocation3 + $0x50] sm:$0xff] %vm1995, %v1920
      %2007 = vst.msk [vmem:[#allocation3 + $0x58] sm:$0xff] %vm1995, %v1922
      %2008 = vst.msk [vmem:[#allocation3 + $0x60] sm:$0xff] %vm1995, %v1924
      %2009 = vst.msk [vmem:[#allocation3 + $0x68] sm:$0xff] %vm1995, %v1926
      %2010 = vst.msk [vmem:[#allocation3 + $0x70] sm:$0xff] %vm1995, %v1928
      %2011 = vst.msk [vmem:[#allocation3 + $0x78] sm:$0xff] %vm1995, %v1930
      %2012 = vst.msk [vmem:[#allocation3 + $0x80] sm:$0xff] %vm1995, %v1932
      %2013 = vst.msk [vmem:[#allocation3 + $0x88] sm:$0xff] %vm1995, %v1934
      %2014 = vst.msk [vmem:[#allocation3 + $0x90] sm:$0xff] %vm1995, %v1936
      %2015 = vst.msk [vmem:[#allocation3 + $0x98] sm:$0xff] %vm1995, %v1938
      %2016 = vst.msk [vmem:[#allocation3 + $0xa0] sm:$0xff] %vm1995, %v1940
      %2017 = vst.msk [vmem:[#allocation3 + $0xa8] sm:$0xff] %vm1995, %v1942
      %2018 = vst.msk [vmem:[#allocation3 + $0xb0] sm:$0xff] %vm1995, %v1944
      %2019 = vst.msk [vmem:[#allocation3 + $0xb8] sm:$0xff] %vm1995, %v1946
      %2020 = vst.msk [vmem:[#allocation3 + $0xc0] sm:$0xff] %vm1995, %v1948
      %2021 = vst.msk [vmem:[#allocation3 + $0xc8] sm:$0xff] %vm1995, %v1950
      %2022 = vst.msk [vmem:[#allocation3 + $0xd0] sm:$0xff] %vm1995, %v1952
      %2023 = vst.msk [vmem:[#allocation3 + $0xd8] sm:$0xff] %vm1995, %v1954
      %2024 = vst.msk [vmem:[#allocation3 + $0xe0] sm:$0xff] %vm1995, %v1956
      %2025 = vst.msk [vmem:[#allocation3 + $0xe8] sm:$0xff] %vm1995, %v1958
      %2026 = vst.msk [vmem:[#allocation3 + $0xf0] sm:$0xff] %vm1995, %v1960
      %2027 = vst.msk [vmem:[#allocation3 + $0xf8] sm:$0xff] %vm1995, %v1962
      %2030 = vrot.lane.b32.xlu0 %v1477, 24
      %v2031 = vpop.permute.xlu0 %2030
      %2032 = vrot.lane.b32.xlu0 %v1478, 24
      %v2033 = vpop.permute.xlu0 %2032
      %2034 = vrot.lane.b32.xlu0 %v1480, 24
      %v2035 = vpop.permute.xlu0 %2034
      %2036 = vrot.lane.b32.xlu0 %v1481, 24
      %v2037 = vpop.permute.xlu0 %2036
      %2038 = vrot.lane.b32.xlu0 %v1483, 24
      %v2039 = vpop.permute.xlu0 %2038
      %2040 = vrot.lane.b32.xlu0 %v1484, 24
      %v2041 = vpop.permute.xlu0 %2040
      %2042 = vrot.lane.b32.xlu0 %v1486, 24
      %v2043 = vpop.permute.xlu0 %2042
      %2044 = vrot.lane.b32.xlu0 %v1487, 24
      %v2045 = vpop.permute.xlu0 %2044
      %2046 = vrot.lane.b32.xlu0 %v1489, 24
      %v2047 = vpop.permute.xlu0 %2046
      %2048 = vrot.lane.b32.xlu0 %v1490, 24
      %v2049 = vpop.permute.xlu0 %2048
      %2050 = vrot.lane.b32.xlu0 %v1492, 24
      %v2051 = vpop.permute.xlu0 %2050
      %2052 = vrot.lane.b32.xlu0 %v1493, 24
      %v2053 = vpop.permute.xlu0 %2052
      %2054 = vrot.lane.b32.xlu0 %v1495, 24
      %v2055 = vpop.permute.xlu0 %2054
      %2056 = vrot.lane.b32.xlu0 %v1496, 24
      %v2057 = vpop.permute.xlu0 %2056
      %2058 = vrot.lane.b32.xlu0 %v1498, 24
      %v2059 = vpop.permute.xlu0 %2058
      %2060 = vrot.lane.b32.xlu0 %v1499, 24
      %v2061 = vpop.permute.xlu0 %2060
      %2062 = vrot.lane.b32.xlu0 %v1501, 24
      %v2063 = vpop.permute.xlu0 %2062
      %2064 = vrot.lane.b32.xlu0 %v1502, 24
      %v2065 = vpop.permute.xlu0 %2064
      %2066 = vrot.lane.b32.xlu0 %v1504, 24
      %v2067 = vpop.permute.xlu0 %2066
      %2068 = vrot.lane.b32.xlu0 %v1505, 24
      %v2069 = vpop.permute.xlu0 %2068
      %2070 = vrot.lane.b32.xlu0 %v1507, 24
      %v2071 = vpop.permute.xlu0 %2070
      %2072 = vrot.lane.b32.xlu0 %v1508, 24
      %v2073 = vpop.permute.xlu0 %2072
      %2074 = vrot.lane.b32.xlu0 %v1510, 24
      %v2075 = vpop.permute.xlu0 %2074
      %2076 = vrot.lane.b32.xlu0 %v1511, 24
      %v2077 = vpop.permute.xlu0 %2076
      %2078 = vrot.lane.b32.xlu0 %v1513, 24
      %v2079 = vpop.permute.xlu0 %2078
      %2080 = vrot.lane.b32.xlu0 %v1514, 24
      %v2081 = vpop.permute.xlu0 %2080
      %2082 = vrot.lane.b32.xlu0 %v1516, 24
      %v2083 = vpop.permute.xlu0 %2082
      %2084 = vrot.lane.b32.xlu0 %v1517, 24
      %v2085 = vpop.permute.xlu0 %2084
      %2086 = vrot.lane.b32.xlu0 %v1519, 24
      %v2087 = vpop.permute.xlu0 %2086
      %2088 = vrot.lane.b32.xlu0 %v1520, 24
      %v2089 = vpop.permute.xlu0 %2088
      %2090 = vrot.lane.b32.xlu0 %v1522, 24
      %v2091 = vpop.permute.xlu0 %2090
      %2092 = vrot.lane.b32.xlu0 %v1523, 24
      %v2093 = vpop.permute.xlu0 %2092
      %vm2126 = vcmask 261312
      %2127 = vst.msk [vmem:[#allocation3] sm:$0xff] %vm2126, %v2031
      %2128 = vst.msk [vmem:[#allocation3 + $0x8] sm:$0xff] %vm2126, %v2033
      %2129 = vst.msk [vmem:[#allocation3 + $0x10] sm:$0xff] %vm2126, %v2035
      %2130 = vst.msk [vmem:[#allocation3 + $0x18] sm:$0xff] %vm2126, %v2037
      %2131 = vst.msk [vmem:[#allocation3 + $0x20] sm:$0xff] %vm2126, %v2039
      %2132 = vst.msk [vmem:[#allocation3 + $0x28] sm:$0xff] %vm2126, %v2041
      %2133 = vst.msk [vmem:[#allocation3 + $0x30] sm:$0xff] %vm2126, %v2043
      %2134 = vst.msk [vmem:[#allocation3 + $0x38] sm:$0xff] %vm2126, %v2045
      %2135 = vst.msk [vmem:[#allocation3 + $0x40] sm:$0xff] %vm2126, %v2047
      %2136 = vst.msk [vmem:[#allocation3 + $0x48] sm:$0xff] %vm2126, %v2049
      %2137 = vst.msk [vmem:[#allocation3 + $0x50] sm:$0xff] %vm2126, %v2051
      %2138 = vst.msk [vmem:[#allocation3 + $0x58] sm:$0xff] %vm2126, %v2053
      %2139 = vst.msk [vmem:[#allocation3 + $0x60] sm:$0xff] %vm2126, %v2055
      %2140 = vst.msk [vmem:[#allocation3 + $0x68] sm:$0xff] %vm2126, %v2057
      %2141 = vst.msk [vmem:[#allocation3 + $0x70] sm:$0xff] %vm2126, %v2059
      %2142 = vst.msk [vmem:[#allocation3 + $0x78] sm:$0xff] %vm2126, %v2061
      %2143 = vst.msk [vmem:[#allocation3 + $0x80] sm:$0xff] %vm2126, %v2063
      %2144 = vst.msk [vmem:[#allocation3 + $0x88] sm:$0xff] %vm2126, %v2065
      %2145 = vst.msk [vmem:[#allocation3 + $0x90] sm:$0xff] %vm2126, %v2067
      %2146 = vst.msk [vmem:[#allocation3 + $0x98] sm:$0xff] %vm2126, %v2069
      %2147 = vst.msk [vmem:[#allocation3 + $0xa0] sm:$0xff] %vm2126, %v2071
      %2148 = vst.msk [vmem:[#allocation3 + $0xa8] sm:$0xff] %vm2126, %v2073
      %2149 = vst.msk [vmem:[#allocation3 + $0xb0] sm:$0xff] %vm2126, %v2075
      %2150 = vst.msk [vmem:[#allocation3 + $0xb8] sm:$0xff] %vm2126, %v2077
      %2151 = vst.msk [vmem:[#allocation3 + $0xc0] sm:$0xff] %vm2126, %v2079
      %2152 = vst.msk [vmem:[#allocation3 + $0xc8] sm:$0xff] %vm2126, %v2081
      %2153 = vst.msk [vmem:[#allocation3 + $0xd0] sm:$0xff] %vm2126, %v2083
      %2154 = vst.msk [vmem:[#allocation3 + $0xd8] sm:$0xff] %vm2126, %v2085
      %2155 = vst.msk [vmem:[#allocation3 + $0xe0] sm:$0xff] %vm2126, %v2087
      %2156 = vst.msk [vmem:[#allocation3 + $0xe8] sm:$0xff] %vm2126, %v2089
      %2157 = vst.msk [vmem:[#allocation3 + $0xf0] sm:$0xff] %vm2126, %v2091
      %2158 = vst.msk [vmem:[#allocation3 + $0xf8] sm:$0xff] %vm2126, %v2093
      %v2160 = vrot.slane %v1522, 1
      %v2161 = vrot.slane %v1523, 1
      %v2162 = vsel %vm1608, %v2160, %v2161
      %v2163 = vrot.slane %v1524, 1
      %v2164 = vsel %vm1608, %v2161, %v2163
      %2165 = vrot.lane.b32.xlu0 %v1616, 32
      %v2166 = vpop.permute.xlu0 %2165
      %2167 = vrot.lane.b32.xlu0 %v1618, 32
      %v2168 = vpop.permute.xlu0 %2167
      %2169 = vrot.lane.b32.xlu0 %v1621, 32
      %v2170 = vpop.permute.xlu0 %2169
      %2171 = vrot.lane.b32.xlu0 %v1623, 32
      %v2172 = vpop.permute.xlu0 %2171
      %2173 = vrot.lane.b32.xlu0 %v1626, 32
      %v2174 = vpop.permute.xlu0 %2173
      %2175 = vrot.lane.b32.xlu0 %v1628, 32
      %v2176 = vpop.permute.xlu0 %2175
      %2177 = vrot.lane.b32.xlu0 %v1631, 32
      %v2178 = vpop.permute.xlu0 %2177
      %2179 = vrot.lane.b32.xlu0 %v1633, 32
      %v2180 = vpop.permute.xlu0 %2179
      %2181 = vrot.lane.b32.xlu0 %v1636, 32
      %v2182 = vpop.permute.xlu0 %2181
      %2183 = vrot.lane.b32.xlu0 %v1638, 32
      %v2184 = vpop.permute.xlu0 %2183
      %2185 = vrot.lane.b32.xlu0 %v1641, 32
      %v2186 = vpop.permute.xlu0 %2185
      %2187 = vrot.lane.b32.xlu0 %v1643, 32
      %v2188 = vpop.permute.xlu0 %2187
      %2189 = vrot.lane.b32.xlu0 %v1646, 32
      %v2190 = vpop.permute.xlu0 %2189
      %2191 = vrot.lane.b32.xlu0 %v1648, 32
      %v2192 = vpop.permute.xlu0 %2191
      %2193 = vrot.lane.b32.xlu0 %v1651, 32
      %v2194 = vpop.permute.xlu0 %2193
      %2195 = vrot.lane.b32.xlu0 %v1653, 32
      %v2196 = vpop.permute.xlu0 %2195
      %2197 = vrot.lane.b32.xlu0 %v1656, 32
      %v2198 = vpop.permute.xlu0 %2197
      %2199 = vrot.lane.b32.xlu0 %v1658, 32
      %v2200 = vpop.permute.xlu0 %2199
      %2201 = vrot.lane.b32.xlu0 %v1661, 32
      %v2202 = vpop.permute.xlu0 %2201
      %2203 = vrot.lane.b32.xlu0 %v1663, 32
      %v2204 = vpop.permute.xlu0 %2203
      %2205 = vrot.lane.b32.xlu0 %v1666, 32
      %v2206 = vpop.permute.xlu0 %2205
      %2207 = vrot.lane.b32.xlu0 %v1668, 32
      %v2208 = vpop.permute.xlu0 %2207
      %2209 = vrot.lane.b32.xlu0 %v1671, 32
      %v2210 = vpop.permute.xlu0 %2209
      %2211 = vrot.lane.b32.xlu0 %v1673, 32
      %v2212 = vpop.permute.xlu0 %2211
      %2213 = vrot.lane.b32.xlu0 %v1676, 32
      %v2214 = vpop.permute.xlu0 %2213
      %2215 = vrot.lane.b32.xlu0 %v1678, 32
      %v2216 = vpop.permute.xlu0 %2215
      %2217 = vrot.lane.b32.xlu0 %v1681, 32
      %v2218 = vpop.permute.xlu0 %2217
      %2219 = vrot.lane.b32.xlu0 %v1683, 32
      %v2220 = vpop.permute.xlu0 %2219
      %2221 = vrot.lane.b32.xlu0 %v1686, 32
      %v2222 = vpop.permute.xlu0 %2221
      %2223 = vrot.lane.b32.xlu0 %v1688, 32
      %v2224 = vpop.permute.xlu0 %2223
      %2225 = vrot.lane.b32.xlu0 %v2162, 32
      %v2226 = vpop.permute.xlu0 %2225
      %2227 = vrot.lane.b32.xlu0 %v2164, 32
      %v2228 = vpop.permute.xlu0 %2227
      %vm2261 = vcmask 326912
      %2262 = vst.msk [vmem:[#allocation3] sm:$0xff] %vm2261, %v2166
      %2263 = vst.msk [vmem:[#allocation3 + $0x8] sm:$0xff] %vm2261, %v2168
      %2264 = vst.msk [vmem:[#allocation3 + $0x10] sm:$0xff] %vm2261, %v2170
      %2265 = vst.msk [vmem:[#allocation3 + $0x18] sm:$0xff] %vm2261, %v2172
      %2266 = vst.msk [vmem:[#allocation3 + $0x20] sm:$0xff] %vm2261, %v2174
      %2267 = vst.msk [vmem:[#allocation3 + $0x28] sm:$0xff] %vm2261, %v2176
      %2268 = vst.msk [vmem:[#allocation3 + $0x30] sm:$0xff] %vm2261, %v2178
      %2269 = vst.msk [vmem:[#allocation3 + $0x38] sm:$0xff] %vm2261, %v2180
      %2270 = vst.msk [vmem:[#allocation3 + $0x40] sm:$0xff] %vm2261, %v2182
      %2271 = vst.msk [vmem:[#allocation3 + $0x48] sm:$0xff] %vm2261, %v2184
      %2272 = vst.msk [vmem:[#allocation3 + $0x50] sm:$0xff] %vm2261, %v2186
      %2273 = vst.msk [vmem:[#allocation3 + $0x58] sm:$0xff] %vm2261, %v2188
      %2274 = vst.msk [vmem:[#allocation3 + $0x60] sm:$0xff] %vm2261, %v2190
      %2275 = vst.msk [vmem:[#allocation3 + $0x68] sm:$0xff] %vm2261, %v2192
      %2276 = vst.msk [vmem:[#allocation3 + $0x70] sm:$0xff] %vm2261, %v2194
      %2277 = vst.msk [vmem:[#allocation3 + $0x78] sm:$0xff] %vm2261, %v2196
      %2278 = vst.msk [vmem:[#allocation3 + $0x80] sm:$0xff] %vm2261, %v2198
      %2279 = vst.msk [vmem:[#allocation3 + $0x88] sm:$0xff] %vm2261, %v2200
      %2280 = vst.msk [vmem:[#allocation3 + $0x90] sm:$0xff] %vm2261, %v2202
      %2281 = vst.msk [vmem:[#allocation3 + $0x98] sm:$0xff] %vm2261, %v2204
      %2282 = vst.msk [vmem:[#allocation3 + $0xa0] sm:$0xff] %vm2261, %v2206
      %2283 = vst.msk [vmem:[#allocation3 + $0xa8] sm:$0xff] %vm2261, %v2208
      %2284 = vst.msk [vmem:[#allocation3 + $0xb0] sm:$0xff] %vm2261, %v2210
      %2285 = vst.msk [vmem:[#allocation3 + $0xb8] sm:$0xff] %vm2261, %v2212
      %2286 = vst.msk [vmem:[#allocation3 + $0xc0] sm:$0xff] %vm2261, %v2214
      %2287 = vst.msk [vmem:[#allocation3 + $0xc8] sm:$0xff] %vm2261, %v2216
      %2288 = vst.msk [vmem:[#allocation3 + $0xd0] sm:$0xff] %vm2261, %v2218
      %2289 = vst.msk [vmem:[#allocation3 + $0xd8] sm:$0xff] %vm2261, %v2220
      %2290 = vst.msk [vmem:[#allocation3 + $0xe0] sm:$0xff] %vm2261, %v2222
      %2291 = vst.msk [vmem:[#allocation3 + $0xe8] sm:$0xff] %vm2261, %v2224
      %2292 = vst.msk [vmem:[#allocation3 + $0xf0] sm:$0xff] %vm2261, %v2226
      %2293 = vst.msk [vmem:[#allocation3 + $0xf8] sm:$0xff] %vm2261, %v2228
      %v2294 = vrot.slane %v1522, 2
      %v2295 = vrot.slane %v1523, 2
      %v2296 = vsel %vm1818, %v2294, %v2295
      %v2297 = vrot.slane %v1524, 2
      %v2298 = vsel %vm1818, %v2295, %v2297
      %2299 = vrot.lane.b32.xlu0 %v1826, 40
      %v2300 = vpop.permute.xlu0 %2299
      %2301 = vrot.lane.b32.xlu0 %v1828, 40
      %v2302 = vpop.permute.xlu0 %2301
      %2303 = vrot.lane.b32.xlu0 %v1831, 40
      %v2304 = vpop.permute.xlu0 %2303
      %2305 = vrot.lane.b32.xlu0 %v1833, 40
      %v2306 = vpop.permute.xlu0 %2305
      %2307 = vrot.lane.b32.xlu0 %v1836, 40
      %v2308 = vpop.permute.xlu0 %2307
      %2309 = vrot.lane.b32.xlu0 %v1838, 40
      %v2310 = vpop.permute.xlu0 %2309
      %2311 = vrot.lane.b32.xlu0 %v1841, 40
      %v2312 = vpop.permute.xlu0 %2311
      %2313 = vrot.lane.b32.xlu0 %v1843, 40
      %v2314 = vpop.permute.xlu0 %2313
      %2315 = vrot.lane.b32.xlu0 %v1846, 40
      %v2316 = vpop.permute.xlu0 %2315
      %2317 = vrot.lane.b32.xlu0 %v1848, 40
      %v2318 = vpop.permute.xlu0 %2317
      %2319 = vrot.lane.b32.xlu0 %v1851, 40
      %v2320 = vpop.permute.xlu0 %2319
      %2321 = vrot.lane.b32.xlu0 %v1853, 40
      %v2322 = vpop.permute.xlu0 %2321
      %2323 = vrot.lane.b32.xlu0 %v1856, 40
      %v2324 = vpop.permute.xlu0 %2323
      %2325 = vrot.lane.b32.xlu0 %v1858, 40
      %v2326 = vpop.permute.xlu0 %2325
      %2327 = vrot.lane.b32.xlu0 %v1861, 40
      %v2328 = vpop.permute.xlu0 %2327
      %2329 = vrot.lane.b32.xlu0 %v1863, 40
      %v2330 = vpop.permute.xlu0 %2329
      %2331 = vrot.lane.b32.xlu0 %v1866, 40
      %v2332 = vpop.permute.xlu0 %2331
      %2333 = vrot.lane.b32.xlu0 %v1868, 40
      %v2334 = vpop.permute.xlu0 %2333
      %2335 = vrot.lane.b32.xlu0 %v1871, 40
      %v2336 = vpop.permute.xlu0 %2335
      %2337 = vrot.lane.b32.xlu0 %v1873, 40
      %v2338 = vpop.permute.xlu0 %2337
      %2339 = vrot.lane.b32.xlu0 %v1876, 40
      %v2340 = vpop.permute.xlu0 %2339
      %2341 = vrot.lane.b32.xlu0 %v1878, 40
      %v2342 = vpop.permute.xlu0 %2341
      %2343 = vrot.lane.b32.xlu0 %v1881, 40
      %v2344 = vpop.permute.xlu0 %2343
      %2345 = vrot.lane.b32.xlu0 %v1883, 40
      %v2346 = vpop.permute.xlu0 %2345
      %2347 = vrot.lane.b32.xlu0 %v1886, 40
      %v2348 = vpop.permute.xlu0 %2347
      %2349 = vrot.lane.b32.xlu0 %v1888, 40
      %v2350 = vpop.permute.xlu0 %2349
      %2351 = vrot.lane.b32.xlu0 %v1891, 40
      %v2352 = vpop.permute.xlu0 %2351
      %2353 = vrot.lane.b32.xlu0 %v1893, 40
      %v2354 = vpop.permute.xlu0 %2353
      %2355 = vrot.lane.b32.xlu0 %v1896, 40
      %v2356 = vpop.permute.xlu0 %2355
      %2357 = vrot.lane.b32.xlu0 %v1898, 40
      %v2358 = vpop.permute.xlu0 %2357
      %2359 = vrot.lane.b32.xlu0 %v2296, 40
      %v2360 = vpop.permute.xlu0 %2359
      %2361 = vrot.lane.b32.xlu0 %v2298, 40
      %v2362 = vpop.permute.xlu0 %2361
      %vm2395 = vcmask 392512
      %2396 = vst.msk [vmem:[#allocation3] sm:$0xff] %vm2395, %v2300
      %2397 = vst.msk [vmem:[#allocation3 + $0x8] sm:$0xff] %vm2395, %v2302
      %2398 = vst.msk [vmem:[#allocation3 + $0x10] sm:$0xff] %vm2395, %v2304
      %2399 = vst.msk [vmem:[#allocation3 + $0x18] sm:$0xff] %vm2395, %v2306
      %2400 = vst.msk [vmem:[#allocation3 + $0x20] sm:$0xff] %vm2395, %v2308
      %2401 = vst.msk [vmem:[#allocation3 + $0x28] sm:$0xff] %vm2395, %v2310
      %2402 = vst.msk [vmem:[#allocation3 + $0x30] sm:$0xff] %vm2395, %v2312
      %2403 = vst.msk [vmem:[#allocation3 + $0x38] sm:$0xff] %vm2395, %v2314
      %2404 = vst.msk [vmem:[#allocation3 + $0x40] sm:$0xff] %vm2395, %v2316
      %2405 = vst.msk [vmem:[#allocation3 + $0x48] sm:$0xff] %vm2395, %v2318
      %2406 = vst.msk [vmem:[#allocation3 + $0x50] sm:$0xff] %vm2395, %v2320
      %2407 = vst.msk [vmem:[#allocation3 + $0x58] sm:$0xff] %vm2395, %v2322
      %2408 = vst.msk [vmem:[#allocation3 + $0x60] sm:$0xff] %vm2395, %v2324
      %2409 = vst.msk [vmem:[#allocation3 + $0x68] sm:$0xff] %vm2395, %v2326
      %2410 = vst.msk [vmem:[#allocation3 + $0x70] sm:$0xff] %vm2395, %v2328
      %2411 = vst.msk [vmem:[#allocation3 + $0x78] sm:$0xff] %vm2395, %v2330
      %2412 = vst.msk [vmem:[#allocation3 + $0x80] sm:$0xff] %vm2395, %v2332
      %2413 = vst.msk [vmem:[#allocation3 + $0x88] sm:$0xff] %vm2395, %v2334
      %2414 = vst.msk [vmem:[#allocation3 + $0x90] sm:$0xff] %vm2395, %v2336
      %2415 = vst.msk [vmem:[#allocation3 + $0x98] sm:$0xff] %vm2395, %v2338
      %2416 = vst.msk [vmem:[#allocation3 + $0xa0] sm:$0xff] %vm2395, %v2340
      %2417 = vst.msk [vmem:[#allocation3 + $0xa8] sm:$0xff] %vm2395, %v2342
      %2418 = vst.msk [vmem:[#allocation3 + $0xb0] sm:$0xff] %vm2395, %v2344
      %2419 = vst.msk [vmem:[#allocation3 + $0xb8] sm:$0xff] %vm2395, %v2346
      %2420 = vst.msk [vmem:[#allocation3 + $0xc0] sm:$0xff] %vm2395, %v2348
      %2421 = vst.msk [vmem:[#allocation3 + $0xc8] sm:$0xff] %vm2395, %v2350
      %2422 = vst.msk [vmem:[#allocation3 + $0xd0] sm:$0xff] %vm2395, %v2352
      %2423 = vst.msk [vmem:[#allocation3 + $0xd8] sm:$0xff] %vm2395, %v2354
      %2424 = vst.msk [vmem:[#allocation3 + $0xe0] sm:$0xff] %vm2395, %v2356
      %2425 = vst.msk [vmem:[#allocation3 + $0xe8] sm:$0xff] %vm2395, %v2358
      %2426 = vst.msk [vmem:[#allocation3 + $0xf0] sm:$0xff] %vm2395, %v2360
      %2427 = vst.msk [vmem:[#allocation3 + $0xf8] sm:$0xff] %vm2395, %v2362
      %2430 = vrot.lane.b32.xlu0 %v1480, 48
      %v2431 = vpop.permute.xlu0 %2430
      %2432 = vrot.lane.b32.xlu0 %v1481, 48
      %v2433 = vpop.permute.xlu0 %2432
      %2434 = vrot.lane.b32.xlu0 %v1483, 48
      %v2435 = vpop.permute.xlu0 %2434
      %2436 = vrot.lane.b32.xlu0 %v1484, 48
      %v2437 = vpop.permute.xlu0 %2436
      %2438 = vrot.lane.b32.xlu0 %v1486, 48
      %v2439 = vpop.permute.xlu0 %2438
      %2440 = vrot.lane.b32.xlu0 %v1487, 48
      %v2441 = vpop.permute.xlu0 %2440
      %2442 = vrot.lane.b32.xlu0 %v1489, 48
      %v2443 = vpop.permute.xlu0 %2442
      %2444 = vrot.lane.b32.xlu0 %v1490, 48
      %v2445 = vpop.permute.xlu0 %2444
      %2446 = vrot.lane.b32.xlu0 %v1492, 48
      %v2447 = vpop.permute.xlu0 %2446
      %2448 = vrot.lane.b32.xlu0 %v1493, 48
      %v2449 = vpop.permute.xlu0 %2448
      %2450 = vrot.lane.b32.xlu0 %v1495, 48
      %v2451 = vpop.permute.xlu0 %2450
      %2452 = vrot.lane.b32.xlu0 %v1496, 48
      %v2453 = vpop.permute.xlu0 %2452
      %2454 = vrot.lane.b32.xlu0 %v1498, 48
      %v2455 = vpop.permute.xlu0 %2454
      %2456 = vrot.lane.b32.xlu0 %v1499, 48
      %v2457 = vpop.permute.xlu0 %2456
      %2458 = vrot.lane.b32.xlu0 %v1501, 48
      %v2459 = vpop.permute.xlu0 %2458
      %2460 = vrot.lane.b32.xlu0 %v1502, 48
      %v2461 = vpop.permute.xlu0 %2460
      %2462 = vrot.lane.b32.xlu0 %v1504, 48
      %v2463 = vpop.permute.xlu0 %2462
      %2464 = vrot.lane.b32.xlu0 %v1505, 48
      %v2465 = vpop.permute.xlu0 %2464
      %2466 = vrot.lane.b32.xlu0 %v1507, 48
      %v2467 = vpop.permute.xlu0 %2466
      %2468 = vrot.lane.b32.xlu0 %v1508, 48
      %v2469 = vpop.permute.xlu0 %2468
      %2470 = vrot.lane.b32.xlu0 %v1510, 48
      %v2471 = vpop.permute.xlu0 %2470
      %2472 = vrot.lane.b32.xlu0 %v1511, 48
      %v2473 = vpop.permute.xlu0 %2472
      %2474 = vrot.lane.b32.xlu0 %v1513, 48
      %v2475 = vpop.permute.xlu0 %2474
      %2476 = vrot.lane.b32.xlu0 %v1514, 48
      %v2477 = vpop.permute.xlu0 %2476
      %2478 = vrot.lane.b32.xlu0 %v1516, 48
      %v2479 = vpop.permute.xlu0 %2478
      %2480 = vrot.lane.b32.xlu0 %v1517, 48
      %v2481 = vpop.permute.xlu0 %2480
      %2482 = vrot.lane.b32.xlu0 %v1519, 48
      %v2483 = vpop.permute.xlu0 %2482
      %2484 = vrot.lane.b32.xlu0 %v1520, 48
      %v2485 = vpop.permute.xlu0 %2484
      %2486 = vrot.lane.b32.xlu0 %v1522, 48
      %v2487 = vpop.permute.xlu0 %2486
      %2488 = vrot.lane.b32.xlu0 %v1523, 48
      %v2489 = vpop.permute.xlu0 %2488
      %2490 = vrot.lane.b32.xlu0 %v1525, 48
      %v2491 = vpop.permute.xlu0 %2490
      %2492 = vrot.lane.b32.xlu0 %v1526, 48
      %v2493 = vpop.permute.xlu0 %2492
      %vm2526 = vcmask 458112
      %2527 = vst.msk [vmem:[#allocation3] sm:$0xff] %vm2526, %v2431
      %2528 = vst.msk [vmem:[#allocation3 + $0x8] sm:$0xff] %vm2526, %v2433
      %2529 = vst.msk [vmem:[#allocation3 + $0x10] sm:$0xff] %vm2526, %v2435
      %2530 = vst.msk [vmem:[#allocation3 + $0x18] sm:$0xff] %vm2526, %v2437
      %2531 = vst.msk [vmem:[#allocation3 + $0x20] sm:$0xff] %vm2526, %v2439
      %2532 = vst.msk [vmem:[#allocation3 + $0x28] sm:$0xff] %vm2526, %v2441
      %2533 = vst.msk [vmem:[#allocation3 + $0x30] sm:$0xff] %vm2526, %v2443
      %2534 = vst.msk [vmem:[#allocation3 + $0x38] sm:$0xff] %vm2526, %v2445
      %2535 = vst.msk [vmem:[#allocation3 + $0x40] sm:$0xff] %vm2526, %v2447
      %2536 = vst.msk [vmem:[#allocation3 + $0x48] sm:$0xff] %vm2526, %v2449
      %2537 = vst.msk [vmem:[#allocation3 + $0x50] sm:$0xff] %vm2526, %v2451
      %2538 = vst.msk [vmem:[#allocation3 + $0x58] sm:$0xff] %vm2526, %v2453
      %2539 = vst.msk [vmem:[#allocation3 + $0x60] sm:$0xff] %vm2526, %v2455
      %2540 = vst.msk [vmem:[#allocation3 + $0x68] sm:$0xff] %vm2526, %v2457
      %2541 = vst.msk [vmem:[#allocation3 + $0x70] sm:$0xff] %vm2526, %v2459
      %2542 = vst.msk [vmem:[#allocation3 + $0x78] sm:$0xff] %vm2526, %v2461
      %2543 = vst.msk [vmem:[#allocation3 + $0x80] sm:$0xff] %vm2526, %v2463
      %2544 = vst.msk [vmem:[#allocation3 + $0x88] sm:$0xff] %vm2526, %v2465
      %2545 = vst.msk [vmem:[#allocation3 + $0x90] sm:$0xff] %vm2526, %v2467
      %2546 = vst.msk [vmem:[#allocation3 + $0x98] sm:$0xff] %vm2526, %v2469
      %2547 = vst.msk [vmem:[#allocation3 + $0xa0] sm:$0xff] %vm2526, %v2471
      %2548 = vst.msk [vmem:[#allocation3 + $0xa8] sm:$0xff] %vm2526, %v2473
      %2549 = vst.msk [vmem:[#allocation3 + $0xb0] sm:$0xff] %vm2526, %v2475
      %2550 = vst.msk [vmem:[#allocation3 + $0xb8] sm:$0xff] %vm2526, %v2477
      %2551 = vst.msk [vmem:[#allocation3 + $0xc0] sm:$0xff] %vm2526, %v2479
      %2552 = vst.msk [vmem:[#allocation3 + $0xc8] sm:$0xff] %vm2526, %v2481
      %2553 = vst.msk [vmem:[#allocation3 + $0xd0] sm:$0xff] %vm2526, %v2483
      %2554 = vst.msk [vmem:[#allocation3 + $0xd8] sm:$0xff] %vm2526, %v2485
      %2555 = vst.msk [vmem:[#allocation3 + $0xe0] sm:$0xff] %vm2526, %v2487
      %2556 = vst.msk [vmem:[#allocation3 + $0xe8] sm:$0xff] %vm2526, %v2489
      %2557 = vst.msk [vmem:[#allocation3 + $0xf0] sm:$0xff] %vm2526, %v2491
      %2558 = vst.msk [vmem:[#allocation3 + $0xf8] sm:$0xff] %vm2526, %v2493
      %v2560 = vrot.slane %v1525, 1
      %v2561 = vrot.slane %v1526, 1
      %v2562 = vsel %vm1608, %v2560, %v2561
      %v2563 = vrot.slane %v1527, 1
      %v2564 = vsel %vm1608, %v2561, %v2563
      %2565 = vrot.lane.b32.xlu0 %v1621, 56
      %v2566 = vpop.permute.xlu0 %2565
      %2567 = vrot.lane.b32.xlu0 %v1623, 56
      %v2568 = vpop.permute.xlu0 %2567
      %2569 = vrot.lane.b32.xlu0 %v1626, 56
      %v2570 = vpop.permute.xlu0 %2569
      %2571 = vrot.lane.b32.xlu0 %v1628, 56
      %v2572 = vpop.permute.xlu0 %2571
      %2573 = vrot.lane.b32.xlu0 %v1631, 56
      %v2574 = vpop.permute.xlu0 %2573
      %2575 = vrot.lane.b32.xlu0 %v1633, 56
      %v2576 = vpop.permute.xlu0 %2575
      %2577 = vrot.lane.b32.xlu0 %v1636, 56
      %v2578 = vpop.permute.xlu0 %2577
      %2579 = vrot.lane.b32.xlu0 %v1638, 56
      %v2580 = vpop.permute.xlu0 %2579
      %2581 = vrot.lane.b32.xlu0 %v1641, 56
      %v2582 = vpop.permute.xlu0 %2581
      %2583 = vrot.lane.b32.xlu0 %v1643, 56
      %v2584 = vpop.permute.xlu0 %2583
      %2585 = vrot.lane.b32.xlu0 %v1646, 56
      %v2586 = vpop.permute.xlu0 %2585
      %2587 = vrot.lane.b32.xlu0 %v1648, 56
      %v2588 = vpop.permute.xlu0 %2587
      %2589 = vrot.lane.b32.xlu0 %v1651, 56
      %v2590 = vpop.permute.xlu0 %2589
      %2591 = vrot.lane.b32.xlu0 %v1653, 56
      %v2592 = vpop.permute.xlu0 %2591
      %2593 = vrot.lane.b32.xlu0 %v1656, 56
      %v2594 = vpop.permute.xlu0 %2593
      %2595 = vrot.lane.b32.xlu0 %v1658, 56
      %v2596 = vpop.permute.xlu0 %2595
      %2597 = vrot.lane.b32.xlu0 %v1661, 56
      %v2598 = vpop.permute.xlu0 %2597
      %2599 = vrot.lane.b32.xlu0 %v1663, 56
      %v2600 = vpop.permute.xlu0 %2599
      %2601 = vrot.lane.b32.xlu0 %v1666, 56
      %v2602 = vpop.permute.xlu0 %2601
      %2603 = vrot.lane.b32.xlu0 %v1668, 56
      %v2604 = vpop.permute.xlu0 %2603
      %2605 = vrot.lane.b32.xlu0 %v1671, 56
      %v2606 = vpop.permute.xlu0 %2605
      %2607 = vrot.lane.b32.xlu0 %v1673, 56
      %v2608 = vpop.permute.xlu0 %2607
      %2609 = vrot.lane.b32.xlu0 %v1676, 56
      %v2610 = vpop.permute.xlu0 %2609
      %2611 = vrot.lane.b32.xlu0 %v1678, 56
      %v2612 = vpop.permute.xlu0 %2611
      %2613 = vrot.lane.b32.xlu0 %v1681, 56
      %v2614 = vpop.permute.xlu0 %2613
      %2615 = vrot.lane.b32.xlu0 %v1683, 56
      %v2616 = vpop.permute.xlu0 %2615
      %2617 = vrot.lane.b32.xlu0 %v1686, 56
      %v2618 = vpop.permute.xlu0 %2617
      %2619 = vrot.lane.b32.xlu0 %v1688, 56
      %v2620 = vpop.permute.xlu0 %2619
      %2621 = vrot.lane.b32.xlu0 %v2162, 56
      %v2622 = vpop.permute.xlu0 %2621
      %2623 = vrot.lane.b32.xlu0 %v2164, 56
      %v2624 = vpop.permute.xlu0 %2623
      %2625 = vrot.lane.b32.xlu0 %v2562, 56
      %v2626 = vpop.permute.xlu0 %2625
      %2627 = vrot.lane.b32.xlu0 %v2564, 56
      %v2628 = vpop.permute.xlu0 %2627
      %vm2661 = vcmask 523712
      %2662 = vst.msk [vmem:[#allocation3] sm:$0xff] %vm2661, %v2566
      %2663 = vst.msk [vmem:[#allocation3 + $0x8] sm:$0xff] %vm2661, %v2568
      %2664 = vst.msk [vmem:[#allocation3 + $0x10] sm:$0xff] %vm2661, %v2570
      %2665 = vst.msk [vmem:[#allocation3 + $0x18] sm:$0xff] %vm2661, %v2572
      %2666 = vst.msk [vmem:[#allocation3 + $0x20] sm:$0xff] %vm2661, %v2574
      %2667 = vst.msk [vmem:[#allocation3 + $0x28] sm:$0xff] %vm2661, %v2576
      %2668 = vst.msk [vmem:[#allocation3 + $0x30] sm:$0xff] %vm2661, %v2578
      %2669 = vst.msk [vmem:[#allocation3 + $0x38] sm:$0xff] %vm2661, %v2580
      %2670 = vst.msk [vmem:[#allocation3 + $0x40] sm:$0xff] %vm2661, %v2582
      %2671 = vst.msk [vmem:[#allocation3 + $0x48] sm:$0xff] %vm2661, %v2584
      %2672 = vst.msk [vmem:[#allocation3 + $0x50] sm:$0xff] %vm2661, %v2586
      %2673 = vst.msk [vmem:[#allocation3 + $0x58] sm:$0xff] %vm2661, %v2588
      %2674 = vst.msk [vmem:[#allocation3 + $0x60] sm:$0xff] %vm2661, %v2590
      %2675 = vst.msk [vmem:[#allocation3 + $0x68] sm:$0xff] %vm2661, %v2592
      %2676 = vst.msk [vmem:[#allocation3 + $0x70] sm:$0xff] %vm2661, %v2594
      %2677 = vst.msk [vmem:[#allocation3 + $0x78] sm:$0xff] %vm2661, %v2596
      %2678 = vst.msk [vmem:[#allocation3 + $0x80] sm:$0xff] %vm2661, %v2598
      %2679 = vst.msk [vmem:[#allocation3 + $0x88] sm:$0xff] %vm2661, %v2600
      %2680 = vst.msk [vmem:[#allocation3 + $0x90] sm:$0xff] %vm2661, %v2602
      %2681 = vst.msk [vmem:[#allocation3 + $0x98] sm:$0xff] %vm2661, %v2604
      %2682 = vst.msk [vmem:[#allocation3 + $0xa0] sm:$0xff] %vm2661, %v2606
      %2683 = vst.msk [vmem:[#allocation3 + $0xa8] sm:$0xff] %vm2661, %v2608
      %2684 = vst.msk [vmem:[#allocation3 + $0xb0] sm:$0xff] %vm2661, %v2610
      %2685 = vst.msk [vmem:[#allocation3 + $0xb8] sm:$0xff] %vm2661, %v2612
      %2686 = vst.msk [vmem:[#allocation3 + $0xc0] sm:$0xff] %vm2661, %v2614
      %2687 = vst.msk [vmem:[#allocation3 + $0xc8] sm:$0xff] %vm2661, %v2616
      %2688 = vst.msk [vmem:[#allocation3 + $0xd0] sm:$0xff] %vm2661, %v2618
      %2689 = vst.msk [vmem:[#allocation3 + $0xd8] sm:$0xff] %vm2661, %v2620
      %2690 = vst.msk [vmem:[#allocation3 + $0xe0] sm:$0xff] %vm2661, %v2622
      %2691 = vst.msk [vmem:[#allocation3 + $0xe8] sm:$0xff] %vm2661, %v2624
      %2692 = vst.msk [vmem:[#allocation3 + $0xf0] sm:$0xff] %vm2661, %v2626
      %2693 = vst.msk [vmem:[#allocation3 + $0xf8] sm:$0xff] %vm2661, %v2628
      %v2694 = vrot.slane %v1525, 2
      %v2695 = vrot.slane %v1526, 2
      %v2696 = vsel %vm1818, %v2694, %v2695
      %v2697 = vrot.slane %v1527, 2
      %v2698 = vsel %vm1818, %v2695, %v2697
      %2699 = vrot.lane.b32.xlu0 %v1831, 64
      %v2700 = vpop.permute.xlu0 %2699
      %2701 = vrot.lane.b32.xlu0 %v1833, 64
      %v2702 = vpop.permute.xlu0 %2701
      %2703 = vrot.lane.b32.xlu0 %v1836, 64
      %v2704 = vpop.permute.xlu0 %2703
      %2705 = vrot.lane.b32.xlu0 %v1838, 64
      %v2706 = vpop.permute.xlu0 %2705
      %2707 = vrot.lane.b32.xlu0 %v1841, 64
      %v2708 = vpop.permute.xlu0 %2707
      %2709 = vrot.lane.b32.xlu0 %v1843, 64
      %v2710 = vpop.permute.xlu0 %2709
      %2711 = vrot.lane.b32.xlu0 %v1846, 64
      %v2712 = vpop.permute.xlu0 %2711
      %2713 = vrot.lane.b32.xlu0 %v1848, 64
      %v2714 = vpop.permute.xlu0 %2713
      %2715 = vrot.lane.b32.xlu0 %v1851, 64
      %v2716 = vpop.permute.xlu0 %2715
      %2717 = vrot.lane.b32.xlu0 %v1853, 64
      %v2718 = vpop.permute.xlu0 %2717
      %2719 = vrot.lane.b32.xlu0 %v1856, 64
      %v2720 = vpop.permute.xlu0 %2719
      %2721 = vrot.lane.b32.xlu0 %v1858, 64
      %v2722 = vpop.permute.xlu0 %2721
      %2723 = vrot.lane.b32.xlu0 %v1861, 64
      %v2724 = vpop.permute.xlu0 %2723
      %2725 = vrot.lane.b32.xlu0 %v1863, 64
      %v2726 = vpop.permute.xlu0 %2725
      %2727 = vrot.lane.b32.xlu0 %v1866, 64
      %v2728 = vpop.permute.xlu0 %2727
      %2729 = vrot.lane.b32.xlu0 %v1868, 64
      %v2730 = vpop.permute.xlu0 %2729
      %2731 = vrot.lane.b32.xlu0 %v1871, 64
      %v2732 = vpop.permute.xlu0 %2731
      %2733 = vrot.lane.b32.xlu0 %v1873, 64
      %v2734 = vpop.permute.xlu0 %2733
      %2735 = vrot.lane.b32.xlu0 %v1876, 64
      %v2736 = vpop.permute.xlu0 %2735
      %2737 = vrot.lane.b32.xlu0 %v1878, 64
      %v2738 = vpop.permute.xlu0 %2737
      %2739 = vrot.lane.b32.xlu0 %v1881, 64
      %v2740 = vpop.permute.xlu0 %2739
      %2741 = vrot.lane.b32.xlu0 %v1883, 64
      %v2742 = vpop.permute.xlu0 %2741
      %2743 = vrot.lane.b32.xlu0 %v1886, 64
      %v2744 = vpop.permute.xlu0 %2743
      %2745 = vrot.lane.b32.xlu0 %v1888, 64
      %v2746 = vpop.permute.xlu0 %2745
      %2747 = vrot.lane.b32.xlu0 %v1891, 64
      %v2748 = vpop.permute.xlu0 %2747
      %2749 = vrot.lane.b32.xlu0 %v1893, 64
      %v2750 = vpop.permute.xlu0 %2749
      %2751 = vrot.lane.b32.xlu0 %v1896, 64
      %v2752 = vpop.permute.xlu0 %2751
      %2753 = vrot.lane.b32.xlu0 %v1898, 64
      %v2754 = vpop.permute.xlu0 %2753
      %2755 = vrot.lane.b32.xlu0 %v2296, 64
      %v2756 = vpop.permute.xlu0 %2755
      %2757 = vrot.lane.b32.xlu0 %v2298, 64
      %v2758 = vpop.permute.xlu0 %2757
      %2759 = vrot.lane.b32.xlu0 %v2696, 64
      %v2760 = vpop.permute.xlu0 %2759
      %2761 = vrot.lane.b32.xlu0 %v2698, 64
      %v2762 = vpop.permute.xlu0 %2761
      %vm2795 = vcmask 589312
      %2796 = vst.msk [vmem:[#allocation3] sm:$0xff] %vm2795, %v2700
      %2797 = vst.msk [vmem:[#allocation3 + $0x8] sm:$0xff] %vm2795, %v2702
      %2798 = vst.msk [vmem:[#allocation3 + $0x10] sm:$0xff] %vm2795, %v2704
      %2799 = vst.msk [vmem:[#allocation3 + $0x18] sm:$0xff] %vm2795, %v2706
      %2800 = vst.msk [vmem:[#allocation3 + $0x20] sm:$0xff] %vm2795, %v2708
      %2801 = vst.msk [vmem:[#allocation3 + $0x28] sm:$0xff] %vm2795, %v2710
      %2802 = vst.msk [vmem:[#allocation3 + $0x30] sm:$0xff] %vm2795, %v2712
      %2803 = vst.msk [vmem:[#allocation3 + $0x38] sm:$0xff] %vm2795, %v2714
      %2804 = vst.msk [vmem:[#allocation3 + $0x40] sm:$0xff] %vm2795, %v2716
      %2805 = vst.msk [vmem:[#allocation3 + $0x48] sm:$0xff] %vm2795, %v2718
      %2806 = vst.msk [vmem:[#allocation3 + $0x50] sm:$0xff] %vm2795, %v2720
      %2807 = vst.msk [vmem:[#allocation3 + $0x58] sm:$0xff] %vm2795, %v2722
      %2808 = vst.msk [vmem:[#allocation3 + $0x60] sm:$0xff] %vm2795, %v2724
      %2809 = vst.msk [vmem:[#allocation3 + $0x68] sm:$0xff] %vm2795, %v2726
      %2810 = vst.msk [vmem:[#allocation3 + $0x70] sm:$0xff] %vm2795, %v2728
      %2811 = vst.msk [vmem:[#allocation3 + $0x78] sm:$0xff] %vm2795, %v2730
      %2812 = vst.msk [vmem:[#allocation3 + $0x80] sm:$0xff] %vm2795, %v2732
      %2813 = vst.msk [vmem:[#allocation3 + $0x88] sm:$0xff] %vm2795, %v2734
      %2814 = vst.msk [vmem:[#allocation3 + $0x90] sm:$0xff] %vm2795, %v2736
      %2815 = vst.msk [vmem:[#allocation3 + $0x98] sm:$0xff] %vm2795, %v2738
      %2816 = vst.msk [vmem:[#allocation3 + $0xa0] sm:$0xff] %vm2795, %v2740
      %2817 = vst.msk [vmem:[#allocation3 + $0xa8] sm:$0xff] %vm2795, %v2742
      %2818 = vst.msk [vmem:[#allocation3 + $0xb0] sm:$0xff] %vm2795, %v2744
      %2819 = vst.msk [vmem:[#allocation3 + $0xb8] sm:$0xff] %vm2795, %v2746
      %2820 = vst.msk [vmem:[#allocation3 + $0xc0] sm:$0xff] %vm2795, %v2748
      %2821 = vst.msk [vmem:[#allocation3 + $0xc8] sm:$0xff] %vm2795, %v2750
      %2822 = vst.msk [vmem:[#allocation3 + $0xd0] sm:$0xff] %vm2795, %v2752
      %2823 = vst.msk [vmem:[#allocation3 + $0xd8] sm:$0xff] %vm2795, %v2754
      %2824 = vst.msk [vmem:[#allocation3 + $0xe0] sm:$0xff] %vm2795, %v2756
      %2825 = vst.msk [vmem:[#allocation3 + $0xe8] sm:$0xff] %vm2795, %v2758
      %2826 = vst.msk [vmem:[#allocation3 + $0xf0] sm:$0xff] %vm2795, %v2760
      %2827 = vst.msk [vmem:[#allocation3 + $0xf8] sm:$0xff] %vm2795, %v2762
      %v2828 = vld [vmem:[#allocation3] sm:$0xff]
      %v2829 = vld [vmem:[#allocation3 + $0x8] sm:$0xff]
      %v2830 = vld [vmem:[#allocation3 + $0x10] sm:$0xff]
      %v2831 = vld [vmem:[#allocation3 + $0x18] sm:$0xff]
      %v2832 = vld [vmem:[#allocation3 + $0x20] sm:$0xff]
      %v2833 = vld [vmem:[#allocation3 + $0x28] sm:$0xff]
      %v2834 = vld [vmem:[#allocation3 + $0x30] sm:$0xff]
      %v2835 = vld [vmem:[#allocation3 + $0x38] sm:$0xff]
      %v2836 = vld [vmem:[#allocation3 + $0x40] sm:$0xff]
      %v2837 = vld [vmem:[#allocation3 + $0x48] sm:$0xff]
      %v2838 = vld [vmem:[#allocation3 + $0x50] sm:$0xff]
      %v2839 = vld [vmem:[#allocation3 + $0x58] sm:$0xff]
      %v2840 = vld [vmem:[#allocation3 + $0x60] sm:$0xff]
      %v2841 = vld [vmem:[#allocation3 + $0x68] sm:$0xff]
      %v2842 = vld [vmem:[#allocation3 + $0x70] sm:$0xff]
      %v2843 = vld [vmem:[#allocation3 + $0x78] sm:$0xff]
      %v2844 = vld [vmem:[#allocation3 + $0x80] sm:$0xff]
      %v2845 = vld [vmem:[#allocation3 + $0x88] sm:$0xff]
      %v2846 = vld [vmem:[#allocation3 + $0x90] sm:$0xff]
      %v2847 = vld [vmem:[#allocation3 + $0x98] sm:$0xff]
      %v2848 = vld [vmem:[#allocation3 + $0xa0] sm:$0xff]
      %v2849 = vld [vmem:[#allocation3 + $0xa8] sm:$0xff]
      %v2850 = vld [vmem:[#allocation3 + $0xb0] sm:$0xff]
      %v2851 = vld [vmem:[#allocation3 + $0xb8] sm:$0xff]
      %v2852 = vld [vmem:[#allocation3 + $0xc0] sm:$0xff]
      %v2853 = vld [vmem:[#allocation3 + $0xc8] sm:$0xff]
      %v2854 = vld [vmem:[#allocation3 + $0xd0] sm:$0xff]
      %v2855 = vld [vmem:[#allocation3 + $0xd8] sm:$0xff]
      %v2856 = vld [vmem:[#allocation3 + $0xe0] sm:$0xff]
      %v2857 = vld [vmem:[#allocation3 + $0xe8] sm:$0xff]
      %v2858 = vld [vmem:[#allocation3 + $0xf0] sm:$0xff]
      %v2859 = vld [vmem:[#allocation3 + $0xf8] sm:$0xff]
      %v2860 = vld [vmem:[%s8] sm:$0xff]
      %v2861 = vld [vmem:[%s8 + $0x8] sm:$0xff]
      %v2862 = vld [vmem:[%s8 + $0x10] sm:$0xff]
      %v2863 = vld [vmem:[%s8 + $0x18] sm:$0xff]
      %v2864 = vld [vmem:[%s8 + $0x20] sm:$0xff]
      %v2865 = vld [vmem:[%s8 + $0x28] sm:$0xff]
      %v2866 = vld [vmem:[%s8 + $0x30] sm:$0xff]
      %v2867 = vld [vmem:[%s8 + $0x38] sm:$0xff]
      %v2868 = vld [vmem:[%s8 + $0x40] sm:$0xff]
      %vm2869 = vcmask 588800
      %v2871 = vsel %vm2869, %v2828, 0
      %v2874 = vsel %vm2869, %v2829, 0
      %v2877 = vsel %vm2869, %v2830, 0
      %v2880 = vsel %vm2869, %v2831, 0
      %v2883 = vsel %vm2869, %v2832, 0
      %v2886 = vsel %vm2869, %v2833, 0
      %v2889 = vsel %vm2869, %v2834, 0
      %v2892 = vsel %vm2869, %v2835, 0
      %v2895 = vsel %vm2869, %v2836, 0
      %v2898 = vsel %vm2869, %v2837, 0
      %v2901 = vsel %vm2869, %v2838, 0
      %v2904 = vsel %vm2869, %v2839, 0
      %v2907 = vsel %vm2869, %v2840, 0
      %v2910 = vsel %vm2869, %v2841, 0
      %v2913 = vsel %vm2869, %v2842, 0
      %v2916 = vsel %vm2869, %v2843, 0
      %v2919 = vsel %vm2869, %v2844, 0
      %v2922 = vsel %vm2869, %v2845, 0
      %v2925 = vsel %vm2869, %v2846, 0
      %v2928 = vsel %vm2869, %v2847, 0
      %v2931 = vsel %vm2869, %v2848, 0
      %v2934 = vsel %vm2869, %v2849, 0
      %v2937 = vsel %vm2869, %v2850, 0
      %v2940 = vsel %vm2869, %v2851, 0
      %v2943 = vsel %vm2869, %v2852, 0
      %v2946 = vsel %vm2869, %v2853, 0
      %v2949 = vsel %vm2869, %v2854, 0
      %v2952 = vsel %vm2869, %v2855, 0
      %v2955 = vsel %vm2869, %v2856, 0
      %v2958 = vsel %vm2869, %v2857, 0
      %v2961 = vsel %vm2869, %v2858, 0
      %v2964 = vsel %vm2869, %v2859, 0
      %2966 = vmatpush.msra.mxu0 0.0
      %2967 = vmatpush.msra.mxu0 0.0
      %2968 = vmatpush.msra.mxu0 0.0
      %2969 = vmatpush.msra.mxu0 0.0
      %2970 = vmatpush.msra.mxu0 0.0
      %2971 = vmatpush.msra.mxu0 0.0
      %2972 = vmatpush.msra.mxu0 0.0
      %2973 = vmatpush.msra.mxu0 %v2868
      %2974 = vmatpush.msra.mxu0 %v2867
      %2975 = vmatpush.msra.mxu0 %v2866
      %2976 = vmatpush.msra.mxu0 %v2865
      %2977 = vmatpush.msra.mxu0 %v2864
      %2978 = vmatpush.msra.mxu0 %v2863
      %2979 = vmatpush.msra.mxu0 %v2862
      %2980 = vmatpush.msra.mxu0 %v2861
      %2981 = vmatpush.msra.mxu0 %v2860
      %2982 = vmatmul.f32.gmra.mxu0 %v2871
      %v2983 = vpop.f32.mrf.mxu0
      %v2984 = vadd.f32 0.0, %v2983
      %2985 = vmatmul.f32.gmra.mxu0 %v2874
      %v2986 = vpop.f32.mrf.mxu0
      %v2987 = vadd.f32 0.0, %v2986
      %2988 = vmatmul.f32.gmra.mxu0 %v2877
      %v2989 = vpop.f32.mrf.mxu0
      %v2990 = vadd.f32 0.0, %v2989
      %2991 = vmatmul.f32.gmra.mxu0 %v2880
      %v2992 = vpop.f32.mrf.mxu0
      %v2993 = vadd.f32 0.0, %v2992
      %2994 = vmatmul.f32.gmra.mxu0 %v2883
      %v2995 = vpop.f32.mrf.mxu0
      %v2996 = vadd.f32 0.0, %v2995
      %2997 = vmatmul.f32.gmra.mxu0 %v2886
      %v2998 = vpop.f32.mrf.mxu0
      %v2999 = vadd.f32 0.0, %v2998
      %3000 = vmatmul.f32.gmra.mxu0 %v2889
      %v3001 = vpop.f32.mrf.mxu0
      %v3002 = vadd.f32 0.0, %v3001
      %3003 = vmatmul.f32.gmra.mxu0 %v2892
      %v3004 = vpop.f32.mrf.mxu0
      %v3005 = vadd.f32 0.0, %v3004
      %3006 = vmatmul.f32.gmra.mxu0 %v2895
      %v3007 = vpop.f32.mrf.mxu0
      %v3008 = vadd.f32 0.0, %v3007
      %3009 = vmatmul.f32.gmra.mxu0 %v2898
      %v3010 = vpop.f32.mrf.mxu0
      %v3011 = vadd.f32 0.0, %v3010
      %3012 = vmatmul.f32.gmra.mxu0 %v2901
      %v3013 = vpop.f32.mrf.mxu0
      %v3014 = vadd.f32 0.0, %v3013
      %3015 = vmatmul.f32.gmra.mxu0 %v2904
      %v3016 = vpop.f32.mrf.mxu0
      %v3017 = vadd.f32 0.0, %v3016
      %3018 = vmatmul.f32.gmra.mxu0 %v2907
      %v3019 = vpop.f32.mrf.mxu0
      %v3020 = vadd.f32 0.0, %v3019
      %3021 = vmatmul.f32.gmra.mxu0 %v2910
      %v3022 = vpop.f32.mrf.mxu0
      %v3023 = vadd.f32 0.0, %v3022
      %3024 = vmatmul.f32.gmra.mxu0 %v2913
      %v3025 = vpop.f32.mrf.mxu0
      %v3026 = vadd.f32 0.0, %v3025
      %3027 = vmatmul.f32.gmra.mxu0 %v2916
      %v3028 = vpop.f32.mrf.mxu0
      %v3029 = vadd.f32 0.0, %v3028
      %3030 = vmatmul.f32.gmra.mxu0 %v2919
      %v3031 = vpop.f32.mrf.mxu0
      %v3032 = vadd.f32 0.0, %v3031
      %3033 = vmatmul.f32.gmra.mxu0 %v2922
      %v3034 = vpop.f32.mrf.mxu0
      %v3035 = vadd.f32 0.0, %v3034
      %3036 = vmatmul.f32.gmra.mxu0 %v2925
      %v3037 = vpop.f32.mrf.mxu0
      %v3038 = vadd.f32 0.0, %v3037
      %3039 = vmatmul.f32.gmra.mxu0 %v2928
      %v3040 = vpop.f32.mrf.mxu0
      %v3041 = vadd.f32 0.0, %v3040
      %3042 = vmatmul.f32.gmra.mxu0 %v2931
      %v3043 = vpop.f32.mrf.mxu0
      %v3044 = vadd.f32 0.0, %v3043
      %3045 = vmatmul.f32.gmra.mxu0 %v2934
      %v3046 = vpop.f32.mrf.mxu0
      %v3047 = vadd.f32 0.0, %v3046
      %3048 = vmatmul.f32.gmra.mxu0 %v2937
      %v3049 = vpop.f32.mrf.mxu0
      %v3050 = vadd.f32 0.0, %v3049
      %3051 = vmatmul.f32.gmra.mxu0 %v2940
      %v3052 = vpop.f32.mrf.mxu0
      %v3053 = vadd.f32 0.0, %v3052
      %3054 = vmatmul.f32.gmra.mxu0 %v2943
      %v3055 = vpop.f32.mrf.mxu0
      %v3056 = vadd.f32 0.0, %v3055
      %3057 = vmatmul.f32.gmra.mxu0 %v2946
      %v3058 = vpop.f32.mrf.mxu0
      %v3059 = vadd.f32 0.0, %v3058
      %3060 = vmatmul.f32.gmra.mxu0 %v2949
      %v3061 = vpop.f32.mrf.mxu0
      %v3062 = vadd.f32 0.0, %v3061
      %3063 = vmatmul.f32.gmra.mxu0 %v2952
      %v3064 = vpop.f32.mrf.mxu0
      %v3065 = vadd.f32 0.0, %v3064
      %3066 = vmatmul.f32.gmra.mxu0 %v2955
      %v3067 = vpop.f32.mrf.mxu0
      %v3068 = vadd.f32 0.0, %v3067
      %3069 = vmatmul.f32.gmra.mxu0 %v2958
      %v3070 = vpop.f32.mrf.mxu0
      %v3071 = vadd.f32 0.0, %v3070
      %3072 = vmatmul.f32.gmra.mxu0 %v2961
      %v3073 = vpop.f32.mrf.mxu0
      %v3074 = vadd.f32 0.0, %v3073
      %3075 = vmatmul.f32.gmra.mxu0 %v2964
      %v3076 = vpop.f32.mrf.mxu0
      %v3077 = vadd.f32 0.0, %v3076
      %3078 = vdwg.mxu0
      %v3079 = vsel %vm1031, %v2984, 0.0
      %v3080 = vsel %vm1031, %v2987, 0.0
      %v3081 = vadd.f32 %v3079, %v3080
      %v3082 = vsel %vm1031, %v2990, 0.0
      %v3083 = vadd.f32 %v3081, %v3082
      %v3084 = vsel %vm1031, %v2993, 0.0
      %v3085 = vadd.f32 %v3083, %v3084
      %v3086 = vsel %vm1031, %v2996, 0.0
      %v3087 = vadd.f32 %v3085, %v3086
      %v3088 = vsel %vm1031, %v2999, 0.0
      %v3089 = vadd.f32 %v3087, %v3088
      %v3090 = vsel %vm1031, %v3002, 0.0
      %v3091 = vadd.f32 %v3089, %v3090
      %v3092 = vsel %vm1031, %v3005, 0.0
      %v3093 = vadd.f32 %v3091, %v3092
      %v3094 = vsel %vm1031, %v3008, 0.0
      %v3095 = vadd.f32 %v3093, %v3094
      %v3096 = vsel %vm1031, %v3011, 0.0
      %v3097 = vadd.f32 %v3095, %v3096
      %v3098 = vsel %vm1031, %v3014, 0.0
      %v3099 = vadd.f32 %v3097, %v3098
      %v3100 = vsel %vm1031, %v3017, 0.0
      %v3101 = vadd.f32 %v3099, %v3100
      %v3102 = vsel %vm1031, %v3020, 0.0
      %v3103 = vadd.f32 %v3101, %v3102
      %v3104 = vsel %vm1031, %v3023, 0.0
      %v3105 = vadd.f32 %v3103, %v3104
      %v3106 = vsel %vm1031, %v3026, 0.0
      %v3107 = vadd.f32 %v3105, %v3106
      %v3108 = vsel %vm1031, %v3029, 0.0
      %v3109 = vadd.f32 %v3107, %v3108
      %v3110 = vsel %vm1031, %v3032, 0.0
      %v3111 = vadd.f32 %v3109, %v3110
      %v3112 = vsel %vm1031, %v3035, 0.0
      %v3113 = vadd.f32 %v3111, %v3112
      %v3114 = vsel %vm1031, %v3038, 0.0
      %v3115 = vadd.f32 %v3113, %v3114
      %v3116 = vsel %vm1031, %v3041, 0.0
      %v3117 = vadd.f32 %v3115, %v3116
      %v3118 = vsel %vm1031, %v3044, 0.0
      %v3119 = vadd.f32 %v3117, %v3118
      %v3120 = vsel %vm1031, %v3047, 0.0
      %v3121 = vadd.f32 %v3119, %v3120
      %v3122 = vsel %vm1031, %v3050, 0.0
      %v3123 = vadd.f32 %v3121, %v3122
      %v3124 = vsel %vm1031, %v3053, 0.0
      %v3125 = vadd.f32 %v3123, %v3124
      %v3126 = vsel %vm1031, %v3056, 0.0
      %v3127 = vadd.f32 %v3125, %v3126
      %v3128 = vsel %vm1031, %v3059, 0.0
      %v3129 = vadd.f32 %v3127, %v3128
      %v3130 = vsel %vm1031, %v3062, 0.0
      %v3131 = vadd.f32 %v3129, %v3130
      %v3132 = vsel %vm1031, %v3065, 0.0
      %v3133 = vadd.f32 %v3131, %v3132
      %v3134 = vsel %vm1031, %v3068, 0.0
      %v3135 = vadd.f32 %v3133, %v3134
      %v3136 = vsel %vm1031, %v3071, 0.0
      %v3137 = vadd.f32 %v3135, %v3136
      %v3138 = vsel %vm1031, %v3074, 0.0
      %v3139 = vadd.f32 %v3137, %v3138
      %v3140 = vsel %vm1031, %v3077, 0.0
      %v3141 = vadd.f32 %v3139, %v3140
      %3142 = vadd.xlane.f32.xlu0 %v3141
      %v3143 = vpop.xlane.xlu0 %3142
      %v3144 = vrot.slane %v3143, 4
      %v3145 = vadd.f32 %v3143, %v3144
      %v3146 = vrot.slane %v3145, 2
      %v3147 = vadd.f32 %v3145, %v3146
      %v3148 = vrot.slane %v3147, 1
      %v3149 = vadd.f32 %v3147, %v3148
      %s3150 = vtos %v3149
      %v3151 = vmul.f32 %v2984, %v2984
      %v3152 = vmul.f32 %v2987, %v2987
      %v3153 = vmul.f32 %v2990, %v2990
      %v3154 = vmul.f32 %v2993, %v2993
      %v3155 = vmul.f32 %v2996, %v2996
      %v3156 = vmul.f32 %v2999, %v2999
      %v3157 = vmul.f32 %v3002, %v3002
      %v3158 = vmul.f32 %v3005, %v3005
      %v3159 = vmul.f32 %v3008, %v3008
      %v3160 = vmul.f32 %v3011, %v3011
      %v3161 = vmul.f32 %v3014, %v3014
      %v3162 = vmul.f32 %v3017, %v3017
      %v3163 = vmul.f32 %v3020, %v3020
      %v3164 = vmul.f32 %v3023, %v3023
      %v3165 = vmul.f32 %v3026, %v3026
      %v3166 = vmul.f32 %v3029, %v3029
      %v3167 = vmul.f32 %v3032, %v3032
      %v3168 = vmul.f32 %v3035, %v3035
      %v3169 = vmul.f32 %v3038, %v3038
      %v3170 = vmul.f32 %v3041, %v3041
      %v3171 = vmul.f32 %v3044, %v3044
      %v3172 = vmul.f32 %v3047, %v3047
      %v3173 = vmul.f32 %v3050, %v3050
      %v3174 = vmul.f32 %v3053, %v3053
      %v3175 = vmul.f32 %v3056, %v3056
      %v3176 = vmul.f32 %v3059, %v3059
      %v3177 = vmul.f32 %v3062, %v3062
      %v3178 = vmul.f32 %v3065, %v3065
      %v3179 = vmul.f32 %v3068, %v3068
      %v3180 = vmul.f32 %v3071, %v3071
      %v3181 = vmul.f32 %v3074, %v3074
      %v3182 = vmul.f32 %v3077, %v3077
      %v3183 = vsel %vm1031, %v3151, 0.0
      %v3184 = vsel %vm1031, %v3152, 0.0
      %v3185 = vadd.f32 %v3183, %v3184
      %v3186 = vsel %vm1031, %v3153, 0.0
      %v3187 = vadd.f32 %v3185, %v3186
      %v3188 = vsel %vm1031, %v3154, 0.0
      %v3189 = vadd.f32 %v3187, %v3188
      %v3190 = vsel %vm1031, %v3155, 0.0
      %v3191 = vadd.f32 %v3189, %v3190
      %v3192 = vsel %vm1031, %v3156, 0.0
      %v3193 = vadd.f32 %v3191, %v3192
      %v3194 = vsel %vm1031, %v3157, 0.0
      %v3195 = vadd.f32 %v3193, %v3194
      %v3196 = vsel %vm1031, %v3158, 0.0
      %v3197 = vadd.f32 %v3195, %v3196
      %v3198 = vsel %vm1031, %v3159, 0.0
      %v3199 = vadd.f32 %v3197, %v3198
      %v3200 = vsel %vm1031, %v3160, 0.0
      %v3201 = vadd.f32 %v3199, %v3200
      %v3202 = vsel %vm1031, %v3161, 0.0
      %v3203 = vadd.f32 %v3201, %v3202
      %v3204 = vsel %vm1031, %v3162, 0.0
      %v3205 = vadd.f32 %v3203, %v3204
      %v3206 = vsel %vm1031, %v3163, 0.0
      %v3207 = vadd.f32 %v3205, %v3206
      %v3208 = vsel %vm1031, %v3164, 0.0
      %v3209 = vadd.f32 %v3207, %v3208
      %v3210 = vsel %vm1031, %v3165, 0.0
      %v3211 = vadd.f32 %v3209, %v3210
      %v3212 = vsel %vm1031, %v3166, 0.0
      %v3213 = vadd.f32 %v3211, %v3212
      %v3214 = vsel %vm1031, %v3167, 0.0
      %v3215 = vadd.f32 %v3213, %v3214
      %v3216 = vsel %vm1031, %v3168, 0.0
      %v3217 = vadd.f32 %v3215, %v3216
      %v3218 = vsel %vm1031, %v3169, 0.0
      %v3219 = vadd.f32 %v3217, %v3218
      %v3220 = vsel %vm1031, %v3170, 0.0
      %v3221 = vadd.f32 %v3219, %v3220
      %v3222 = vsel %vm1031, %v3171, 0.0
      %v3223 = vadd.f32 %v3221, %v3222
      %v3224 = vsel %vm1031, %v3172, 0.0
      %v3225 = vadd.f32 %v3223, %v3224
      %v3226 = vsel %vm1031, %v3173, 0.0
      %v3227 = vadd.f32 %v3225, %v3226
      %v3228 = vsel %vm1031, %v3174, 0.0
      %v3229 = vadd.f32 %v3227, %v3228
      %v3230 = vsel %vm1031, %v3175, 0.0
      %v3231 = vadd.f32 %v3229, %v3230
      %v3232 = vsel %vm1031, %v3176, 0.0
      %v3233 = vadd.f32 %v3231, %v3232
      %v3234 = vsel %vm1031, %v3177, 0.0
      %v3235 = vadd.f32 %v3233, %v3234
      %v3236 = vsel %vm1031, %v3178, 0.0
      %v3237 = vadd.f32 %v3235, %v3236
      %v3238 = vsel %vm1031, %v3179, 0.0
      %v3239 = vadd.f32 %v3237, %v3238
      %v3240 = vsel %vm1031, %v3180, 0.0
      %v3241 = vadd.f32 %v3239, %v3240
      %v3242 = vsel %vm1031, %v3181, 0.0
      %v3243 = vadd.f32 %v3241, %v3242
      %v3244 = vsel %vm1031, %v3182, 0.0
      %v3245 = vadd.f32 %v3243, %v3244
      %3246 = vadd.xlane.f32.xlu0 %v3245
      %v3247 = vpop.xlane.xlu0 %3246
      %v3248 = vrot.slane %v3247, 4
      %v3249 = vadd.f32 %v3247, %v3248
      %v3250 = vrot.slane %v3249, 2
      %v3251 = vadd.f32 %v3249, %v3250
      %v3252 = vrot.slane %v3251, 1
      %v3253 = vadd.f32 %v3251, %v3252
      %s3254 = vtos %v3253
      %s3255 = smul.f32 %s3150, 0.00048828125
      %s3256 = smul.f32 %s3254, 0.00048828125
      %s3257 = smul.f32 %s3255, %s3255
      %s3258 = ssub.f32 %s3256, %s3257
      %s3259 = smax.f32 %s3258, 0.0
      %s3260 = sadd.f32 %s3259, 2.5e-06
      %v3261 = vstv %s3260
      %v3262 = vrsqrt.pop %v3261
      %v3263 = vmul.f32 %v3262, %v3261
      %v3264 = vmul.f32 %v3263, %v3262
      %v3265 = vmul.f32 0.5, %v3264
      %v3266 = vsub.f32 1.5, %v3265
      %v3267 = vmul.f32 %v3262, %v3266
      %vm3268 = vweird.f32 %v3261
      %vm3269 = vweird.f32 %v3262
      %vm3270 = vmor %vm3268, %vm3269
      %v3271 = vsel %vm3270, %v3262, %v3267
      %s3272 = vtos %v3271
      %v3273 = vld [vmem:[%s5] sm:$0x1]
      %v3274 = vld [vmem:[%s6] sm:$0x1]
      %v3275 = vstv %s3255
      %v3276 = vsub.f32 %v2984, %v3275
      %v3277 = vsub.f32 %v2987, %v3275
      %v3278 = vsub.f32 %v2990, %v3275
      %v3279 = vsub.f32 %v2993, %v3275
      %v3280 = vsub.f32 %v2996, %v3275
      %v3281 = vsub.f32 %v2999, %v3275
      %v3282 = vsub.f32 %v3002, %v3275
      %v3283 = vsub.f32 %v3005, %v3275
      %v3284 = vsub.f32 %v3008, %v3275
      %v3285 = vsub.f32 %v3011, %v3275
      %v3286 = vsub.f32 %v3014, %v3275
      %v3287 = vsub.f32 %v3017, %v3275
      %v3288 = vsub.f32 %v3020, %v3275
      %v3289 = vsub.f32 %v3023, %v3275
      %v3290 = vsub.f32 %v3026, %v3275
      %v3291 = vsub.f32 %v3029, %v3275
      %v3292 = vsub.f32 %v3032, %v3275
      %v3293 = vsub.f32 %v3035, %v3275
      %v3294 = vsub.f32 %v3038, %v3275
      %v3295 = vsub.f32 %v3041, %v3275
      %v3296 = vsub.f32 %v3044, %v3275
      %v3297 = vsub.f32 %v3047, %v3275
      %v3298 = vsub.f32 %v3050, %v3275
      %v3299 = vsub.f32 %v3053, %v3275
      %v3300 = vsub.f32 %v3056, %v3275
      %v3301 = vsub.f32 %v3059, %v3275
      %v3302 = vsub.f32 %v3062, %v3275
      %v3303 = vsub.f32 %v3065, %v3275
      %v3304 = vsub.f32 %v3068, %v3275
      %v3305 = vsub.f32 %v3071, %v3275
      %v3306 = vsub.f32 %v3074, %v3275
      %v3307 = vsub.f32 %v3077, %v3275
      %v3308 = vstv %s3272
      %v3309 = vmul.f32 %v3276, %v3308
      %v3310 = vmul.f32 %v3277, %v3308
      %v3311 = vmul.f32 %v3278, %v3308
      %v3312 = vmul.f32 %v3279, %v3308
      %v3313 = vmul.f32 %v3280, %v3308
      %v3314 = vmul.f32 %v3281, %v3308
      %v3315 = vmul.f32 %v3282, %v3308
      %v3316 = vmul.f32 %v3283, %v3308
      %v3317 = vmul.f32 %v3284, %v3308
      %v3318 = vmul.f32 %v3285, %v3308
      %v3319 = vmul.f32 %v3286, %v3308
      %v3320 = vmul.f32 %v3287, %v3308
      %v3321 = vmul.f32 %v3288, %v3308
      %v3322 = vmul.f32 %v3289, %v3308
      %v3323 = vmul.f32 %v3290, %v3308
      %v3324 = vmul.f32 %v3291, %v3308
      %v3325 = vmul.f32 %v3292, %v3308
      %v3326 = vmul.f32 %v3293, %v3308
      %v3327 = vmul.f32 %v3294, %v3308
      %v3328 = vmul.f32 %v3295, %v3308
      %v3329 = vmul.f32 %v3296, %v3308
      %v3330 = vmul.f32 %v3297, %v3308
      %v3331 = vmul.f32 %v3298, %v3308
      %v3332 = vmul.f32 %v3299, %v3308
      %v3333 = vmul.f32 %v3300, %v3308
      %v3334 = vmul.f32 %v3301, %v3308
      %v3335 = vmul.f32 %v3302, %v3308
      %v3336 = vmul.f32 %v3303, %v3308
      %v3337 = vmul.f32 %v3304, %v3308
      %v3338 = vmul.f32 %v3305, %v3308
      %v3339 = vmul.f32 %v3306, %v3308
      %v3340 = vmul.f32 %v3307, %v3308
      %v3342 = vperm.slane %v3273, 0
      %v3344 = vmul.f32 %v3309, %v3342
      %v3345 = vmul.f32 %v3310, %v3342
      %v3346 = vmul.f32 %v3311, %v3342
      %v3347 = vmul.f32 %v3312, %v3342
      %v3348 = vmul.f32 %v3313, %v3342
      %v3349 = vmul.f32 %v3314, %v3342
      %v3350 = vmul.f32 %v3315, %v3342
      %v3351 = vmul.f32 %v3316, %v3342
      %v3352 = vmul.f32 %v3317, %v3342
      %v3353 = vmul.f32 %v3318, %v3342
      %v3354 = vmul.f32 %v3319, %v3342
      %v3355 = vmul.f32 %v3320, %v3342
      %v3356 = vmul.f32 %v3321, %v3342
      %v3357 = vmul.f32 %v3322, %v3342
      %v3358 = vmul.f32 %v3323, %v3342
      %v3359 = vmul.f32 %v3324, %v3342
      %v3360 = vmul.f32 %v3325, %v3342
      %v3361 = vmul.f32 %v3326, %v3342
      %v3362 = vmul.f32 %v3327, %v3342
      %v3363 = vmul.f32 %v3328, %v3342
      %v3364 = vmul.f32 %v3329, %v3342
      %v3365 = vmul.f32 %v3330, %v3342
      %v3366 = vmul.f32 %v3331, %v3342
      %v3367 = vmul.f32 %v3332, %v3342
      %v3368 = vmul.f32 %v3333, %v3342
      %v3369 = vmul.f32 %v3334, %v3342
      %v3370 = vmul.f32 %v3335, %v3342
      %v3371 = vmul.f32 %v3336, %v3342
      %v3372 = vmul.f32 %v3337, %v3342
      %v3373 = vmul.f32 %v3338, %v3342
      %v3374 = vmul.f32 %v3339, %v3342
      %v3375 = vmul.f32 %v3340, %v3342
      %v3377 = vperm.slane %v3274, 0
      %v3379 = vadd.f32 %v3344, %v3377
      %v3380 = vadd.f32 %v3345, %v3377
      %v3381 = vadd.f32 %v3346, %v3377
      %v3382 = vadd.f32 %v3347, %v3377
      %v3383 = vadd.f32 %v3348, %v3377
      %v3384 = vadd.f32 %v3349, %v3377
      %v3385 = vadd.f32 %v3350, %v3377
      %v3386 = vadd.f32 %v3351, %v3377
      %v3387 = vadd.f32 %v3352, %v3377
      %v3388 = vadd.f32 %v3353, %v3377
      %v3389 = vadd.f32 %v3354, %v3377
      %v3390 = vadd.f32 %v3355, %v3377
      %v3391 = vadd.f32 %v3356, %v3377
      %v3392 = vadd.f32 %v3357, %v3377
      %v3393 = vadd.f32 %v3358, %v3377
      %v3394 = vadd.f32 %v3359, %v3377
      %v3395 = vadd.f32 %v3360, %v3377
      %v3396 = vadd.f32 %v3361, %v3377
      %v3397 = vadd.f32 %v3362, %v3377
      %v3398 = vadd.f32 %v3363, %v3377
      %v3399 = vadd.f32 %v3364, %v3377
      %v3400 = vadd.f32 %v3365, %v3377
      %v3401 = vadd.f32 %v3366, %v3377
      %v3402 = vadd.f32 %v3367, %v3377
      %v3403 = vadd.f32 %v3368, %v3377
      %v3404 = vadd.f32 %v3369, %v3377
      %v3405 = vadd.f32 %v3370, %v3377
      %v3406 = vadd.f32 %v3371, %v3377
      %v3407 = vadd.f32 %v3372, %v3377
      %v3408 = vadd.f32 %v3373, %v3377
      %v3409 = vadd.f32 %v3374, %v3377
      %v3410 = vadd.f32 %v3375, %v3377
      %v3411 = vmax.f32 %v3379, 0.0
      %v3412 = vmax.f32 %v3380, 0.0
      %v3413 = vmax.f32 %v3381, 0.0
      %v3414 = vmax.f32 %v3382, 0.0
      %v3415 = vmax.f32 %v3383, 0.0
      %v3416 = vmax.f32 %v3384, 0.0
      %v3417 = vmax.f32 %v3385, 0.0
      %v3418 = vmax.f32 %v3386, 0.0
      %v3419 = vmax.f32 %v3387, 0.0
      %v3420 = vmax.f32 %v3388, 0.0
      %v3421 = vmax.f32 %v3389, 0.0
      %v3422 = vmax.f32 %v3390, 0.0
      %v3423 = vmax.f32 %v3391, 0.0
      %v3424 = vmax.f32 %v3392, 0.0
      %v3425 = vmax.f32 %v3393, 0.0
      %v3426 = vmax.f32 %v3394, 0.0
      %v3427 = vmax.f32 %v3395, 0.0
      %v3428 = vmax.f32 %v3396, 0.0
      %v3429 = vmax.f32 %v3397, 0.0
      %v3430 = vmax.f32 %v3398, 0.0
      %v3431 = vmax.f32 %v3399, 0.0
      %v3432 = vmax.f32 %v3400, 0.0
      %v3433 = vmax.f32 %v3401, 0.0
      %v3434 = vmax.f32 %v3402, 0.0
      %v3435 = vmax.f32 %v3403, 0.0
      %v3436 = vmax.f32 %v3404, 0.0
      %v3437 = vmax.f32 %v3405, 0.0
      %v3438 = vmax.f32 %v3406, 0.0
      %v3439 = vmax.f32 %v3407, 0.0
      %v3440 = vmax.f32 %v3408, 0.0
      %v3441 = vmax.f32 %v3409, 0.0
      %v3442 = vmax.f32 %v3410, 0.0
      %v3443 = vld [vmem:[%s9] sm:$0xff]
      %v3444 = vld [vmem:[%s9 + $0x8] sm:$0xff]
      %v3445 = vld [vmem:[%s9 + $0x10] sm:$0xff]
      %v3446 = vld [vmem:[%s9 + $0x18] sm:$0xff]
      %v3447 = vld [vmem:[%s10] sm:$0xff]
      %v3448 = vld [vmem:[%s10 + $0x8] sm:$0xff]
      %v3449 = vld [vmem:[%s10 + $0x10] sm:$0xff]
      %v3450 = vld [vmem:[%s10 + $0x18] sm:$0xff]
      %v3452 = vsel %vm455, %v3447, 0
      %v3455 = vsel %vm455, %v3448, 0
      %v3458 = vsel %vm455, %v3449, 0
      %v3461 = vsel %vm455, %v3450, 0
      %3463 = vmatpush.xpose.msra.mxu0 %v868
      %3464 = vmatpush.xpose.msra.mxu0 %v865
      %3465 = vmatpush.xpose.msra.mxu0 %v862
      %3466 = vmatpush.xpose.msra.mxu0 %v859
      %3467 = vmatpush.xpose.msra.mxu0 %v856
      %3468 = vmatpush.xpose.msra.mxu0 %v853
      %3469 = vmatpush.xpose.msra.mxu0 %v850
      %3470 = vmatpush.xpose.msra.mxu0 %v847
      %3471 = vmatpush.xpose.msra.mxu0 %v844
      %3472 = vmatpush.xpose.msra.mxu0 %v841
      %3473 = vmatpush.xpose.msra.mxu0 %v838
      %3474 = vmatpush.xpose.msra.mxu0 %v835
      %3475 = vmatpush.xpose.msra.mxu0 %v832
      %3476 = vmatpush.xpose.msra.mxu0 %v829
      %3477 = vmatpush.xpose.msra.mxu0 %v826
      %3478 = vmatpush.xpose.msra.mxu0 %v823
      %3479 = vmatmul.f32.gmra.mxu0 %v3452
      %v3480 = vpop.f32.mrf.mxu0
      %v3481 = vadd.f32 0.0, %v3480
      %3482 = vmatmul.f32.gmra.mxu0 %v3455
      %v3483 = vpop.f32.mrf.mxu0
      %v3484 = vadd.f32 0.0, %v3483
      %3485 = vmatmul.f32.gmra.mxu0 %v3458
      %v3486 = vpop.f32.mrf.mxu0
      %v3487 = vadd.f32 0.0, %v3486
      %3488 = vmatmul.f32.gmra.mxu0 %v3461
      %v3489 = vpop.f32.mrf.mxu0
      %v3490 = vadd.f32 0.0, %v3489
      %3491 = vdwg.mxu0
      %3492 = vmatpush.xpose.msra.mxu0 %v916
      %3493 = vmatpush.xpose.msra.mxu0 %v913
      %3494 = vmatpush.xpose.msra.mxu0 %v910
      %3495 = vmatpush.xpose.msra.mxu0 %v907
      %3496 = vmatpush.xpose.msra.mxu0 %v904
      %3497 = vmatpush.xpose.msra.mxu0 %v901
      %3498 = vmatpush.xpose.msra.mxu0 %v898
      %3499 = vmatpush.xpose.msra.mxu0 %v895
      %3500 = vmatpush.xpose.msra.mxu0 %v892
      %3501 = vmatpush.xpose.msra.mxu0 %v889
      %3502 = vmatpush.xpose.msra.mxu0 %v886
      %3503 = vmatpush.xpose.msra.mxu0 %v883
      %3504 = vmatpush.xpose.msra.mxu0 %v880
      %3505 = vmatpush.xpose.msra.mxu0 %v877
      %3506 = vmatpush.xpose.msra.mxu0 %v874
      %3507 = vmatpush.xpose.msra.mxu0 %v871
      %3508 = vmatmul.f32.gmra.mxu0 %v3452
      %v3509 = vpop.f32.mrf.mxu0
      %v3510 = vadd.f32 0.0, %v3509
      %3511 = vmatmul.f32.gmra.mxu0 %v3455
      %v3512 = vpop.f32.mrf.mxu0
      %v3513 = vadd.f32 0.0, %v3512
      %3514 = vmatmul.f32.gmra.mxu0 %v3458
      %v3515 = vpop.f32.mrf.mxu0
      %v3516 = vadd.f32 0.0, %v3515
      %3517 = vmatmul.f32.gmra.mxu0 %v3461
      %v3518 = vpop.f32.mrf.mxu0
      %v3519 = vadd.f32 0.0, %v3518
      %3520 = vdwg.mxu0
      %v3522 = vsel %vm1031, %v3443, 0
      %v3525 = vsel %vm1031, %v3444, 0
      %v3528 = vsel %vm1031, %v3445, 0
      %v3531 = vsel %vm1031, %v3446, 0
      %v3534 = vsel %vm1031, %v3411, 0
      %v3537 = vsel %vm1031, %v3412, 0
      %v3540 = vsel %vm1031, %v3413, 0
      %v3543 = vsel %vm1031, %v3414, 0
      %v3546 = vsel %vm1031, %v3415, 0
      %v3549 = vsel %vm1031, %v3416, 0
      %v3552 = vsel %vm1031, %v3417, 0
      %v3555 = vsel %vm1031, %v3418, 0
      %v3558 = vsel %vm1031, %v3419, 0
      %v3561 = vsel %vm1031, %v3420, 0
      %v3564 = vsel %vm1031, %v3421, 0
      %v3567 = vsel %vm1031, %v3422, 0
      %v3570 = vsel %vm1031, %v3423, 0
      %v3573 = vsel %vm1031, %v3424, 0
      %v3576 = vsel %vm1031, %v3425, 0
      %v3579 = vsel %vm1031, %v3426, 0
      %v3582 = vsel %vm1031, %v3427, 0
      %v3585 = vsel %vm1031, %v3428, 0
      %v3588 = vsel %vm1031, %v3429, 0
      %v3591 = vsel %vm1031, %v3430, 0
      %v3594 = vsel %vm1031, %v3431, 0
      %v3597 = vsel %vm1031, %v3432, 0
      %v3600 = vsel %vm1031, %v3433, 0
      %v3603 = vsel %vm1031, %v3434, 0
      %v3606 = vsel %vm1031, %v3435, 0
      %v3609 = vsel %vm1031, %v3436, 0
      %v3612 = vsel %vm1031, %v3437, 0
      %v3615 = vsel %vm1031, %v3438, 0
      %v3618 = vsel %vm1031, %v3439, 0
      %v3621 = vsel %vm1031, %v3440, 0
      %v3624 = vsel %vm1031, %v3441, 0
      %v3627 = vsel %vm1031, %v3442, 0
      %3629 = vmatpush.xpose.msra.mxu0 %v3579
      %3630 = vmatpush.xpose.msra.mxu0 %v3576
      %3631 = vmatpush.xpose.msra.mxu0 %v3573
      %3632 = vmatpush.xpose.msra.mxu0 %v3570
      %3633 = vmatpush.xpose.msra.mxu0 %v3567
      %3634 = vmatpush.xpose.msra.mxu0 %v3564
      %3635 = vmatpush.xpose.msra.mxu0 %v3561
      %3636 = vmatpush.xpose.msra.mxu0 %v3558
      %3637 = vmatpush.xpose.msra.mxu0 %v3555
      %3638 = vmatpush.xpose.msra.mxu0 %v3552
      %3639 = vmatpush.xpose.msra.mxu0 %v3549
      %3640 = vmatpush.xpose.msra.mxu0 %v3546
      %3641 = vmatpush.xpose.msra.mxu0 %v3543
      %3642 = vmatpush.xpose.msra.mxu0 %v3540
      %3643 = vmatpush.xpose.msra.mxu0 %v3537
      %3644 = vmatpush.xpose.msra.mxu0 %v3534
      %3645 = vmatmul.f32.gmra.mxu0 %v3522
      %v3646 = vpop.f32.mrf.mxu0
      %v3647 = vadd.f32 %v3481, %v3646
      %3648 = vmatmul.f32.gmra.mxu0 %v3525
      %v3649 = vpop.f32.mrf.mxu0
      %v3650 = vadd.f32 %v3484, %v3649
      %3651 = vmatmul.f32.gmra.mxu0 %v3528
      %v3652 = vpop.f32.mrf.mxu0
      %v3653 = vadd.f32 %v3487, %v3652
      %3654 = vmatmul.f32.gmra.mxu0 %v3531
      %v3655 = vpop.f32.mrf.mxu0
      %v3656 = vadd.f32 %v3490, %v3655
      %3657 = vdwg.mxu0
      %3658 = vmatpush.xpose.msra.mxu0 %v3627
      %3659 = vmatpush.xpose.msra.mxu0 %v3624
      %3660 = vmatpush.xpose.msra.mxu0 %v3621
      %3661 = vmatpush.xpose.msra.mxu0 %v3618
      %3662 = vmatpush.xpose.msra.mxu0 %v3615
      %3663 = vmatpush.xpose.msra.mxu0 %v3612
      %3664 = vmatpush.xpose.msra.mxu0 %v3609
      %3665 = vmatpush.xpose.msra.mxu0 %v3606
      %3666 = vmatpush.xpose.msra.mxu0 %v3603
      %3667 = vmatpush.xpose.msra.mxu0 %v3600
      %3668 = vmatpush.xpose.msra.mxu0 %v3597
      %3669 = vmatpush.xpose.msra.mxu0 %v3594
      %3670 = vmatpush.xpose.msra.mxu0 %v3591
      %3671 = vmatpush.xpose.msra.mxu0 %v3588
      %3672 = vmatpush.xpose.msra.mxu0 %v3585
      %3673 = vmatpush.xpose.msra.mxu0 %v3582
      %3674 = vmatmul.f32.gmra.mxu0 %v3522
      %v3675 = vpop.f32.mrf.mxu0
      %v3676 = vadd.f32 %v3510, %v3675
      %3677 = vmatmul.f32.gmra.mxu0 %v3525
      %v3678 = vpop.f32.mrf.mxu0
      %v3679 = vadd.f32 %v3513, %v3678
      %3680 = vmatmul.f32.gmra.mxu0 %v3528
      %v3681 = vpop.f32.mrf.mxu0
      %v3682 = vadd.f32 %v3516, %v3681
      %3683 = vmatmul.f32.gmra.mxu0 %v3531
      %v3684 = vpop.f32.mrf.mxu0
      %v3685 = vadd.f32 %v3519, %v3684
      %3686 = vdwg.mxu0
      %3687 = vst [vmem:[%s386] sm:$0xff] %v3647
      %3688 = vst [vmem:[%s386 + $0x8] sm:$0xff] %v3676
      %3689 = vst [vmem:[%s386 + $0x10] sm:$0xff] %v3650
      %3690 = vst [vmem:[%s386 + $0x18] sm:$0xff] %v3679
      %3691 = vst [vmem:[%s386 + $0x20] sm:$0xff] %v3653
      %3692 = vst [vmem:[%s386 + $0x28] sm:$0xff] %v3682
      %3693 = vst [vmem:[%s386 + $0x30] sm:$0xff] %v3656
      %3694 = vst [vmem:[%s386 + $0x38] sm:$0xff] %v3685
      %p3695 = scmp.lt.s32.totalorder %s22, 1
      %s3696 = scalar_select %p3695, %s22, 1
      %s3697 = smul.addr %s3696, 8
      %s3698 = smul.addr %s3697, 8
      %s3699 = scalar_lea.vmem %s11, %s3698
      // Predicated region
      $region65: #{bottleneck_forward.1} parent=63 // pred_check
        %p3700 = pneg %p276
      $region66: #{bottleneck_forward.1} parent=63 // pred_check_branch
        %3702 = sbr.rel (%p3700) target = $region68
      $region67: #{bottleneck_forward.1} parent=63 // pred_region
        _
      $region68: #{bottleneck_forward.1} parent=63 // pred_fallthru
        _
    $region64: #{bottleneck_forward.1} parent=5 // pred_fallthru
      _
    %p3703 = scmp.le.s32.totalorder 2, %s17
    // Predicated region
    $region69: #{bottleneck_forward.1} parent=5 // pred_check
      %p3704 = pneg %p3703
    $region70: #{bottleneck_forward.1} parent=5 // pred_check_branch
      %3706 = sbr.rel (%p3704) target = $region72
    $region71: #{bottleneck_forward.1} parent=5 // pred_region
      %s3707 = ssub.s32 %s17, 2
      // Predicated region
      $region73: #{bottleneck_forward.1} parent=71 // pred_check
        %p3708 = pneg %p282
      $region74: #{bottleneck_forward.1} parent=71 // pred_check_branch
        %3710 = sbr.rel (%p3708) target = $region76
      $region75: #{bottleneck_forward.1} parent=71 // pred_region
        %p3711 = scmp.lt.s32.totalorder %s23, 1
        %s3712 = scalar_select %p3711, %s23, 1
        %s3713 = smul.addr %s3712, 8
        %s3714 = smul.addr %s3713, 8
        %s3715 = scalar_lea.vmem %s11, %s3714
      $region76: #{bottleneck_forward.1} parent=71 // pred_fallthru
        _
    $region72: #{bottleneck_forward.1} parent=5 // pred_fallthru
      _
  $region6: #{bottleneck_forward.1} parent=0 // loop_footer
    %s21 = sadd.s32 1, %s17
  $region7: #{bottleneck_forward.1} parent=0 // loop_footer_branch
    %16 = sbr.rel target = $region3
  $region8: #{bottleneck_forward.1} parent=0 // loop_exit
    _

</llo_original>
